<compile_context>
chip_gen: v7x
topology: tpu7x:2x2x1
jax: 0.10.0
libtpu: 0.0.40
codegen_flags: <defaults>
</compile_context>

<pallas_src>
import functools

import numpy as np
import jax
import jax.numpy as jnp
from jax import lax
from jax.experimental import pallas as pl
from jax.experimental.pallas import tpu as pltpu

EPS = 1e-5  # nn.BatchNorm2d default eps
PAD = 3     # 7x7 conv, padding 3


# ---------------------------------------------------------------------------
# Fused kernel: channel-attention MLP + gating + spatial attention + gating
# All activations live in the lane-dense (rows=H, lanes=W*C) layout.
# ---------------------------------------------------------------------------
def _gam_kernel(x_ref, w1_ref, b1_ref, w2_ref, b2_ref,
                t1w_ref, t1b_ref, t2w_ref, t2b_ref,
                o_ref, xg_pad, y_pad, xg_f32,
                *, hh, ww, c1, cmid, c2):
    # One-time zero of the padded scratch: halo stays zero for all grid steps, the
    # interior is fully overwritten every step.  Safe because the batch grid axis is
    # "arbitrary" (sequential, step 0 first; no megacore split of this axis).
    @pl.when(pl.program_id(0) == 0)
    def _():
        xg_pad[...] = jnp.zeros_like(xg_pad)
        y_pad[...] = jnp.zeros_like(y_pad)

    x = x_ref[0]                                           # (H, W*C1) f32, lane-dense
    xb = x.astype(jnp.bfloat16)

    # ---- channel attention MLP (Linear -> ReLU -> Linear), block-diag over W ----
    h1 = jnp.dot(xb, w1_ref[...], preferred_element_type=jnp.float32) + b1_ref[...]
    h1 = jnp.maximum(h1, 0.0)                              # (H, W*Cmid) f32
    att = jnp.dot(h1.astype(jnp.bfloat16), w2_ref[...],
                  preferred_element_type=jnp.float32) + b2_ref[...]
    xg = x * att                                           # gated activation, f32

    # Stash f32 gate input (bounded live range) and write the bf16 padded copy once.
    xg_f32[...] = xg
    xg_pad[PAD:PAD + hh, PAD * c1:(PAD + ww) * c1] = xg.astype(jnp.bfloat16)

    # ---- conv #1: 7x7 (grouped, bias+BN folded), 7 per-kh Toeplitz matmuls ----
    acc1 = jnp.zeros((hh, ww * cmid), jnp.float32)
    for kh in range(7):
        acc1 = acc1 + jnp.dot(xg_pad[kh:kh + hh, :], t1w_ref[kh],
                              preferred_element_type=jnp.float32)
    y = jnp.maximum(acc1 + t1b_ref[...], 0.0)              # (H, W*Cmid) f32
    y_pad[PAD:PAD + hh, PAD * cmid:(PAD + ww) * cmid] = y.astype(jnp.bfloat16)

    # ---- conv #2: 7x7 (grouped, bias+BN+channel_shuffle folded) -> sigmoid ----
    acc2 = jnp.zeros((hh, ww * c2), jnp.float32)
    for kh in range(7):
        acc2 = acc2 + jnp.dot(y_pad[kh:kh + hh, :], t2w_ref[kh],
                              preferred_element_type=jnp.float32)
    satt = jax.nn.sigmoid(acc2 + t2b_ref[...])             # (H, W*C2) f32

    # ---- final gate (f32 xg * spatial attention), lane-dense unmasked store ----
    o_ref[0] = (xg_f32[...] * satt).astype(o_ref.dtype)


# ---------------------------------------------------------------------------
# Host-side parameter preparation
# ---------------------------------------------------------------------------
def grouped_conv_to_dense_hwio(w_oihw, groups):
    """Expand a grouped OIHW conv weight into a block-diagonal dense HWIO weight."""
    w = np.asarray(w_oihw, np.float32)
    out_ch, in_pg, kh, kw = w.shape
    out_pg = out_ch // groups
    in_ch = in_pg * groups
    dense = np.zeros((kh, kw, in_ch, out_ch), np.float32)
    for g in range(groups):
        for o in range(out_pg):
            oc = g * out_pg + o
            for i in range(in_pg):
                ic = g * in_pg + i
                dense[:, :, ic, oc] = w[oc, i]
    return dense


def _toeplitz_weight(dense_hwio, w_out):
    """Fold the kw taps into a block-Toeplitz matrix per kh.

    Result[kh, wi*Cin + c, wo*Cout + n] = dense_hwio[kh, wi-wo, c, n] for 0<=wi-wo<7.
    Multiplying a padded row slab (H, (W+6)*Cin) by Result[kh] and summing over kh
    yields the conv output directly in the lane-dense (H, W*Cout) layout.
    """
    n_kh, n_kw, cin, cout = dense_hwio.shape
    T = np.zeros((n_kh, (w_out + 2 * PAD) * cin, w_out * cout), np.float32)
    for kh in range(n_kh):
        for wo in range(w_out):
            for kw in range(n_kw):
                wi = wo + kw
                T[kh, wi * cin:(wi + 1) * cin, wo * cout:(wo + 1) * cout] = \
                    dense_hwio[kh, kw]
    return T


def gam_attention_pallas(x_nchw, p, rate=4):
    b, c1, hh, ww = x_nchw.shape
    cmid = c1 // rate
    c2 = c1
    assert c1 == c2

    # NCHW -> NHWC -> lane-dense (B, H, W*C) view (free reshape of the same bytes).
    x_ld = jnp.transpose(x_nchw, (0, 2, 3, 1)).reshape(b, hh, ww * c1)

    # Channel-attention MLP: PyTorch (out,in) -> (in,out), tiled block-diagonally over
    # the W lane positions so the matmul runs directly in the lane-dense layout.
    w1 = np.asarray(p["lin1_w"], np.float32).T                  # (C1, Cmid)
    w2 = np.asarray(p["lin2_w"], np.float32).T                  # (Cmid, C1)
    eye_w = np.eye(ww, dtype=np.float32)
    w1bd = np.kron(eye_w, w1)                                   # (W*C1, W*Cmid)
    w2bd = np.kron(eye_w, w2)                                   # (W*Cmid, W*C1)
    b1t = np.tile(np.asarray(p["lin1_b"], np.float32), ww)[None, :]
    b2t = np.tile(np.asarray(p["lin2_b"], np.float32), ww)[None, :]

    # Conv bias + BatchNorm (inference) folded to per-channel scale/shift.
    s1 = np.asarray(p["bn1_gamma"]) / np.sqrt(np.asarray(p["bn1_var"]) + EPS)
    t1 = (np.asarray(p["conv1_b"]) - np.asarray(p["bn1_mean"])) * s1 + np.asarray(p["bn1_beta"])
    s2 = np.asarray(p["bn2_gamma"]) / np.sqrt(np.asarray(p["bn2_var"]) + EPS)
    t2 = (np.asarray(p["conv2_b"]) - np.asarray(p["bn2_mean"])) * s2 + np.asarray(p["bn2_beta"])

    # channel_shuffle(groups=4) folded into conv2's output-channel permutation.
    g = 4
    perm = np.array([(n % g) * (c2 // g) + n // g for n in range(c2)])

    # Grouped OIHW -> block-diag dense HWIO; BN scale folded into the weights.
    wd1 = grouped_conv_to_dense_hwio(p["conv1_w"], rate) * s1[None, None, None, :]
    wd2 = grouped_conv_to_dense_hwio(p["conv2_w"], rate)
    wd2 = wd2[:, :, :, perm] * s2[perm][None, None, None, :]

    t1w = _toeplitz_weight(wd1, ww)                             # (7, (W+6)*C1, W*Cmid)
    t2w = _toeplitz_weight(wd2, ww)                             # (7, (W+6)*Cmid, W*C2)
    t1b = np.tile(np.asarray(t1, np.float32), ww)[None, :]      # (1, W*Cmid)
    t2b = np.tile(np.asarray(t2, np.float32)[perm], ww)[None, :]  # (1, W*C2)

    kernel = functools.partial(_gam_kernel, hh=hh, ww=ww, c1=c1, cmid=cmid, c2=c2)

    # Explicit VMEM budget: resident weights + scratch + double-buffered I/O blocks.
    resident = (
        (t1w.size + t2w.size + w1bd.size + w2bd.size) * 2                 # bf16 weights
        + (b1t.size + b2t.size + t1b.size + t2b.size) * 4                 # f32 biases
        + (hh + 2 * PAD) * (ww + 2 * PAD) * (c1 + cmid) * 2               # bf16 pads
        + hh * ww * c1 * 4                                                # f32 xg stash
        + 2 * (hh * ww * c1 * 4 + hh * ww * c2 * 4))                      # 2x in/out blocks
    vmem_limit = int(min(max(2 * resident, 8 << 20), 64 << 20))

    out_ld = pl.pallas_call(
        kernel,
        out_shape=jax.ShapeDtypeStruct((b, hh, ww * c2), x_ld.dtype),
        grid_spec=pltpu.PrefetchScalarGridSpec(
            num_scalar_prefetch=0,
            grid=(b,),
            in_specs=[
                pl.BlockSpec((1, hh, ww * c1), lambda i: (i, 0, 0)),
                pl.BlockSpec((ww * c1, ww * cmid), lambda i: (0, 0)),
                pl.BlockSpec((1, ww * cmid), lambda i: (0, 0)),
                pl.BlockSpec((ww * cmid, ww * c1), lambda i: (0, 0)),
                pl.BlockSpec((1, ww * c1), lambda i: (0, 0)),
                pl.BlockSpec((7, (ww + 2 * PAD) * c1, ww * cmid), lambda i: (0, 0, 0)),
                pl.BlockSpec((1, ww * cmid), lambda i: (0, 0)),
                pl.BlockSpec((7, (ww + 2 * PAD) * cmid, ww * c2), lambda i: (0, 0, 0)),
                pl.BlockSpec((1, ww * c2), lambda i: (0, 0)),
            ],
            out_specs=pl.BlockSpec((1, hh, ww * c2), lambda i: (i, 0, 0)),
            scratch_shapes=[
                pltpu.VMEM((hh + 2 * PAD, (ww + 2 * PAD) * c1), jnp.bfloat16),   # xg pad
                pltpu.VMEM((hh + 2 * PAD, (ww + 2 * PAD) * cmid), jnp.bfloat16), # y pad
                pltpu.VMEM((hh, ww * c1), jnp.float32),                          # xg f32
            ],
        ),
        compiler_params=pltpu.CompilerParams(
            dimension_semantics=("arbitrary",),   # halo zeroed once at step 0
            vmem_limit_bytes=vmem_limit),
    )(x_ld,
      jnp.asarray(w1bd, jnp.bfloat16), jnp.asarray(b1t, jnp.float32),
      jnp.asarray(w2bd, jnp.bfloat16), jnp.asarray(b2t, jnp.float32),
      jnp.asarray(t1w, jnp.bfloat16), jnp.asarray(t1b, jnp.float32),
      jnp.asarray(t2w, jnp.bfloat16), jnp.asarray(t2b, jnp.float32))

    out_nhwc = out_ld.reshape(b, hh, ww, c2)
    return jnp.transpose(out_nhwc, (0, 3, 1, 2))                # back to NCHW


# ---------------------------------------------------------------------------
# Pure-JAX reference (mirrors the PyTorch forward exactly, inference-mode BN)
# ---------------------------------------------------------------------------
def gam_attention_ref(x_nchw, p, rate=4):
    b, c1, hh, ww = x_nchw.shape
    xp = jnp.transpose(x_nchw, (0, 2, 3, 1)).reshape(b, hh * ww, c1)
    hmid = jnp.maximum(
        jnp.einsum("bnc,dc->bnd", xp, p["lin1_w"], precision=lax.Precision.HIGHEST)
        + p["lin1_b"], 0.0)
    att = jnp.einsum("bnd,cd->bnc", hmid, p["lin2_w"],
                     precision=lax.Precision.HIGHEST) + p["lin2_b"]
    att = jnp.transpose(att.reshape(b, hh, ww, c1), (0, 3, 1, 2))
    x = x_nchw * att

    def bn(y, gamma, beta, mean, var):
        inv = gamma / jnp.sqrt(var + EPS)
        return (y - mean[None, :, None, None]) * inv[None, :, None, None] \
            + beta[None, :, None, None]

    y = lax.conv_general_dilated(x, p["conv1_w"], (1, 1), [(3, 3), (3, 3)],
                                 dimension_numbers=("NCHW", "OIHW", "NCHW"),
                                 feature_group_count=rate,
                                 precision=lax.Precision.HIGHEST)
    y = y + p["conv1_b"][None, :, None, None]
    y = jnp.maximum(bn(y, p["bn1_gamma"], p["bn1_beta"], p["bn1_mean"], p["bn1_var"]), 0.0)
    z = lax.conv_general_dilated(y, p["conv2_w"], (1, 1), [(3, 3), (3, 3)],
                                 dimension_numbers=("NCHW", "OIHW", "NCHW"),
                                 feature_group_count=rate,
                                 precision=lax.Precision.HIGHEST)
    z = z + p["conv2_b"][None, :, None, None]
    z = bn(z, p["bn2_gamma"], p["bn2_beta"], p["bn2_mean"], p["bn2_var"])
    satt = jax.nn.sigmoid(z)
    g = 4
    satt = satt.reshape(b, g, c1 // g, hh, ww).transpose(0, 2, 1, 3, 4).reshape(b, c1, hh, ww)
    return x * satt


# ---------------------------------------------------------------------------
if __name__ == "__main__":
    b, c1, hh, ww = 2, 16, 16, 16      # c1 == c2; c1 divisible by rate**2 for grouped convs
    rate = 4
    cmid = c1 // rate

    key = jax.random.PRNGKey(0)
    keys = jax.random.split(key, 17)

    def rn(k, shape, scale=0.1):
        return jax.random.normal(k, shape, jnp.float32) * scale

    params = dict(
        # channel_attention: Linear(c1 -> c1/rate), Linear(c1/rate -> c1)   (PyTorch (out, in))
        lin1_w=rn(keys[0], (cmid, c1), 0.2),
        lin1_b=rn(keys[1], (cmid,), 0.1),
        lin2_w=rn(keys[2], (c1, cmid), 0.2),
        lin2_b=rn(keys[3], (c1,), 0.1),
        # spatial_attention: Conv2d(c1, c1//rate, 7, pad=3, groups=rate) -> (4, 4, 7, 7)
        conv1_w=rn(keys[4], (cmid, c1 // rate, 7, 7), 0.05),
        conv1_b=rn(keys[5], (cmid,), 0.1),
        bn1_gamma=1.0 + rn(keys[6], (cmid,), 0.1),
        bn1_beta=rn(keys[7], (cmid,), 0.1),
        bn1_mean=rn(keys[8], (cmid,), 0.1),
        bn1_var=1.0 + jax.random.uniform(keys[9], (cmid,), jnp.float32, 0.0, 0.5),
        # Conv2d(c1//rate, c2, 7, pad=3, groups=rate) -> (16, 1, 7, 7)
        conv2_w=rn(keys[10], (c1, cmid // rate, 7, 7), 0.05),
        conv2_b=rn(keys[11], (c1,), 0.1),
        bn2_gamma=1.0 + rn(keys[12], (c1,), 0.1),
        bn2_beta=rn(keys[13], (c1,), 0.1),
        bn2_mean=rn(keys[14], (c1,), 0.1),
        bn2_var=1.0 + jax.random.uniform(keys[15], (c1,), jnp.float32, 0.0, 0.5),
    )

    x = jax.random.normal(keys[16], (b, c1, hh, ww), jnp.float32)   # NCHW input

    out = gam_attention_pallas(x, params, rate=rate)
    out = jax.block_until_ready(out)

    ref = gam_attention_ref(x, params, rate=rate)
    # bf16 MXU operands (f32 accumulation) vs a Precision.HIGHEST reference.
    np.testing.assert_allclose(np.asarray(out), np.asarray(ref), rtol=5e-2, atol=1e-2)

    print("KERNEL_OK")
</pallas_src>

<mosaic_0001>
module attributes {stable_mosaic.version = 11 : i64} {
  func.func @_gam_kernel(%arg0: i32, %arg1: memref<1x16x256xf32, #tpu.memory_space<vmem>>, %arg2: memref<256x64xbf16, #tpu.memory_space<vmem>>, %arg3: memref<1x64xf32, #tpu.memory_space<vmem>>, %arg4: memref<64x256xbf16, #tpu.memory_space<vmem>>, %arg5: memref<1x256xf32, #tpu.memory_space<vmem>>, %arg6: memref<7x352x64xbf16, #tpu.memory_space<vmem>>, %arg7: memref<1x64xf32, #tpu.memory_space<vmem>>, %arg8: memref<7x88x256xbf16, #tpu.memory_space<vmem>>, %arg9: memref<1x256xf32, #tpu.memory_space<vmem>>, %arg10: memref<1x16x256xf32, #tpu.memory_space<vmem>>, %arg11: memref<22x352xbf16, #tpu.memory_space<vmem>>, %arg12: memref<22x88xbf16, #tpu.memory_space<vmem>>, %arg13: memref<16x256xf32, #tpu.memory_space<vmem>>) attributes {dimension_semantics = [#tpu.dimension_semantics<arbitrary>], iteration_bounds = array<i64: 2>, scalar_prefetch = 0 : i64, scratch_operands = 3 : i64, tpu.core_type = #tpu.core_type<tc>, window_params = [{transform_indices = @transform_0, window_bounds = array<i64: 1, 16, 256>}, {pipeline_mode = #tpu.pipeline_mode<synchronous>, transform_indices = @transform_1, window_bounds = array<i64: 256, 64>}, {pipeline_mode = #tpu.pipeline_mode<synchronous>, transform_indices = @transform_2, window_bounds = array<i64: 1, 64>}, {pipeline_mode = #tpu.pipeline_mode<synchronous>, transform_indices = @transform_3, window_bounds = array<i64: 64, 256>}, {pipeline_mode = #tpu.pipeline_mode<synchronous>, transform_indices = @transform_4, window_bounds = array<i64: 1, 256>}, {pipeline_mode = #tpu.pipeline_mode<synchronous>, transform_indices = @transform_5, window_bounds = array<i64: 7, 352, 64>}, {pipeline_mode = #tpu.pipeline_mode<synchronous>, transform_indices = @transform_6, window_bounds = array<i64: 1, 64>}, {pipeline_mode = #tpu.pipeline_mode<synchronous>, transform_indices = @transform_7, window_bounds = array<i64: 7, 88, 256>}, {pipeline_mode = #tpu.pipeline_mode<synchronous>, transform_indices = @transform_8, window_bounds = array<i64: 1, 256>}, {transform_indices = @transform_9, window_bounds = array<i64: 1, 16, 256>}]} {
    %c0_i32 = arith.constant 0 : i32
    %0 = arith.cmpi eq, %arg0, %c0_i32 : i32
    %1 = arith.extui %0 : i1 to i32
    %c0_i32_0 = arith.constant 0 : i32
    %2 = arith.cmpi ne, %1, %c0_i32_0 : i32
    scf.if %2 {
      %cst_108 = arith.constant 0.000000e+00 : bf16
      %115 = vector.broadcast %cst_108 : bf16 to vector<22x352xbf16>
      %c0_109 = arith.constant 0 : index
      %c0_110 = arith.constant 0 : index
      %116 = vector.load %arg11[%c0_109, %c0_110] : memref<22x352xbf16, #tpu.memory_space<vmem>>, vector<22x352xbf16>
      tpu.vector_store %arg11[%c0_109, %c0_110], %115 {strides = array<i32>} : memref<22x352xbf16, #tpu.memory_space<vmem>>, vector<22x352xbf16>,
      %cst_111 = arith.constant 0.000000e+00 : bf16
      %117 = vector.broadcast %cst_111 : bf16 to vector<22x88xbf16>
      %c0_112 = arith.constant 0 : index
      %c0_113 = arith.constant 0 : index
      %118 = vector.load %arg12[%c0_112, %c0_113] : memref<22x88xbf16, #tpu.memory_space<vmem>>, vector<22x88xbf16>
      tpu.vector_store %arg12[%c0_112, %c0_113], %117 {strides = array<i32>} : memref<22x88xbf16, #tpu.memory_space<vmem>>, vector<22x88xbf16>,
    } else {
    }
    %c0 = arith.constant 0 : index
    %c0_1 = arith.constant 0 : index
    %c0_2 = arith.constant 0 : index
    %3 = vector.load %arg1[%c0, %c0_1, %c0_2] : memref<1x16x256xf32, #tpu.memory_space<vmem>>, vector<1x16x256xf32>
    %4 = vector.shape_cast %3 : vector<1x16x256xf32> to vector<16x256xf32>
    %5 = arith.truncf %4 : vector<16x256xf32> to vector<16x256xbf16>
    %c0_3 = arith.constant 0 : index
    %c0_4 = arith.constant 0 : index
    %6 = vector.load %arg2[%c0_3, %c0_4] : memref<256x64xbf16, #tpu.memory_space<vmem>>, vector<256x64xbf16>
    %cst = arith.constant dense<0.000000e+00> : vector<16x64xf32>
    %7 = tpu.matmul %5, %6, %cst {dimension_numbers = #tpu.dot_dimension_numbers<[1], [0], [0], [1], [0, 0, 1, 1], [], []>} : vector<16x256xbf16>, vector<256x64xbf16>, vector<16x64xf32> -> vector<16x64xf32>
    %c0_5 = arith.constant 0 : index
    %c0_6 = arith.constant 0 : index
    %8 = vector.load %arg3[%c0_5, %c0_6] : memref<1x64xf32, #tpu.memory_space<vmem>>, vector<1x64xf32>
    %9 = vector.broadcast %8 : vector<1x64xf32> to vector<16x64xf32>
    %10 = arith.addf %7, %9 : vector<16x64xf32>
    %cst_7 = arith.constant 0.000000e+00 : f32
    %11 = vector.broadcast %cst_7 : f32 to vector<16x64xf32>
    %12 = arith.maximumf %10, %11 : vector<16x64xf32>
    %13 = arith.truncf %12 : vector<16x64xf32> to vector<16x64xbf16>
    %c0_8 = arith.constant 0 : index
    %c0_9 = arith.constant 0 : index
    %14 = vector.load %arg4[%c0_8, %c0_9] : memref<64x256xbf16, #tpu.memory_space<vmem>>, vector<64x256xbf16>
    %cst_10 = arith.constant dense<0.000000e+00> : vector<16x256xf32>
    %15 = tpu.matmul %13, %14, %cst_10 {dimension_numbers = #tpu.dot_dimension_numbers<[1], [0], [0], [1], [0, 0, 1, 1], [], []>} : vector<16x64xbf16>, vector<64x256xbf16>, vector<16x256xf32> -> vector<16x256xf32>
    %c0_11 = arith.constant 0 : index
    %c0_12 = arith.constant 0 : index
    %16 = vector.load %arg5[%c0_11, %c0_12] : memref<1x256xf32, #tpu.memory_space<vmem>>, vector<1x256xf32>
    %17 = vector.broadcast %16 : vector<1x256xf32> to vector<16x256xf32>
    %18 = arith.addf %15, %17 : vector<16x256xf32>
    %19 = arith.mulf %4, %18 : vector<16x256xf32>
    %c0_13 = arith.constant 0 : index
    %c0_14 = arith.constant 0 : index
    %20 = vector.load %arg13[%c0_13, %c0_14] : memref<16x256xf32, #tpu.memory_space<vmem>>, vector<16x256xf32>
    tpu.vector_store %arg13[%c0_13, %c0_14], %19 {strides = array<i32>} : memref<16x256xf32, #tpu.memory_space<vmem>>, vector<16x256xf32>,
    %21 = arith.truncf %19 : vector<16x256xf32> to vector<16x256xbf16>
    %c3 = arith.constant 3 : index
    %c48 = arith.constant 48 : index
    %22 = vector.load %arg11[%c3, %c48] : memref<22x352xbf16, #tpu.memory_space<vmem>>, vector<16x256xbf16>
    tpu.vector_store %arg11[%c3, %c48], %21 {strides = array<i32>} : memref<22x352xbf16, #tpu.memory_space<vmem>>, vector<16x256xbf16>,
    %cst_15 = arith.constant 0.000000e+00 : f32
    %23 = vector.broadcast %cst_15 : f32 to vector<16x64xf32>
    %c0_16 = arith.constant 0 : index
    %c0_17 = arith.constant 0 : index
    %24 = vector.load %arg11[%c0_16, %c0_17] : memref<22x352xbf16, #tpu.memory_space<vmem>>, vector<16x352xbf16>
    %c0_18 = arith.constant 0 : index
    %c0_19 = arith.constant 0 : index
    %c0_20 = arith.constant 0 : index
    %25 = vector.load %arg6[%c0_18, %c0_19, %c0_20] : memref<7x352x64xbf16, #tpu.memory_space<vmem>>, vector<1x352x64xbf16>
    %26 = vector.shape_cast %25 : vector<1x352x64xbf16> to vector<352x64xbf16>
    %cst_21 = arith.constant dense<0.000000e+00> : vector<16x64xf32>
    %27 = tpu.matmul %24, %26, %cst_21 {dimension_numbers = #tpu.dot_dimension_numbers<[1], [0], [0], [1], [0, 0, 1, 1], [], []>} : vector<16x352xbf16>, vector<352x64xbf16>, vector<16x64xf32> -> vector<16x64xf32>
    %28 = arith.addf %23, %27 : vector<16x64xf32>
    %c1 = arith.constant 1 : index
    %c0_22 = arith.constant 0 : index
    %29 = vector.load %arg11[%c1, %c0_22] : memref<22x352xbf16, #tpu.memory_space<vmem>>, vector<16x352xbf16>
    %c1_23 = arith.constant 1 : index
    %c0_24 = arith.constant 0 : index
    %c0_25 = arith.constant 0 : index
    %30 = vector.load %arg6[%c1_23, %c0_24, %c0_25] : memref<7x352x64xbf16, #tpu.memory_space<vmem>>, vector<1x352x64xbf16>
    %31 = vector.shape_cast %30 : vector<1x352x64xbf16> to vector<352x64xbf16>
    %cst_26 = arith.constant dense<0.000000e+00> : vector<16x64xf32>
    %32 = tpu.matmul %29, %31, %cst_26 {dimension_numbers = #tpu.dot_dimension_numbers<[1], [0], [0], [1], [0, 0, 1, 1], [], []>} : vector<16x352xbf16>, vector<352x64xbf16>, vector<16x64xf32> -> vector<16x64xf32>
    %33 = arith.addf %28, %32 : vector<16x64xf32>
    %c2 = arith.constant 2 : index
    %c0_27 = arith.constant 0 : index
    %34 = vector.load %arg11[%c2, %c0_27] : memref<22x352xbf16, #tpu.memory_space<vmem>>, vector<16x352xbf16>
    %c2_28 = arith.constant 2 : index
    %c0_29 = arith.constant 0 : index
    %c0_30 = arith.constant 0 : index
    %35 = vector.load %arg6[%c2_28, %c0_29, %c0_30] : memref<7x352x64xbf16, #tpu.memory_space<vmem>>, vector<1x352x64xbf16>
    %36 = vector.shape_cast %35 : vector<1x352x64xbf16> to vector<352x64xbf16>
    %cst_31 = arith.constant dense<0.000000e+00> : vector<16x64xf32>
    %37 = tpu.matmul %34, %36, %cst_31 {dimension_numbers = #tpu.dot_dimension_numbers<[1], [0], [0], [1], [0, 0, 1, 1], [], []>} : vector<16x352xbf16>, vector<352x64xbf16>, vector<16x64xf32> -> vector<16x64xf32>
    %38 = arith.addf %33, %37 : vector<16x64xf32>
    %c3_32 = arith.constant 3 : index
    %c0_33 = arith.constant 0 : index
    %39 = vector.load %arg11[%c3_32, %c0_33] : memref<22x352xbf16, #tpu.memory_space<vmem>>, vector<16x352xbf16>
    %c3_34 = arith.constant 3 : index
    %c0_35 = arith.constant 0 : index
    %c0_36 = arith.constant 0 : index
    %40 = vector.load %arg6[%c3_34, %c0_35, %c0_36] : memref<7x352x64xbf16, #tpu.memory_space<vmem>>, vector<1x352x64xbf16>
    %41 = vector.shape_cast %40 : vector<1x352x64xbf16> to vector<352x64xbf16>
    %cst_37 = arith.constant dense<0.000000e+00> : vector<16x64xf32>
    %42 = tpu.matmul %39, %41, %cst_37 {dimension_numbers = #tpu.dot_dimension_numbers<[1], [0], [0], [1], [0, 0, 1, 1], [], []>} : vector<16x352xbf16>, vector<352x64xbf16>, vector<16x64xf32> -> vector<16x64xf32>
    %43 = arith.addf %38, %42 : vector<16x64xf32>
    %c4 = arith.constant 4 : index
    %c0_38 = arith.constant 0 : index
    %44 = vector.load %arg11[%c4, %c0_38] : memref<22x352xbf16, #tpu.memory_space<vmem>>, vector<16x352xbf16>
    %c4_39 = arith.constant 4 : index
    %c0_40 = arith.constant 0 : index
    %c0_41 = arith.constant 0 : index
    %45 = vector.load %arg6[%c4_39, %c0_40, %c0_41] : memref<7x352x64xbf16, #tpu.memory_space<vmem>>, vector<1x352x64xbf16>
    %46 = vector.shape_cast %45 : vector<1x352x64xbf16> to vector<352x64xbf16>
    %cst_42 = arith.constant dense<0.000000e+00> : vector<16x64xf32>
    %47 = tpu.matmul %44, %46, %cst_42 {dimension_numbers = #tpu.dot_dimension_numbers<[1], [0], [0], [1], [0, 0, 1, 1], [], []>} : vector<16x352xbf16>, vector<352x64xbf16>, vector<16x64xf32> -> vector<16x64xf32>
    %48 = arith.addf %43, %47 : vector<16x64xf32>
    %c5 = arith.constant 5 : index
    %c0_43 = arith.constant 0 : index
    %49 = vector.load %arg11[%c5, %c0_43] : memref<22x352xbf16, #tpu.memory_space<vmem>>, vector<16x352xbf16>
    %c5_44 = arith.constant 5 : index
    %c0_45 = arith.constant 0 : index
    %c0_46 = arith.constant 0 : index
    %50 = vector.load %arg6[%c5_44, %c0_45, %c0_46] : memref<7x352x64xbf16, #tpu.memory_space<vmem>>, vector<1x352x64xbf16>
    %51 = vector.shape_cast %50 : vector<1x352x64xbf16> to vector<352x64xbf16>
    %cst_47 = arith.constant dense<0.000000e+00> : vector<16x64xf32>
    %52 = tpu.matmul %49, %51, %cst_47 {dimension_numbers = #tpu.dot_dimension_numbers<[1], [0], [0], [1], [0, 0, 1, 1], [], []>} : vector<16x352xbf16>, vector<352x64xbf16>, vector<16x64xf32> -> vector<16x64xf32>
    %53 = arith.addf %48, %52 : vector<16x64xf32>
    %c6 = arith.constant 6 : index
    %c0_48 = arith.constant 0 : index
    %54 = vector.load %arg11[%c6, %c0_48] : memref<22x352xbf16, #tpu.memory_space<vmem>>, vector<16x352xbf16>
    %c6_49 = arith.constant 6 : index
    %c0_50 = arith.constant 0 : index
    %c0_51 = arith.constant 0 : index
    %55 = vector.load %arg6[%c6_49, %c0_50, %c0_51] : memref<7x352x64xbf16, #tpu.memory_space<vmem>>, vector<1x352x64xbf16>
    %56 = vector.shape_cast %55 : vector<1x352x64xbf16> to vector<352x64xbf16>
    %cst_52 = arith.constant dense<0.000000e+00> : vector<16x64xf32>
    %57 = tpu.matmul %54, %56, %cst_52 {dimension_numbers = #tpu.dot_dimension_numbers<[1], [0], [0], [1], [0, 0, 1, 1], [], []>} : vector<16x352xbf16>, vector<352x64xbf16>, vector<16x64xf32> -> vector<16x64xf32>
    %58 = arith.addf %53, %57 : vector<16x64xf32>
    %c0_53 = arith.constant 0 : index
    %c0_54 = arith.constant 0 : index
    %59 = vector.load %arg7[%c0_53, %c0_54] : memref<1x64xf32, #tpu.memory_space<vmem>>, vector<1x64xf32>
    %60 = vector.broadcast %59 : vector<1x64xf32> to vector<16x64xf32>
    %61 = arith.addf %58, %60 : vector<16x64xf32>
    %cst_55 = arith.constant 0.000000e+00 : f32
    %62 = vector.broadcast %cst_55 : f32 to vector<16x64xf32>
    %63 = arith.maximumf %61, %62 : vector<16x64xf32>
    %64 = arith.truncf %63 : vector<16x64xf32> to vector<16x64xbf16>
    %c3_56 = arith.constant 3 : index
    %c12 = arith.constant 12 : index
    %65 = vector.load %arg12[%c3_56, %c12] : memref<22x88xbf16, #tpu.memory_space<vmem>>, vector<16x64xbf16>
    tpu.vector_store %arg12[%c3_56, %c12], %64 {strides = array<i32>} : memref<22x88xbf16, #tpu.memory_space<vmem>>, vector<16x64xbf16>,
    %cst_57 = arith.constant 0.000000e+00 : f32
    %66 = vector.broadcast %cst_57 : f32 to vector<16x256xf32>
    %c0_58 = arith.constant 0 : index
    %c0_59 = arith.constant 0 : index
    %67 = vector.load %arg12[%c0_58, %c0_59] : memref<22x88xbf16, #tpu.memory_space<vmem>>, vector<16x88xbf16>
    %c0_60 = arith.constant 0 : index
    %c0_61 = arith.constant 0 : index
    %c0_62 = arith.constant 0 : index
    %68 = vector.load %arg8[%c0_60, %c0_61, %c0_62] : memref<7x88x256xbf16, #tpu.memory_space<vmem>>, vector<1x88x256xbf16>
    %69 = vector.shape_cast %68 : vector<1x88x256xbf16> to vector<88x256xbf16>
    %cst_63 = arith.constant dense<0.000000e+00> : vector<16x256xf32>
    %70 = tpu.matmul %67, %69, %cst_63 {dimension_numbers = #tpu.dot_dimension_numbers<[1], [0], [0], [1], [0, 0, 1, 1], [], []>} : vector<16x88xbf16>, vector<88x256xbf16>, vector<16x256xf32> -> vector<16x256xf32>
    %71 = arith.addf %66, %70 : vector<16x256xf32>
    %c1_64 = arith.constant 1 : index
    %c0_65 = arith.constant 0 : index
    %72 = vector.load %arg12[%c1_64, %c0_65] : memref<22x88xbf16, #tpu.memory_space<vmem>>, vector<16x88xbf16>
    %c1_66 = arith.constant 1 : index
    %c0_67 = arith.constant 0 : index
    %c0_68 = arith.constant 0 : index
    %73 = vector.load %arg8[%c1_66, %c0_67, %c0_68] : memref<7x88x256xbf16, #tpu.memory_space<vmem>>, vector<1x88x256xbf16>
    %74 = vector.shape_cast %73 : vector<1x88x256xbf16> to vector<88x256xbf16>
    %cst_69 = arith.constant dense<0.000000e+00> : vector<16x256xf32>
    %75 = tpu.matmul %72, %74, %cst_69 {dimension_numbers = #tpu.dot_dimension_numbers<[1], [0], [0], [1], [0, 0, 1, 1], [], []>} : vector<16x88xbf16>, vector<88x256xbf16>, vector<16x256xf32> -> vector<16x256xf32>
    %76 = arith.addf %71, %75 : vector<16x256xf32>
    %c2_70 = arith.constant 2 : index
    %c0_71 = arith.constant 0 : index
    %77 = vector.load %arg12[%c2_70, %c0_71] : memref<22x88xbf16, #tpu.memory_space<vmem>>, vector<16x88xbf16>
    %c2_72 = arith.constant 2 : index
    %c0_73 = arith.constant 0 : index
    %c0_74 = arith.constant 0 : index
    %78 = vector.load %arg8[%c2_72, %c0_73, %c0_74] : memref<7x88x256xbf16, #tpu.memory_space<vmem>>, vector<1x88x256xbf16>
    %79 = vector.shape_cast %78 : vector<1x88x256xbf16> to vector<88x256xbf16>
    %cst_75 = arith.constant dense<0.000000e+00> : vector<16x256xf32>
    %80 = tpu.matmul %77, %79, %cst_75 {dimension_numbers = #tpu.dot_dimension_numbers<[1], [0], [0], [1], [0, 0, 1, 1], [], []>} : vector<16x88xbf16>, vector<88x256xbf16>, vector<16x256xf32> -> vector<16x256xf32>
    %81 = arith.addf %76, %80 : vector<16x256xf32>
    %c3_76 = arith.constant 3 : index
    %c0_77 = arith.constant 0 : index
    %82 = vector.load %arg12[%c3_76, %c0_77] : memref<22x88xbf16, #tpu.memory_space<vmem>>, vector<16x88xbf16>
    %c3_78 = arith.constant 3 : index
    %c0_79 = arith.constant 0 : index
    %c0_80 = arith.constant 0 : index
    %83 = vector.load %arg8[%c3_78, %c0_79, %c0_80] : memref<7x88x256xbf16, #tpu.memory_space<vmem>>, vector<1x88x256xbf16>
    %84 = vector.shape_cast %83 : vector<1x88x256xbf16> to vector<88x256xbf16>
    %cst_81 = arith.constant dense<0.000000e+00> : vector<16x256xf32>
    %85 = tpu.matmul %82, %84, %cst_81 {dimension_numbers = #tpu.dot_dimension_numbers<[1], [0], [0], [1], [0, 0, 1, 1], [], []>} : vector<16x88xbf16>, vector<88x256xbf16>, vector<16x256xf32> -> vector<16x256xf32>
    %86 = arith.addf %81, %85 : vector<16x256xf32>
    %c4_82 = arith.constant 4 : index
    %c0_83 = arith.constant 0 : index
    %87 = vector.load %arg12[%c4_82, %c0_83] : memref<22x88xbf16, #tpu.memory_space<vmem>>, vector<16x88xbf16>
    %c4_84 = arith.constant 4 : index
    %c0_85 = arith.constant 0 : index
    %c0_86 = arith.constant 0 : index
    %88 = vector.load %arg8[%c4_84, %c0_85, %c0_86] : memref<7x88x256xbf16, #tpu.memory_space<vmem>>, vector<1x88x256xbf16>
    %89 = vector.shape_cast %88 : vector<1x88x256xbf16> to vector<88x256xbf16>
    %cst_87 = arith.constant dense<0.000000e+00> : vector<16x256xf32>
    %90 = tpu.matmul %87, %89, %cst_87 {dimension_numbers = #tpu.dot_dimension_numbers<[1], [0], [0], [1], [0, 0, 1, 1], [], []>} : vector<16x88xbf16>, vector<88x256xbf16>, vector<16x256xf32> -> vector<16x256xf32>
    %91 = arith.addf %86, %90 : vector<16x256xf32>
    %c5_88 = arith.constant 5 : index
    %c0_89 = arith.constant 0 : index
    %92 = vector.load %arg12[%c5_88, %c0_89] : memref<22x88xbf16, #tpu.memory_space<vmem>>, vector<16x88xbf16>
    %c5_90 = arith.constant 5 : index
    %c0_91 = arith.constant 0 : index
    %c0_92 = arith.constant 0 : index
    %93 = vector.load %arg8[%c5_90, %c0_91, %c0_92] : memref<7x88x256xbf16, #tpu.memory_space<vmem>>, vector<1x88x256xbf16>
    %94 = vector.shape_cast %93 : vector<1x88x256xbf16> to vector<88x256xbf16>
    %cst_93 = arith.constant dense<0.000000e+00> : vector<16x256xf32>
    %95 = tpu.matmul %92, %94, %cst_93 {dimension_numbers = #tpu.dot_dimension_numbers<[1], [0], [0], [1], [0, 0, 1, 1], [], []>} : vector<16x88xbf16>, vector<88x256xbf16>, vector<16x256xf32> -> vector<16x256xf32>
    %96 = arith.addf %91, %95 : vector<16x256xf32>
    %c6_94 = arith.constant 6 : index
    %c0_95 = arith.constant 0 : index
    %97 = vector.load %arg12[%c6_94, %c0_95] : memref<22x88xbf16, #tpu.memory_space<vmem>>, vector<16x88xbf16>
    %c6_96 = arith.constant 6 : index
    %c0_97 = arith.constant 0 : index
    %c0_98 = arith.constant 0 : index
    %98 = vector.load %arg8[%c6_96, %c0_97, %c0_98] : memref<7x88x256xbf16, #tpu.memory_space<vmem>>, vector<1x88x256xbf16>
    %99 = vector.shape_cast %98 : vector<1x88x256xbf16> to vector<88x256xbf16>
    %cst_99 = arith.constant dense<0.000000e+00> : vector<16x256xf32>
    %100 = tpu.matmul %97, %99, %cst_99 {dimension_numbers = #tpu.dot_dimension_numbers<[1], [0], [0], [1], [0, 0, 1, 1], [], []>} : vector<16x88xbf16>, vector<88x256xbf16>, vector<16x256xf32> -> vector<16x256xf32>
    %101 = arith.addf %96, %100 : vector<16x256xf32>
    %c0_100 = arith.constant 0 : index
    %c0_101 = arith.constant 0 : index
    %102 = vector.load %arg9[%c0_100, %c0_101] : memref<1x256xf32, #tpu.memory_space<vmem>>, vector<1x256xf32>
    %103 = vector.broadcast %102 : vector<1x256xf32> to vector<16x256xf32>
    %104 = arith.addf %101, %103 : vector<16x256xf32>
    %105 = arith.negf %104 : vector<16x256xf32>
    %106 = math.exp %105 : vector<16x256xf32>
    %cst_102 = arith.constant 1.000000e+00 : f32
    %107 = vector.broadcast %cst_102 : f32 to vector<16x256xf32>
    %108 = arith.addf %107, %106 : vector<16x256xf32>
    %109 = arith.divf %107, %108 : vector<16x256xf32>
    %c0_103 = arith.constant 0 : index
    %c0_104 = arith.constant 0 : index
    %110 = vector.load %arg13[%c0_103, %c0_104] : memref<16x256xf32, #tpu.memory_space<vmem>>, vector<16x256xf32>
    %111 = arith.mulf %110, %109 : vector<16x256xf32>
    %c0_105 = arith.constant 0 : index
    %c0_106 = arith.constant 0 : index
    %c0_107 = arith.constant 0 : index
    %112 = vector.load %arg10[%c0_105, %c0_106, %c0_107] : memref<1x16x256xf32, #tpu.memory_space<vmem>>, vector<1x16x256xf32>
    %113 = vector.shape_cast %112 : vector<1x16x256xf32> to vector<16x256xf32>
    %114 = vector.shape_cast %111 : vector<16x256xf32> to vector<1x16x256xf32>
    tpu.vector_store %arg10[%c0_105, %c0_106, %c0_107], %114 {strides = array<i32>} : memref<1x16x256xf32, #tpu.memory_space<vmem>>, vector<1x16x256xf32>,
    return
  }
  func.func @transform_0(%arg0: i32) -> (i32, i32, i32) {
    %c0_i32 = arith.constant 0 : i32
    %c0_i32_0 = arith.constant 0 : i32
    %c0_i32_1 = arith.constant 0 : i32
    return %arg0, %c0_i32, %c0_i32_0 : i32, i32, i32
  }
  func.func @transform_1(%arg0: i32) -> (i32, i32) {
    %c0_i32 = arith.constant 0 : i32
    %c0_i32_0 = arith.constant 0 : i32
    %c0_i32_1 = arith.constant 0 : i32
    return %c0_i32, %c0_i32_0 : i32, i32
  }
  func.func @transform_2(%arg0: i32) -> (i32, i32) {
    %c0_i32 = arith.constant 0 : i32
    %c0_i32_0 = arith.constant 0 : i32
    %c0_i32_1 = arith.constant 0 : i32
    return %c0_i32, %c0_i32_0 : i32, i32
  }
  func.func @transform_3(%arg0: i32) -> (i32, i32) {
    %c0_i32 = arith.constant 0 : i32
    %c0_i32_0 = arith.constant 0 : i32
    %c0_i32_1 = arith.constant 0 : i32
    return %c0_i32, %c0_i32_0 : i32, i32
  }
  func.func @transform_4(%arg0: i32) -> (i32, i32) {
    %c0_i32 = arith.constant 0 : i32
    %c0_i32_0 = arith.constant 0 : i32
    %c0_i32_1 = arith.constant 0 : i32
    return %c0_i32, %c0_i32_0 : i32, i32
  }
  func.func @transform_5(%arg0: i32) -> (i32, i32, i32) {
    %c0_i32 = arith.constant 0 : i32
    %c0_i32_0 = arith.constant 0 : i32
    %c0_i32_1 = arith.constant 0 : i32
    %c0_i32_2 = arith.constant 0 : i32
    return %c0_i32, %c0_i32_0, %c0_i32_1 : i32, i32, i32
  }
  func.func @transform_6(%arg0: i32) -> (i32, i32) {
    %c0_i32 = arith.constant 0 : i32
    %c0_i32_0 = arith.constant 0 : i32
    %c0_i32_1 = arith.constant 0 : i32
    return %c0_i32, %c0_i32_0 : i32, i32
  }
  func.func @transform_7(%arg0: i32) -> (i32, i32, i32) {
    %c0_i32 = arith.constant 0 : i32
    %c0_i32_0 = arith.constant 0 : i32
    %c0_i32_1 = arith.constant 0 : i32
    %c0_i32_2 = arith.constant 0 : i32
    return %c0_i32, %c0_i32_0, %c0_i32_1 : i32, i32, i32
  }
  func.func @transform_8(%arg0: i32) -> (i32, i32) {
    %c0_i32 = arith.constant 0 : i32
    %c0_i32_0 = arith.constant 0 : i32
    %c0_i32_1 = arith.constant 0 : i32
    return %c0_i32, %c0_i32_0 : i32, i32
  }
  func.func @transform_9(%arg0: i32) -> (i32, i32, i32) {
    %c0_i32 = arith.constant 0 : i32
    %c0_i32_0 = arith.constant 0 : i32
    %c0_i32_1 = arith.constant 0 : i32
    return %arg0, %c0_i32, %c0_i32_0 : i32, i32, i32
  }
}

</mosaic_0001>

<llo_original>
// kernel: tpu_custom_call.1
$region0: #{tpu_custom_call.1}
  #allocation0 [shape = 'u32[]', space=smem, size = 0x4, offset = 0x4, fixed_abs, tag = 'smem constant byte address 0x4 - core index']
  #allocation1 [shape = 'u32[144,128]{1,0:T(1,128)}', space=vmem, size = 0x12000, scoped, tag = 'internal scratch']
  #allocation2 [shape = 'bf16[22,352]{1,0:T(8,128)(2,1)}', space=vmem, size = 0x4800, scoped, tag = 'scratch operand']
  #allocation3 [shape = 'bf16[22,88]{1,0:T(8,128)(2,1)}', space=vmem, size = 0x1800, scoped, tag = 'scratch operand']
  #allocation4 [shape = 'f32[16,256]{1,0:T(8,128)}', space=vmem, size = 0x4000, scoped, tag = 'scratch operand']
  %s0 = inlined_call_operand.vmem [shape: f32[2,16,256], index: 0, kind: input, shape index: {}]
  %s1 = inlined_call_operand.vmem [shape: bf16[256,64], index: 1, kind: input, shape index: {}]
  %s2 = inlined_call_operand.vmem [shape: f32[1,64], index: 2, kind: input, shape index: {}]
  %s3 = inlined_call_operand.vmem [shape: bf16[64,256], index: 3, kind: input, shape index: {}]
  %s4 = inlined_call_operand.vmem [shape: f32[1,256], index: 4, kind: input, shape index: {}]
  %s5 = inlined_call_operand.vmem [shape: bf16[7,352,64], index: 5, kind: input, shape index: {}]
  %s6 = inlined_call_operand.vmem [shape: f32[1,64], index: 6, kind: input, shape index: {}]
  %s7 = inlined_call_operand.vmem [shape: bf16[7,88,256], index: 7, kind: input, shape index: {}]
  %s8 = inlined_call_operand.vmem [shape: f32[1,256], index: 8, kind: input, shape index: {}]
  %s9 = inlined_call_operand.hbm [shape: f32[2,16,256], index: 9, kind: output, shape index: {}]
  %s10 = sld [smem:[#allocation0]]
  $region73: #{tpu_custom_call.1} parent=0
    _
  %s12 = ssub.s32 1, %s10
  %s13 = scalar_select 0, %s12, %s10
  $region1: #{tpu_custom_call.1} parent=0
    #allocation5 [shape = 'u8[32768]{0}', space=vmem, size = 0x8000, scoped, tag = 'output window, operand 0']
    #allocation6 [shape = 's32[2]{0}', space=sflag, size = 0x8, scoped, tag = 'scoped memory for tpu_custom_call.1']
    %14 = vsyncpa [#allocation6], 0
    %s15 = scalar_lea.sflag [#allocation6], 1
    %16 = vsyncpa %s15, 0
    loop: start=0, step=1, limit=4
    $region2: #{tpu_custom_call.1} parent=1 // loop_pre_header
      _
    $region3: #{tpu_custom_call.1} parent=1 // loop_header
      %s18 = sphi 0, %s22
      %p19 = scmp.ge.s32.totalorder %s18, 4
      %s28 = sphi 0, %s30
      %s31 = sphi 0, %s28
      %s32 = sphi 0, %s31
      %s48 = sphi 0, %s32
      %s52 = sphi 0, %s52
      %s54 = sphi 0, %s52
      %s55 = sphi 0, %s54
      %s69 = sphi 0, %s55
      %s73 = sphi 0, %s73
      %s75 = sphi 0, %s73
      %s76 = sphi 0, %s75
      %s90 = sphi 0, %s76
      %s94 = sphi 0, %s94
      %s96 = sphi 0, %s94
      %s97 = sphi 0, %s96
      %s111 = sphi 0, %s97
      %s115 = sphi 0, %s115
      %s117 = sphi 0, %s115
      %s118 = sphi 0, %s117
      %s132 = sphi 0, %s118
      %s136 = sphi 0, %s136
      %s138 = sphi 0, %s136
      %s139 = sphi 0, %s138
      %s153 = sphi 0, %s139
      %s157 = sphi 0, %s157
      %s159 = sphi 0, %s157
      %s160 = sphi 0, %s159
      %s174 = sphi 0, %s160
      %s178 = sphi 0, %s178
      %s180 = sphi 0, %s178
      %s181 = sphi 0, %s180
      %s195 = sphi 0, %s181
      %s199 = sphi 0, %s199
      %s201 = sphi 0, %s199
      %s202 = sphi 0, %s201
      %s216 = sphi 0, %s202
      %s222 = sphi 0, %s224
      %s225 = sphi 0, %s222
      %s226 = sphi 0, %s225
      %s242 = sphi 0, %s226
    $region4: #{tpu_custom_call.1} parent=1 // loop_header_branch
      %21 = sbr.rel (%p19) target = $region8
    $region5: #{tpu_custom_call.1} parent=1 // loop_body
      %s23 = ssub.s32 %s18, 1
      %s24 = ssub.s32 %s18, 2
      %s25 = sadd.s32 %s18, 1
      %s26 = ssub.s32 %s18, %s25
      %p27 = scmp.eq.s32.totalorder %s26, 0
      %s29 = sadd.s32 %s28, 1
      %s30 = scalar_select %p27, %s28, %s29
      %p33 = pneg %p27
      %p34 = scmp.eq.s32.totalorder %s18, 1
      %p35 = por %p33, %p34
      %p36 = scmp.ne.s32.totalorder %s28, %s31
      %p37 = scmp.eq.s32.totalorder %s18, 0
      %p38 = por %p36, %p37
      %p39 = scmp.ne.s32.totalorder %s28, %s31
      %p40 = scmp.eq.s32.totalorder %s23, 1
      %p41 = por %p39, %p40
      %p42 = scmp.ne.s32.totalorder %s31, %s32
      %p43 = scmp.eq.s32.totalorder %s23, 0
      %p44 = por %p42, %p43
      %p45 = scmp.ne.s32.totalorder %s31, %s32
      %p46 = scmp.eq.s32.totalorder %s24, 1
      %p47 = por %p45, %p46
      %p49 = scmp.ne.s32.totalorder %s32, %s48
      %p50 = scmp.eq.s32.totalorder %s24, 0
      %p51 = por %p49, %p50
      %s53 = sadd.s32 %s52, 1
      %p56 = scmp.eq.s32.totalorder %s18, 1
      %p57 = scmp.ne.s32.totalorder %s52, %s54
      %p58 = scmp.eq.s32.totalorder %s18, 0
      %p59 = por %p57, %p58
      %p60 = scmp.ne.s32.totalorder %s52, %s54
      %p61 = scmp.eq.s32.totalorder %s23, 1
      %p62 = por %p60, %p61
      %p63 = scmp.ne.s32.totalorder %s54, %s55
      %p64 = scmp.eq.s32.totalorder %s23, 0
      %p65 = por %p63, %p64
      %p66 = scmp.ne.s32.totalorder %s54, %s55
      %p67 = scmp.eq.s32.totalorder %s24, 1
      %p68 = por %p66, %p67
      %p70 = scmp.ne.s32.totalorder %s55, %s69
      %p71 = scmp.eq.s32.totalorder %s24, 0
      %p72 = por %p70, %p71
      %s74 = sadd.s32 %s73, 1
      %p77 = scmp.eq.s32.totalorder %s18, 1
      %p78 = scmp.ne.s32.totalorder %s73, %s75
      %p79 = scmp.eq.s32.totalorder %s18, 0
      %p80 = por %p78, %p79
      %p81 = scmp.ne.s32.totalorder %s73, %s75
      %p82 = scmp.eq.s32.totalorder %s23, 1
      %p83 = por %p81, %p82
      %p84 = scmp.ne.s32.totalorder %s75, %s76
      %p85 = scmp.eq.s32.totalorder %s23, 0
      %p86 = por %p84, %p85
      %p87 = scmp.ne.s32.totalorder %s75, %s76
      %p88 = scmp.eq.s32.totalorder %s24, 1
      %p89 = por %p87, %p88
      %p91 = scmp.ne.s32.totalorder %s76, %s90
      %p92 = scmp.eq.s32.totalorder %s24, 0
      %p93 = por %p91, %p92
      %s95 = sadd.s32 %s94, 1
      %p98 = scmp.eq.s32.totalorder %s18, 1
      %p99 = scmp.ne.s32.totalorder %s94, %s96
      %p100 = scmp.eq.s32.totalorder %s18, 0
      %p101 = por %p99, %p100
      %p102 = scmp.ne.s32.totalorder %s94, %s96
      %p103 = scmp.eq.s32.totalorder %s23, 1
      %p104 = por %p102, %p103
      %p105 = scmp.ne.s32.totalorder %s96, %s97
      %p106 = scmp.eq.s32.totalorder %s23, 0
      %p107 = por %p105, %p106
      %p108 = scmp.ne.s32.totalorder %s96, %s97
      %p109 = scmp.eq.s32.totalorder %s24, 1
      %p110 = por %p108, %p109
      %p112 = scmp.ne.s32.totalorder %s97, %s111
      %p113 = scmp.eq.s32.totalorder %s24, 0
      %p114 = por %p112, %p113
      %s116 = sadd.s32 %s115, 1
      %p119 = scmp.eq.s32.totalorder %s18, 1
      %p120 = scmp.ne.s32.totalorder %s115, %s117
      %p121 = scmp.eq.s32.totalorder %s18, 0
      %p122 = por %p120, %p121
      %p123 = scmp.ne.s32.totalorder %s115, %s117
      %p124 = scmp.eq.s32.totalorder %s23, 1
      %p125 = por %p123, %p124
      %p126 = scmp.ne.s32.totalorder %s117, %s118
      %p127 = scmp.eq.s32.totalorder %s23, 0
      %p128 = por %p126, %p127
      %p129 = scmp.ne.s32.totalorder %s117, %s118
      %p130 = scmp.eq.s32.totalorder %s24, 1
      %p131 = por %p129, %p130
      %p133 = scmp.ne.s32.totalorder %s118, %s132
      %p134 = scmp.eq.s32.totalorder %s24, 0
      %p135 = por %p133, %p134
      %s137 = sadd.s32 %s136, 1
      %p140 = scmp.eq.s32.totalorder %s18, 1
      %p141 = scmp.ne.s32.totalorder %s136, %s138
      %p142 = scmp.eq.s32.totalorder %s18, 0
      %p143 = por %p141, %p142
      %p144 = scmp.ne.s32.totalorder %s136, %s138
      %p145 = scmp.eq.s32.totalorder %s23, 1
      %p146 = por %p144, %p145
      %p147 = scmp.ne.s32.totalorder %s138, %s139
      %p148 = scmp.eq.s32.totalorder %s23, 0
      %p149 = por %p147, %p148
      %p150 = scmp.ne.s32.totalorder %s138, %s139
      %p151 = scmp.eq.s32.totalorder %s24, 1
      %p152 = por %p150, %p151
      %p154 = scmp.ne.s32.totalorder %s139, %s153
      %p155 = scmp.eq.s32.totalorder %s24, 0
      %p156 = por %p154, %p155
      %s158 = sadd.s32 %s157, 1
      %p161 = scmp.eq.s32.totalorder %s18, 1
      %p162 = scmp.ne.s32.totalorder %s157, %s159
      %p163 = scmp.eq.s32.totalorder %s18, 0
      %p164 = por %p162, %p163
      %p165 = scmp.ne.s32.totalorder %s157, %s159
      %p166 = scmp.eq.s32.totalorder %s23, 1
      %p167 = por %p165, %p166
      %p168 = scmp.ne.s32.totalorder %s159, %s160
      %p169 = scmp.eq.s32.totalorder %s23, 0
      %p170 = por %p168, %p169
      %p171 = scmp.ne.s32.totalorder %s159, %s160
      %p172 = scmp.eq.s32.totalorder %s24, 1
      %p173 = por %p171, %p172
      %p175 = scmp.ne.s32.totalorder %s160, %s174
      %p176 = scmp.eq.s32.totalorder %s24, 0
      %p177 = por %p175, %p176
      %s179 = sadd.s32 %s178, 1
      %p182 = scmp.eq.s32.totalorder %s18, 1
      %p183 = scmp.ne.s32.totalorder %s178, %s180
      %p184 = scmp.eq.s32.totalorder %s18, 0
      %p185 = por %p183, %p184
      %p186 = scmp.ne.s32.totalorder %s178, %s180
      %p187 = scmp.eq.s32.totalorder %s23, 1
      %p188 = por %p186, %p187
      %p189 = scmp.ne.s32.totalorder %s180, %s181
      %p190 = scmp.eq.s32.totalorder %s23, 0
      %p191 = por %p189, %p190
      %p192 = scmp.ne.s32.totalorder %s180, %s181
      %p193 = scmp.eq.s32.totalorder %s24, 1
      %p194 = por %p192, %p193
      %p196 = scmp.ne.s32.totalorder %s181, %s195
      %p197 = scmp.eq.s32.totalorder %s24, 0
      %p198 = por %p196, %p197
      %s200 = sadd.s32 %s199, 1
      %p203 = scmp.eq.s32.totalorder %s18, 1
      %p204 = scmp.ne.s32.totalorder %s199, %s201
      %p205 = scmp.eq.s32.totalorder %s18, 0
      %p206 = por %p204, %p205
      %p207 = scmp.ne.s32.totalorder %s199, %s201
      %p208 = scmp.eq.s32.totalorder %s23, 1
      %p209 = por %p207, %p208
      %p210 = scmp.ne.s32.totalorder %s201, %s202
      %p211 = scmp.eq.s32.totalorder %s23, 0
      %p212 = por %p210, %p211
      %p213 = scmp.ne.s32.totalorder %s201, %s202
      %p214 = scmp.eq.s32.totalorder %s24, 1
      %p215 = por %p213, %p214
      %p217 = scmp.ne.s32.totalorder %s202, %s216
      %p218 = scmp.eq.s32.totalorder %s24, 0
      %p219 = por %p217, %p218
      %s220 = ssub.s32 %s18, %s25
      %p221 = scmp.eq.s32.totalorder %s220, 0
      %s223 = sadd.s32 %s222, 1
      %s224 = scalar_select %p221, %s222, %s223
      %p227 = pneg %p221
      %p228 = scmp.eq.s32.totalorder %s18, 1
      %p229 = por %p227, %p228
      %p230 = scmp.ne.s32.totalorder %s222, %s225
      %p231 = scmp.eq.s32.totalorder %s18, 0
      %p232 = por %p230, %p231
      %p233 = scmp.ne.s32.totalorder %s222, %s225
      %p234 = scmp.eq.s32.totalorder %s23, 1
      %p235 = por %p233, %p234
      %p236 = scmp.ne.s32.totalorder %s225, %s226
      %p237 = scmp.eq.s32.totalorder %s23, 0
      %p238 = por %p236, %p237
      %p239 = scmp.ne.s32.totalorder %s225, %s226
      %p240 = scmp.eq.s32.totalorder %s24, 1
      %p241 = por %p239, %p240
      %p243 = scmp.ne.s32.totalorder %s226, %s242
      %p244 = scmp.eq.s32.totalorder %s24, 0
      %p245 = por %p243, %p244
      %p246 = scmp.le.s32.totalorder 1, %s18
      %p247 = scmp.lt.s32.totalorder %s18, 3
      %p248 = pnand %p246, %p247
      %p249 = pneg %p248
      // Predicated region
      $region9: #{tpu_custom_call.1} parent=5 // pred_check
        _
      $region10: #{tpu_custom_call.1} parent=5 // pred_check_branch
        %251 = sbr.rel (%p248) target = $region12
      $region11: #{tpu_custom_call.1} parent=5 // pred_region
        %s252 = ssub.s32 %s18, 1
        // Predicated region
        $region13: #{tpu_custom_call.1} parent=11 // pred_check
          %p253 = pneg %p65
        $region14: #{tpu_custom_call.1} parent=11 // pred_check_branch
          %255 = sbr.rel (%p253) target = $region16
        $region15: #{tpu_custom_call.1} parent=11 // pred_region
          _
        $region16: #{tpu_custom_call.1} parent=11 // pred_fallthru
          _
        // Predicated region
        $region17: #{tpu_custom_call.1} parent=11 // pred_check
          %p256 = pneg %p86
        $region18: #{tpu_custom_call.1} parent=11 // pred_check_branch
          %258 = sbr.rel (%p256) target = $region20
        $region19: #{tpu_custom_call.1} parent=11 // pred_region
          _
        $region20: #{tpu_custom_call.1} parent=11 // pred_fallthru
          _
        // Predicated region
        $region21: #{tpu_custom_call.1} parent=11 // pred_check
          %p259 = pneg %p107
        $region22: #{tpu_custom_call.1} parent=11 // pred_check_branch
          %261 = sbr.rel (%p259) target = $region24
        $region23: #{tpu_custom_call.1} parent=11 // pred_region
          _
        $region24: #{tpu_custom_call.1} parent=11 // pred_fallthru
          _
        // Predicated region
        $region25: #{tpu_custom_call.1} parent=11 // pred_check
          %p262 = pneg %p128
        $region26: #{tpu_custom_call.1} parent=11 // pred_check_branch
          %264 = sbr.rel (%p262) target = $region28
        $region27: #{tpu_custom_call.1} parent=11 // pred_region
          _
        $region28: #{tpu_custom_call.1} parent=11 // pred_fallthru
          _
        // Predicated region
        $region29: #{tpu_custom_call.1} parent=11 // pred_check
          %p265 = pneg %p149
        $region30: #{tpu_custom_call.1} parent=11 // pred_check_branch
          %267 = sbr.rel (%p265) target = $region32
        $region31: #{tpu_custom_call.1} parent=11 // pred_region
          _
        $region32: #{tpu_custom_call.1} parent=11 // pred_fallthru
          _
        // Predicated region
        $region33: #{tpu_custom_call.1} parent=11 // pred_check
          %p268 = pneg %p170
        $region34: #{tpu_custom_call.1} parent=11 // pred_check_branch
          %270 = sbr.rel (%p268) target = $region36
        $region35: #{tpu_custom_call.1} parent=11 // pred_region
          _
        $region36: #{tpu_custom_call.1} parent=11 // pred_fallthru
          _
        // Predicated region
        $region37: #{tpu_custom_call.1} parent=11 // pred_check
          %p271 = pneg %p191
        $region38: #{tpu_custom_call.1} parent=11 // pred_check_branch
          %273 = sbr.rel (%p271) target = $region40
        $region39: #{tpu_custom_call.1} parent=11 // pred_region
          _
        $region40: #{tpu_custom_call.1} parent=11 // pred_fallthru
          _
        // Predicated region
        $region41: #{tpu_custom_call.1} parent=11 // pred_check
          %p274 = pneg %p212
        $region42: #{tpu_custom_call.1} parent=11 // pred_check_branch
          %276 = sbr.rel (%p274) target = $region44
        $region43: #{tpu_custom_call.1} parent=11 // pred_region
          _
        $region44: #{tpu_custom_call.1} parent=11 // pred_fallthru
          _
      $region12: #{tpu_custom_call.1} parent=5 // pred_fallthru
        _
      %p277 = scmp.lt.s32.totalorder %s18, 2
      // Predicated region
      $region45: #{tpu_custom_call.1} parent=5 // pred_check
        %p278 = pneg %p277
      $region46: #{tpu_custom_call.1} parent=5 // pred_check_branch
        %280 = sbr.rel (%p278) target = $region48
      $region47: #{tpu_custom_call.1} parent=5 // pred_region
        // Predicated region
        $region49: #{tpu_custom_call.1} parent=47 // pred_check
          %p281 = pneg %p38
        $region50: #{tpu_custom_call.1} parent=47 // pred_check_branch
          %283 = sbr.rel (%p281) target = $region52
        $region51: #{tpu_custom_call.1} parent=47 // pred_region
          %p284 = scmp.lt.s32.totalorder %s18, 1
          %s285 = scalar_select %p284, %s18, 1
          %s286 = smul.addr %s285, 4
          %s287 = smul.addr %s286, 8
          %s288 = scalar_lea.vmem %s0, %s287
        $region52: #{tpu_custom_call.1} parent=47 // pred_fallthru
          _
      $region48: #{tpu_custom_call.1} parent=5 // pred_fallthru
        _
      %p289 = scmp.le.s32.totalorder 1, %s18
      %p290 = scmp.lt.s32.totalorder %s18, 3
      %p291 = pnand %p289, %p290
      %p292 = pneg %p291
      // Predicated region
      $region53: #{tpu_custom_call.1} parent=5 // pred_check
        _
      $region54: #{tpu_custom_call.1} parent=5 // pred_check_branch
        %294 = sbr.rel (%p291) target = $region56
      $region55: #{tpu_custom_call.1} parent=5 // pred_region
        %s295 = ssub.s32 %s18, 1
        %p296 = scmp.lt.s32.totalorder %s23, 1
        %s297 = scalar_select %p296, %s23, 1
        %s298 = smul.addr %s297, 4
        %s299 = smul.addr %s298, 8
        %s300 = scalar_lea.vmem %s0, %s299
        %p301 = pneg %p44
        %p302 = pneg %p41
        %p303 = pneg %p65
        %p304 = pneg %p62
        %p305 = pneg %p86
        %p306 = pneg %p83
        %p307 = pneg %p107
        %p308 = pneg %p104
        %p309 = pneg %p128
        %p310 = pneg %p125
        %p311 = pneg %p149
        %p312 = pneg %p146
        %p313 = pneg %p170
        %p314 = pneg %p167
        %p315 = pneg %p191
        %p316 = pneg %p188
        %p317 = pneg %p212
        %p318 = pneg %p209
        %p319 = pneg %p238
        %p320 = pneg %p235
        %s321 = sand.u32 %s225, 1
        %s322 = scalar_lea.sflag [#allocation6], %s321
        %s323 = sand.u32 %s225, 1
        %s324 = smul.addr %s323, 32
        %s325 = scalar_lea.vmem [#allocation5], %s324
        %p326 = scmp.lt.s32.totalorder %s23, 1
        %s327 = scalar_select %p326, %s23, 1
        %s328 = smul.addr %s327, 4
        %s329 = smul.addr %s328, 8
        %s330 = scalar_lea.vmem %s0, %s329
        %p332 = scmp.eq.s32.totalorder %s23, 0
        // Predicated region
        $region57: #{tpu_custom_call.1} parent=55 // pred_check
          %p333 = pneg %p332
        $region58: #{tpu_custom_call.1} parent=55 // pred_check_branch
          %335 = sbr.rel (%p333) target = $region60
        $region59: #{tpu_custom_call.1} parent=55 // pred_region
          %336 = vst [vmem:[#allocation2] sm:$0xff] 0
          %vm337 = vcmask 781312
          %338 = vst.msk [vmem:[#allocation2 + $0x8] sm:$0xf] %vm337, 0
          %339 = vst [vmem:[#allocation2 + $0xc] sm:$0xff] 0
          %340 = vst.msk [vmem:[#allocation2 + $0x14] sm:$0xf] %vm337, 0
          %341 = vst [vmem:[#allocation2 + $0x18] sm:$0x77] 0
          %vm342 = vcmask 780288
          %343 = vst.msk [vmem:[#allocation2 + $0x20] sm:$0x7] %vm342, 0
          %vm344 = vcmask 715776
          %345 = vst.msk [vmem:[#allocation3] sm:$0xf] %vm344, 0
          %346 = vst.msk [vmem:[#allocation3 + $0x4] sm:$0xf] %vm344, 0
          %vm347 = vcmask 714752
          %348 = vst.msk [vmem:[#allocation3 + $0x8] sm:$0x7] %vm347, 0
        $region60: #{tpu_custom_call.1} parent=55 // pred_fallthru
          _
        %v349 = vld [vmem:[%s330] sm:$0xff]
        %v350 = vld [vmem:[%s330 + $0x8] sm:$0xff]
        %v351 = vld [vmem:[%s330 + $0x10] sm:$0xff]
        %v352 = vld [vmem:[%s330 + $0x18] sm:$0xff]
        %v353 = vpack.c.bf16 %v351, %v349
        %v354 = vpack.c.bf16 %v352, %v350
        %v355 = vld [vmem:[%s1] sm:$0xf]
        %v356 = vld [vmem:[%s1 + $0x4] sm:$0xf]
        %v357 = vld [vmem:[%s1 + $0x8] sm:$0xf]
        %v358 = vld [vmem:[%s1 + $0xc] sm:$0xf]
        %v359 = vld [vmem:[%s1 + $0x10] sm:$0xf]
        %v360 = vld [vmem:[%s1 + $0x14] sm:$0xf]
        %v361 = vld [vmem:[%s1 + $0x18] sm:$0xf]
        %v362 = vld [vmem:[%s1 + $0x1c] sm:$0xf]
        %v363 = vld [vmem:[%s1 + $0x20] sm:$0xf]
        %v364 = vld [vmem:[%s1 + $0x24] sm:$0xf]
        %v365 = vld [vmem:[%s1 + $0x28] sm:$0xf]
        %v366 = vld [vmem:[%s1 + $0x2c] sm:$0xf]
        %v367 = vld [vmem:[%s1 + $0x30] sm:$0xf]
        %v368 = vld [vmem:[%s1 + $0x34] sm:$0xf]
        %v369 = vld [vmem:[%s1 + $0x38] sm:$0xf]
        %v370 = vld [vmem:[%s1 + $0x3c] sm:$0xf]
        %v371 = vld [vmem:[%s1 + $0x40] sm:$0xf]
        %v372 = vld [vmem:[%s1 + $0x44] sm:$0xf]
        %v373 = vld [vmem:[%s1 + $0x48] sm:$0xf]
        %v374 = vld [vmem:[%s1 + $0x4c] sm:$0xf]
        %v375 = vld [vmem:[%s1 + $0x50] sm:$0xf]
        %v376 = vld [vmem:[%s1 + $0x54] sm:$0xf]
        %v377 = vld [vmem:[%s1 + $0x58] sm:$0xf]
        %v378 = vld [vmem:[%s1 + $0x5c] sm:$0xf]
        %v379 = vld [vmem:[%s1 + $0x60] sm:$0xf]
        %v380 = vld [vmem:[%s1 + $0x64] sm:$0xf]
        %v381 = vld [vmem:[%s1 + $0x68] sm:$0xf]
        %v382 = vld [vmem:[%s1 + $0x6c] sm:$0xf]
        %v383 = vld [vmem:[%s1 + $0x70] sm:$0xf]
        %v384 = vld [vmem:[%s1 + $0x74] sm:$0xf]
        %v385 = vld [vmem:[%s1 + $0x78] sm:$0xf]
        %v386 = vld [vmem:[%s1 + $0x7c] sm:$0xf]
        %v387 = vld [vmem:[%s2] sm:$0x1]
        %v389 = vlaneseq
        %v390 = vshrl.u32 %v389, 7
        %v391 = vsub.s32 0, %v390
        %v392 = vrot.slane %v387, %v391
        %v426 = vunpack.c.l.b16 %v355
        %v427 = vunpack.c.l.b16 %v356
        %v428 = vunpack.c.l.b16 %v357
        %v429 = vunpack.c.l.b16 %v358
        %v430 = vunpack.c.l.b16 %v359
        %v431 = vunpack.c.l.b16 %v360
        %v432 = vunpack.c.l.b16 %v361
        %v433 = vunpack.c.l.b16 %v362
        %v434 = vunpack.c.l.b16 %v363
        %v435 = vunpack.c.l.b16 %v364
        %v436 = vunpack.c.l.b16 %v365
        %v437 = vunpack.c.l.b16 %v366
        %v438 = vunpack.c.l.b16 %v367
        %v439 = vunpack.c.l.b16 %v368
        %v440 = vunpack.c.l.b16 %v369
        %v441 = vunpack.c.l.b16 %v370
        %v442 = vunpack.c.l.b16 %v371
        %v443 = vunpack.c.l.b16 %v372
        %v444 = vunpack.c.l.b16 %v373
        %v445 = vunpack.c.l.b16 %v374
        %v446 = vunpack.c.l.b16 %v375
        %v447 = vunpack.c.l.b16 %v376
        %v448 = vunpack.c.l.b16 %v377
        %v449 = vunpack.c.l.b16 %v378
        %v450 = vunpack.c.l.b16 %v379
        %v451 = vunpack.c.l.b16 %v380
        %v452 = vunpack.c.l.b16 %v381
        %v453 = vunpack.c.l.b16 %v382
        %v454 = vunpack.c.l.b16 %v383
        %v455 = vunpack.c.l.b16 %v384
        %v456 = vunpack.c.l.b16 %v385
        %v457 = vunpack.c.l.b16 %v386
        %v458 = vpack.c.b16 %v427, %v426
        %v459 = vpack.c.b16 %v429, %v428
        %v460 = vpack.c.b16 %v431, %v430
        %v461 = vpack.c.b16 %v433, %v432
        %v462 = vpack.c.b16 %v435, %v434
        %v463 = vpack.c.b16 %v437, %v436
        %v464 = vpack.c.b16 %v439, %v438
        %v465 = vpack.c.b16 %v441, %v440
        %v466 = vpack.c.b16 %v443, %v442
        %v467 = vpack.c.b16 %v445, %v444
        %v468 = vpack.c.b16 %v447, %v446
        %v469 = vpack.c.b16 %v449, %v448
        %v470 = vpack.c.b16 %v451, %v450
        %v471 = vpack.c.b16 %v453, %v452
        %v472 = vpack.c.b16 %v455, %v454
        %v473 = vpack.c.b16 %v457, %v456
        %490 = vmatprep.subr.bf16.mxu0 0
        %491 = vmatpush1.bf16.msra.mxu0 %v458
        %492 = vmatprep.subr.bf16.mxu0 0
        %493 = vmatpush1.bf16.msra.mxu0 %v459
        %494 = vmatprep.subr.bf16.mxu0 0
        %495 = vmatpush1.bf16.msra.mxu0 %v460
        %496 = vmatprep.subr.bf16.mxu0 0
        %497 = vmatpush1.bf16.msra.mxu0 %v461
        %498 = vmatprep.subr.bf16.mxu0 0
        %499 = vmatpush1.bf16.msra.mxu0 %v462
        %500 = vmatprep.subr.bf16.mxu0 0
        %501 = vmatpush1.bf16.msra.mxu0 %v463
        %502 = vmatprep.subr.bf16.mxu0 0
        %503 = vmatpush1.bf16.msra.mxu0 %v464
        %504 = vmatprep.subr.bf16.mxu0 0
        %505 = vmatpush1.bf16.msra.mxu0 %v465
        %506 = vmatprep.subr.bf16.mxu0 0
        %507 = vmatpush1.bf16.msra.mxu0 %v466
        %508 = vmatprep.subr.bf16.mxu0 0
        %509 = vmatpush1.bf16.msra.mxu0 %v467
        %510 = vmatprep.subr.bf16.mxu0 0
        %511 = vmatpush1.bf16.msra.mxu0 %v468
        %512 = vmatprep.subr.bf16.mxu0 0
        %513 = vmatpush1.bf16.msra.mxu0 %v469
        %514 = vmatprep.subr.bf16.mxu0 0
        %515 = vmatpush1.bf16.msra.mxu0 %v470
        %516 = vmatprep.subr.bf16.mxu0 0
        %517 = vmatpush1.bf16.msra.mxu0 %v471
        %518 = vmatprep.subr.bf16.mxu0 0
        %519 = vmatpush1.bf16.msra.mxu0 %v472
        %520 = vmatprep.subr.bf16.mxu0 0
        %521 = vmatpush1.bf16.msra.mxu0 %v473
        %522 = vmatprep.mubr.bf16.mxu0 %v354
        %523 = vmatmul.mubr.bf16.gmra.mrb[0].mxu0 %v353
        %v524 = vpop.f32.mrb[0].mxu0
        %v525 = vadd.f32 %v392, %v524
        %v526 = vpop.f32.mrb[0].mxu0
        %v527 = vpop.f32.mrb[0].mxu0
        %v528 = vadd.f32 %v392, %v527
        %v529 = vpop.f32.mrb[0].mxu0
        %530 = vdwg.mxu0
        %v531 = vmax.f32 %v525, 0.0
        %v532 = vmax.f32 %v528, 0.0
        %v533 = vpack.c.bf16 %v532, %v531
        %v534 = vld [vmem:[%s3] sm:$0xff]
        %v535 = vld [vmem:[%s3 + $0x8] sm:$0xff]
        %v536 = vld [vmem:[%s3 + $0x10] sm:$0xff]
        %v537 = vld [vmem:[%s3 + $0x18] sm:$0xff]
        %v538 = vld [vmem:[%s3 + $0x20] sm:$0xff]
        %v539 = vld [vmem:[%s3 + $0x28] sm:$0xff]
        %v540 = vld [vmem:[%s3 + $0x30] sm:$0xff]
        %v541 = vld [vmem:[%s3 + $0x38] sm:$0xff]
        %v542 = vld [vmem:[%s4] sm:$0x3]
        %v544 = vlaneseq
        %v545 = vshrl.u32 %v544, 7
        %v546 = vsub.s32 0, %v545
        %v547 = vrot.slane %v542, %v546
        %v548 = vlaneseq
        %v549 = vshrl.u32 %v548, 7
        %v550 = vsub.s32 1, %v549
        %v551 = vrot.slane %v542, %v550
        %v562 = vunpack.c.l.b16 %v534
        %v563 = vunpack.c.h.b16 %v534
        %v564 = vunpack.c.l.b16 %v535
        %v565 = vunpack.c.h.b16 %v535
        %v566 = vunpack.c.l.b16 %v536
        %v567 = vunpack.c.h.b16 %v536
        %v568 = vunpack.c.l.b16 %v537
        %v569 = vunpack.c.h.b16 %v537
        %v570 = vunpack.c.l.b16 %v538
        %v571 = vunpack.c.h.b16 %v538
        %v572 = vunpack.c.l.b16 %v539
        %v573 = vunpack.c.h.b16 %v539
        %v574 = vunpack.c.l.b16 %v540
        %v575 = vunpack.c.h.b16 %v540
        %v576 = vunpack.c.l.b16 %v541
        %v577 = vunpack.c.h.b16 %v541
        %v578 = vpack.c.b16 %v564, %v562
        %v579 = vpack.c.b16 %v565, %v563
        %v580 = vpack.c.b16 %v568, %v566
        %v581 = vpack.c.b16 %v569, %v567
        %v582 = vpack.c.b16 %v572, %v570
        %v583 = vpack.c.b16 %v573, %v571
        %v584 = vpack.c.b16 %v576, %v574
        %v585 = vpack.c.b16 %v577, %v575
        %vm594 = vcmask 523264
        %v596 = vsel %vm594, %v533, 0
        %598 = vmatprep.subr.bf16.mxu0 %v579
        %599 = vmatpush1.bf16.msra.mxu0 %v578
        %600 = vmatprep.subr.bf16.mxu0 %v581
        %601 = vmatpush1.bf16.msra.mxu0 %v580
        %602 = vmatprep.subr.bf16.mxu0 %v583
        %603 = vmatpush1.bf16.msra.mxu0 %v582
        %604 = vmatprep.subr.bf16.mxu0 %v585
        %605 = vmatpush1.bf16.msra.mxu0 %v584
        %606 = vmatprep.subr.bf16.mxu0 0
        %607 = vmatpush1.bf16.msra.mxu0 0
        %608 = vmatprep.subr.bf16.mxu0 0
        %609 = vmatpush1.bf16.msra.mxu0 0
        %610 = vmatprep.subr.bf16.mxu0 0
        %611 = vmatpush1.bf16.msra.mxu0 0
        %612 = vmatprep.subr.bf16.mxu0 0
        %613 = vmatpush1.bf16.msra.mxu0 0
        %614 = vmatprep.subr.bf16.mxu0 0
        %615 = vmatpush1.bf16.msra.mxu0 0
        %616 = vmatprep.subr.bf16.mxu0 0
        %617 = vmatpush1.bf16.msra.mxu0 0
        %618 = vmatprep.subr.bf16.mxu0 0
        %619 = vmatpush1.bf16.msra.mxu0 0
        %620 = vmatprep.subr.bf16.mxu0 0
        %621 = vmatpush1.bf16.msra.mxu0 0
        %622 = vmatprep.subr.bf16.mxu0 0
        %623 = vmatpush1.bf16.msra.mxu0 0
        %624 = vmatprep.subr.bf16.mxu0 0
        %625 = vmatpush1.bf16.msra.mxu0 0
        %626 = vmatprep.subr.bf16.mxu0 0
        %627 = vmatpush1.bf16.msra.mxu0 0
        %628 = vmatprep.subr.bf16.mxu0 0
        %629 = vmatpush1.bf16.msra.mxu0 0
        %630 = vmatprep.mubr.bf16.mxu0 0
        %631 = vmatmul.mubr.bf16.gmra.mrb[0].mxu0 %v596
        %v632 = vpop.f32.mrb[0].mxu0
        %v633 = vadd.f32 %v547, %v632
        %v634 = vpop.f32.mrb[0].mxu0
        %v635 = vadd.f32 %v551, %v634
        %v636 = vpop.f32.mrb[0].mxu0
        %v637 = vadd.f32 %v547, %v636
        %v638 = vpop.f32.mrb[0].mxu0
        %v639 = vadd.f32 %v551, %v638
        %640 = vdwg.mxu0
        %v641 = vmul.f32 %v349, %v633
        %v642 = vmul.f32 %v350, %v635
        %v643 = vmul.f32 %v351, %v637
        %v644 = vmul.f32 %v352, %v639
        %645 = vst [vmem:[#allocation4] sm:$0xff] %v641
        %646 = vst [vmem:[#allocation4 + $0x8] sm:$0xff] %v642
        %647 = vst [vmem:[#allocation4 + $0x10] sm:$0xff] %v643
        %648 = vst [vmem:[#allocation4 + $0x18] sm:$0xff] %v644
        %v649 = vpack.c.bf16 %v643, %v641
        %v650 = vpack.c.bf16 %v644, %v642
        %v653 = vunpack.c.l.b16 %v649
        %v654 = vunpack.c.l.b16 %v650
        %v655 = vunpack.c.h.b16 %v649
        %v656 = vunpack.c.h.b16 %v650
        %v657 = vpack.c.b16 %v654, %v653
        %v658 = vpack.c.b16 %v656, %v655
        %vm659 = vsmask.f32 1280
        %vm660 = vsmask.f32 5392
        %vm661 = vmor %vm659, %vm660
        %v663 = vshrl.u32 %v657, 16
        %v665 = vrot.slane %v663, 6
        %v666 = vshll.u32 %v657, 16
        %v668 = vrot.slane %v666, 7
        %v669 = vor.u32 %v665, %v668
        %v670 = vrot.slane %v669, 4
        %v672 = vshrl.u32 %v658, 16
        %v674 = vrot.slane %v672, 6
        %v675 = vshll.u32 %v658, 16
        %v677 = vrot.slane %v675, 7
        %v678 = vor.u32 %v674, %v677
        %v679 = vsel %vm661, %v670, %v678
        %v680 = vrot.slane %v678, 4
        %681 = vrot.lane.b32.xlu0 %v669, 48
        %v682 = vpop.permute.xlu0 %681
        %683 = vrot.lane.b32.xlu0 %v679, 48
        %v684 = vpop.permute.xlu0 %683
        %685 = vrot.lane.b32.xlu0 %v680, 48
        %v686 = vpop.permute.xlu0 %685
        %v687 = vrot.slane %v682, 4
        %v688 = vrot.slane %v684, 4
        %v689 = vrot.slane %v686, 4
        %vm690 = vcmask 392192
        %v691 = vsel %vm690, %v687, %v682
        %v692 = vsel %vm690, %v688, %v684
        %v693 = vsel %vm690, %v689, %v686
        %vm700 = vcmask 1043841
        %vm701 = vsmask.f32 7942
        %vm702 = vmand %vm700, %vm701
        %vm703 = vcmask 1047557
        %vm704 = vsmask.f32 7958
        %vm705 = vmand %vm703, %vm704
        %vm706 = vmor %vm705, %vm702
        %v707 = vld [vmem:[#allocation2] sm:$0xee]
        %v708 = vsel %vm706, %v691, %v707
        %709 = vst [vmem:[#allocation2] sm:$0xee] %v708
        %vm710 = vcmask 388097
        %vm711 = vmand %vm710, %vm701
        %v712 = vld [vmem:[#allocation2 + $0x8] sm:$0xe]
        %v713 = vsel %vm711, %v687, %v712
        %714 = vst [vmem:[#allocation2 + $0x8] sm:$0xe] %v713
        %vm715 = vcmask 1043840
        %vm716 = vcmask 1047556
        %vm717 = vmor %vm716, %vm715
        %718 = vst.msk [vmem:[#allocation2 + $0xc] sm:$0xff] %vm717, %v692
        %vm719 = vcmask 388096
        %720 = vst.msk [vmem:[#allocation2 + $0x14] sm:$0xf] %vm719, %v688
        %vm721 = vcmask 1041792
        %vm722 = vmand %vm721, %vm659
        %vm723 = vcmask 1045508
        %vm724 = vsmask.f32 5376
        %vm725 = vmand %vm723, %vm724
        %vm726 = vmor %vm725, %vm722
        %v727 = vld [vmem:[#allocation2 + $0x18] sm:$0x33]
        %v728 = vsel %vm726, %v693, %v727
        %729 = vst [vmem:[#allocation2 + $0x18] sm:$0x33] %v728
        %vm730 = vcmask 386048
        %vm731 = vmand %vm730, %vm659
        %v732 = vld [vmem:[#allocation2 + $0x20] sm:$0x3]
        %v733 = vsel %vm731, %v689, %v732
        %734 = vst [vmem:[#allocation2 + $0x20] sm:$0x3] %v733
        %v735 = vld [vmem:[#allocation2] sm:$0xff]
        %v736 = vld [vmem:[#allocation2 + $0x8] sm:$0xf]
        %v737 = vld [vmem:[#allocation2 + $0xc] sm:$0xff]
        %v738 = vld [vmem:[#allocation2 + $0x14] sm:$0xf]
        %v739 = vld [vmem:[%s5] sm:$0xf]
        %v740 = vld [vmem:[%s5 + $0x4] sm:$0xf]
        %v741 = vld [vmem:[%s5 + $0x8] sm:$0xf]
        %v742 = vld [vmem:[%s5 + $0xc] sm:$0xf]
        %v743 = vld [vmem:[%s5 + $0x10] sm:$0xf]
        %v744 = vld [vmem:[%s5 + $0x14] sm:$0xf]
        %v745 = vld [vmem:[%s5 + $0x18] sm:$0xf]
        %v746 = vld [vmem:[%s5 + $0x1c] sm:$0xf]
        %v747 = vld [vmem:[%s5 + $0x20] sm:$0xf]
        %v748 = vld [vmem:[%s5 + $0x24] sm:$0xf]
        %v749 = vld [vmem:[%s5 + $0x28] sm:$0xf]
        %v750 = vld [vmem:[%s5 + $0x2c] sm:$0xf]
        %v751 = vld [vmem:[%s5 + $0x30] sm:$0xf]
        %v752 = vld [vmem:[%s5 + $0x34] sm:$0xf]
        %v753 = vld [vmem:[%s5 + $0x38] sm:$0xf]
        %v754 = vld [vmem:[%s5 + $0x3c] sm:$0xf]
        %v755 = vld [vmem:[%s5 + $0x40] sm:$0xf]
        %v756 = vld [vmem:[%s5 + $0x44] sm:$0xf]
        %v757 = vld [vmem:[%s5 + $0x48] sm:$0xf]
        %v758 = vld [vmem:[%s5 + $0x4c] sm:$0xf]
        %v759 = vld [vmem:[%s5 + $0x50] sm:$0xf]
        %v760 = vld [vmem:[%s5 + $0x54] sm:$0xf]
        %v761 = vld [vmem:[%s5 + $0x58] sm:$0xf]
        %v762 = vld [vmem:[%s5 + $0x5c] sm:$0xf]
        %v763 = vld [vmem:[%s5 + $0x60] sm:$0xf]
        %v764 = vld [vmem:[%s5 + $0x64] sm:$0xf]
        %v765 = vld [vmem:[%s5 + $0x68] sm:$0xf]
        %v766 = vld [vmem:[%s5 + $0x6c] sm:$0xf]
        %v767 = vld [vmem:[%s5 + $0x70] sm:$0xf]
        %v768 = vld [vmem:[%s5 + $0x74] sm:$0xf]
        %v769 = vld [vmem:[%s5 + $0x78] sm:$0xf]
        %v770 = vld [vmem:[%s5 + $0x7c] sm:$0xf]
        %v771 = vld [vmem:[%s5 + $0x80] sm:$0xf]
        %v772 = vld [vmem:[%s5 + $0x84] sm:$0xf]
        %v773 = vld [vmem:[%s5 + $0x88] sm:$0xf]
        %v774 = vld [vmem:[%s5 + $0x8c] sm:$0xf]
        %v775 = vld [vmem:[%s5 + $0x90] sm:$0xf]
        %v776 = vld [vmem:[%s5 + $0x94] sm:$0xf]
        %v777 = vld [vmem:[%s5 + $0x98] sm:$0xf]
        %v778 = vld [vmem:[%s5 + $0x9c] sm:$0xf]
        %v779 = vld [vmem:[%s5 + $0xa0] sm:$0xf]
        %v780 = vld [vmem:[%s5 + $0xa4] sm:$0xf]
        %v781 = vld [vmem:[%s5 + $0xa8] sm:$0xf]
        %v782 = vld [vmem:[%s5 + $0xac] sm:$0xf]
        %v783 = vld [vmem:[#allocation2 + $0x18] sm:$0x11]
        %v784 = vld [vmem:[#allocation2 + $0x20] sm:$0x1]
        %s785 = scalar_lea.vmem %s5, 176
        %v786 = vld [vmem:[%s785] sm:$0xf]
        %v787 = vld [vmem:[%s785 + $0x4] sm:$0xf]
        %v788 = vld [vmem:[%s785 + $0x8] sm:$0xf]
        %v789 = vld [vmem:[%s785 + $0xc] sm:$0xf]
        %v790 = vld [vmem:[%s785 + $0x10] sm:$0xf]
        %v791 = vld [vmem:[%s785 + $0x14] sm:$0xf]
        %v792 = vld [vmem:[%s785 + $0x18] sm:$0xf]
        %v793 = vld [vmem:[%s785 + $0x1c] sm:$0xf]
        %v794 = vld [vmem:[%s785 + $0x20] sm:$0xf]
        %v795 = vld [vmem:[%s785 + $0x24] sm:$0xf]
        %v796 = vld [vmem:[%s785 + $0x28] sm:$0xf]
        %v797 = vld [vmem:[%s785 + $0x2c] sm:$0xf]
        %v798 = vld [vmem:[%s785 + $0x30] sm:$0xf]
        %v799 = vld [vmem:[%s785 + $0x34] sm:$0xf]
        %v800 = vld [vmem:[%s785 + $0x38] sm:$0xf]
        %v801 = vld [vmem:[%s785 + $0x3c] sm:$0xf]
        %v802 = vld [vmem:[%s785 + $0x40] sm:$0xf]
        %v803 = vld [vmem:[%s785 + $0x44] sm:$0xf]
        %v804 = vld [vmem:[%s785 + $0x48] sm:$0xf]
        %v805 = vld [vmem:[%s785 + $0x4c] sm:$0xf]
        %v806 = vld [vmem:[%s785 + $0x50] sm:$0xf]
        %v807 = vld [vmem:[%s785 + $0x54] sm:$0xf]
        %v808 = vld [vmem:[%s785 + $0x58] sm:$0xf]
        %v809 = vld [vmem:[%s785 + $0x5c] sm:$0xf]
        %v810 = vld [vmem:[%s785 + $0x60] sm:$0xf]
        %v811 = vld [vmem:[%s785 + $0x64] sm:$0xf]
        %v812 = vld [vmem:[%s785 + $0x68] sm:$0xf]
        %v813 = vld [vmem:[%s785 + $0x6c] sm:$0xf]
        %v814 = vld [vmem:[%s785 + $0x70] sm:$0xf]
        %v815 = vld [vmem:[%s785 + $0x74] sm:$0xf]
        %v816 = vld [vmem:[%s785 + $0x78] sm:$0xf]
        %v817 = vld [vmem:[%s785 + $0x7c] sm:$0xf]
        %v818 = vld [vmem:[%s785 + $0x80] sm:$0xf]
        %v819 = vld [vmem:[%s785 + $0x84] sm:$0xf]
        %v820 = vld [vmem:[%s785 + $0x88] sm:$0xf]
        %v821 = vld [vmem:[%s785 + $0x8c] sm:$0xf]
        %v822 = vld [vmem:[%s785 + $0x90] sm:$0xf]
        %v823 = vld [vmem:[%s785 + $0x94] sm:$0xf]
        %v824 = vld [vmem:[%s785 + $0x98] sm:$0xf]
        %v825 = vld [vmem:[%s785 + $0x9c] sm:$0xf]
        %v826 = vld [vmem:[%s785 + $0xa0] sm:$0xf]
        %v827 = vld [vmem:[%s785 + $0xa4] sm:$0xf]
        %v828 = vld [vmem:[%s785 + $0xa8] sm:$0xf]
        %v829 = vld [vmem:[%s785 + $0xac] sm:$0xf]
        %v836 = vunpack.c.l.b16 %v735
        %v837 = vunpack.c.h.b16 %v735
        %v838 = vunpack.c.l.b16 %v736
        %v839 = vunpack.c.l.b16 %v737
        %v840 = vunpack.c.h.b16 %v737
        %v841 = vunpack.c.l.b16 %v738
        %v842 = vunpack.c.l.b16 %v783
        %v843 = vunpack.c.h.b16 %v783
        %v844 = vunpack.c.l.b16 %v784
        %v845 = vpack.c.b16 %v839, %v836
        %v846 = vpack.c.b16 %v840, %v837
        %v847 = vpack.c.b16 %v841, %v838
        %v848 = vpack.c.b16 %v842, %v842
        %v849 = vpack.c.b16 %v843, %v843
        %v850 = vpack.c.b16 %v844, %v844
        %vm851 = vsmask.f32 7424
        %v853 = vshrl.u32 %v845, 16
        %v855 = vshll.u32 %v845, 16
        %v857 = vrot.slane %v855, 1
        %v858 = vor.u32 %v853, %v857
        %v860 = vshll.u32 %v848, 16
        %v862 = vrot.slane %v860, 1
        %v863 = vsel %vm851, %v858, %v862
        %v865 = vshrl.u32 %v846, 16
        %v867 = vshll.u32 %v846, 16
        %v869 = vrot.slane %v867, 1
        %v870 = vor.u32 %v865, %v869
        %v872 = vshll.u32 %v849, 16
        %v874 = vrot.slane %v872, 1
        %v875 = vsel %vm851, %v870, %v874
        %v877 = vshrl.u32 %v847, 16
        %v879 = vshll.u32 %v847, 16
        %v881 = vrot.slane %v879, 1
        %v882 = vor.u32 %v877, %v881
        %v884 = vshll.u32 %v850, 16
        %v886 = vrot.slane %v884, 1
        %v887 = vsel %vm851, %v882, %v886
        %v934 = vunpack.c.l.b16 %v786
        %v935 = vunpack.c.l.b16 %v787
        %v936 = vunpack.c.l.b16 %v788
        %v937 = vunpack.c.l.b16 %v789
        %v938 = vunpack.c.l.b16 %v790
        %v939 = vunpack.c.l.b16 %v791
        %v940 = vunpack.c.l.b16 %v792
        %v941 = vunpack.c.l.b16 %v793
        %v942 = vunpack.c.l.b16 %v794
        %v943 = vunpack.c.l.b16 %v795
        %v944 = vunpack.c.l.b16 %v796
        %v945 = vunpack.c.l.b16 %v797
        %v946 = vunpack.c.l.b16 %v798
        %v947 = vunpack.c.l.b16 %v799
        %v948 = vunpack.c.l.b16 %v800
        %v949 = vunpack.c.l.b16 %v801
        %v950 = vunpack.c.l.b16 %v802
        %v951 = vunpack.c.l.b16 %v803
        %v952 = vunpack.c.l.b16 %v804
        %v953 = vunpack.c.l.b16 %v805
        %v954 = vunpack.c.l.b16 %v806
        %v955 = vunpack.c.l.b16 %v807
        %v956 = vunpack.c.l.b16 %v808
        %v957 = vunpack.c.l.b16 %v809
        %v958 = vunpack.c.l.b16 %v810
        %v959 = vunpack.c.l.b16 %v811
        %v960 = vunpack.c.l.b16 %v812
        %v961 = vunpack.c.l.b16 %v813
        %v962 = vunpack.c.l.b16 %v814
        %v963 = vunpack.c.l.b16 %v815
        %v964 = vunpack.c.l.b16 %v816
        %v965 = vunpack.c.l.b16 %v817
        %v966 = vunpack.c.l.b16 %v818
        %v967 = vunpack.c.l.b16 %v819
        %v968 = vunpack.c.l.b16 %v820
        %v969 = vunpack.c.l.b16 %v821
        %v970 = vunpack.c.l.b16 %v822
        %v971 = vunpack.c.l.b16 %v823
        %v972 = vunpack.c.l.b16 %v824
        %v973 = vunpack.c.l.b16 %v825
        %v974 = vunpack.c.l.b16 %v826
        %v975 = vunpack.c.l.b16 %v827
        %v976 = vunpack.c.l.b16 %v828
        %v977 = vunpack.c.l.b16 %v829
        %v978 = vpack.c.b16 %v935, %v934
        %v979 = vpack.c.b16 %v937, %v936
        %v980 = vpack.c.b16 %v939, %v938
        %v981 = vpack.c.b16 %v941, %v940
        %v982 = vpack.c.b16 %v943, %v942
        %v983 = vpack.c.b16 %v945, %v944
        %v984 = vpack.c.b16 %v947, %v946
        %v985 = vpack.c.b16 %v949, %v948
        %v986 = vpack.c.b16 %v951, %v950
        %v987 = vpack.c.b16 %v953, %v952
        %v988 = vpack.c.b16 %v955, %v954
        %v989 = vpack.c.b16 %v957, %v956
        %v990 = vpack.c.b16 %v959, %v958
        %v991 = vpack.c.b16 %v961, %v960
        %v992 = vpack.c.b16 %v963, %v962
        %v993 = vpack.c.b16 %v965, %v964
        %v994 = vpack.c.b16 %v967, %v966
        %v995 = vpack.c.b16 %v969, %v968
        %v996 = vpack.c.b16 %v971, %v970
        %v997 = vpack.c.b16 %v973, %v972
        %v998 = vpack.c.b16 %v975, %v974
        %v999 = vpack.c.b16 %v977, %v976
        %vm1022 = vcmask 785408
        %v1024 = vsel %vm1022, %v887, 0
        %1026 = vmatprep.subr.bf16.mxu0 0
        %1027 = vmatpush1.bf16.msra.mxu0 %v978
        %1028 = vmatprep.subr.bf16.mxu0 0
        %1029 = vmatpush1.bf16.msra.mxu0 %v979
        %1030 = vmatprep.subr.bf16.mxu0 0
        %1031 = vmatpush1.bf16.msra.mxu0 %v980
        %1032 = vmatprep.subr.bf16.mxu0 0
        %1033 = vmatpush1.bf16.msra.mxu0 %v981
        %1034 = vmatprep.subr.bf16.mxu0 0
        %1035 = vmatpush1.bf16.msra.mxu0 %v982
        %1036 = vmatprep.subr.bf16.mxu0 0
        %1037 = vmatpush1.bf16.msra.mxu0 %v983
        %1038 = vmatprep.subr.bf16.mxu0 0
        %1039 = vmatpush1.bf16.msra.mxu0 %v984
        %1040 = vmatprep.subr.bf16.mxu0 0
        %1041 = vmatpush1.bf16.msra.mxu0 %v985
        %1042 = vmatprep.subr.bf16.mxu0 0
        %1043 = vmatpush1.bf16.msra.mxu0 %v986
        %1044 = vmatprep.subr.bf16.mxu0 0
        %1045 = vmatpush1.bf16.msra.mxu0 %v987
        %1046 = vmatprep.subr.bf16.mxu0 0
        %1047 = vmatpush1.bf16.msra.mxu0 %v988
        %1048 = vmatprep.subr.bf16.mxu0 0
        %1049 = vmatpush1.bf16.msra.mxu0 %v989
        %1050 = vmatprep.subr.bf16.mxu0 0
        %1051 = vmatpush1.bf16.msra.mxu0 %v990
        %1052 = vmatprep.subr.bf16.mxu0 0
        %1053 = vmatpush1.bf16.msra.mxu0 %v991
        %1054 = vmatprep.subr.bf16.mxu0 0
        %1055 = vmatpush1.bf16.msra.mxu0 %v992
        %1056 = vmatprep.subr.bf16.mxu0 0
        %1057 = vmatpush1.bf16.msra.mxu0 %v993
        %1058 = vmatprep.mubr.bf16.mxu0 %v875
        %1059 = vmatmul.mubr.bf16.gmra.mrb[0].mxu0 %v863
        %v1060 = vpop.f32.mrb[0].mxu0
        %v1061 = vadd.f32 0.0, %v1060
        %v1062 = vpop.f32.mrb[0].mxu0
        %v1063 = vpop.f32.mrb[0].mxu0
        %v1064 = vadd.f32 0.0, %v1063
        %v1065 = vpop.f32.mrb[0].mxu0
        %1066 = vdwg.mxu0
        %1067 = vmatprep.subr.bf16.mxu0 0
        %1068 = vmatpush1.bf16.msra.mxu0 %v994
        %1069 = vmatprep.subr.bf16.mxu0 0
        %1070 = vmatpush1.bf16.msra.mxu0 %v995
        %1071 = vmatprep.subr.bf16.mxu0 0
        %1072 = vmatpush1.bf16.msra.mxu0 %v996
        %1073 = vmatprep.subr.bf16.mxu0 0
        %1074 = vmatpush1.bf16.msra.mxu0 %v997
        %1075 = vmatprep.subr.bf16.mxu0 0
        %1076 = vmatpush1.bf16.msra.mxu0 %v998
        %1077 = vmatprep.subr.bf16.mxu0 0
        %1078 = vmatpush1.bf16.msra.mxu0 %v999
        %1079 = vmatprep.subr.bf16.mxu0 0
        %1080 = vmatpush1.bf16.msra.mxu0 0
        %1081 = vmatprep.subr.bf16.mxu0 0
        %1082 = vmatpush1.bf16.msra.mxu0 0
        %1083 = vmatprep.subr.bf16.mxu0 0
        %1084 = vmatpush1.bf16.msra.mxu0 0
        %1085 = vmatprep.subr.bf16.mxu0 0
        %1086 = vmatpush1.bf16.msra.mxu0 0
        %1087 = vmatprep.subr.bf16.mxu0 0
        %1088 = vmatpush1.bf16.msra.mxu0 0
        %1089 = vmatprep.subr.bf16.mxu0 0
        %1090 = vmatpush1.bf16.msra.mxu0 0
        %1091 = vmatprep.subr.bf16.mxu0 0
        %1092 = vmatpush1.bf16.msra.mxu0 0
        %1093 = vmatprep.subr.bf16.mxu0 0
        %1094 = vmatpush1.bf16.msra.mxu0 0
        %1095 = vmatprep.subr.bf16.mxu0 0
        %1096 = vmatpush1.bf16.msra.mxu0 0
        %1097 = vmatprep.subr.bf16.mxu0 0
        %1098 = vmatpush1.bf16.msra.mxu0 0
        %1099 = vmatprep.mubr.bf16.mxu0 0
        %1100 = vmatmul.mubr.bf16.gmra.mrb[0].mxu0 %v1024
        %v1101 = vpop.f32.mrb[0].mxu0
        %v1102 = vadd.f32 %v1061, %v1101
        %v1103 = vpop.f32.mrb[0].mxu0
        %v1104 = vpop.f32.mrb[0].mxu0
        %v1105 = vadd.f32 %v1064, %v1104
        %v1106 = vpop.f32.mrb[0].mxu0
        %1107 = vdwg.mxu0
        %v1154 = vunpack.c.l.b16 %v739
        %v1155 = vunpack.c.l.b16 %v740
        %v1156 = vunpack.c.l.b16 %v741
        %v1157 = vunpack.c.l.b16 %v742
        %v1158 = vunpack.c.l.b16 %v743
        %v1159 = vunpack.c.l.b16 %v744
        %v1160 = vunpack.c.l.b16 %v745
        %v1161 = vunpack.c.l.b16 %v746
        %v1162 = vunpack.c.l.b16 %v747
        %v1163 = vunpack.c.l.b16 %v748
        %v1164 = vunpack.c.l.b16 %v749
        %v1165 = vunpack.c.l.b16 %v750
        %v1166 = vunpack.c.l.b16 %v751
        %v1167 = vunpack.c.l.b16 %v752
        %v1168 = vunpack.c.l.b16 %v753
        %v1169 = vunpack.c.l.b16 %v754
        %v1170 = vunpack.c.l.b16 %v755
        %v1171 = vunpack.c.l.b16 %v756
        %v1172 = vunpack.c.l.b16 %v757
        %v1173 = vunpack.c.l.b16 %v758
        %v1174 = vunpack.c.l.b16 %v759
        %v1175 = vunpack.c.l.b16 %v760
        %v1176 = vunpack.c.l.b16 %v761
        %v1177 = vunpack.c.l.b16 %v762
        %v1178 = vunpack.c.l.b16 %v763
        %v1179 = vunpack.c.l.b16 %v764
        %v1180 = vunpack.c.l.b16 %v765
        %v1181 = vunpack.c.l.b16 %v766
        %v1182 = vunpack.c.l.b16 %v767
        %v1183 = vunpack.c.l.b16 %v768
        %v1184 = vunpack.c.l.b16 %v769
        %v1185 = vunpack.c.l.b16 %v770
        %v1186 = vunpack.c.l.b16 %v771
        %v1187 = vunpack.c.l.b16 %v772
        %v1188 = vunpack.c.l.b16 %v773
        %v1189 = vunpack.c.l.b16 %v774
        %v1190 = vunpack.c.l.b16 %v775
        %v1191 = vunpack.c.l.b16 %v776
        %v1192 = vunpack.c.l.b16 %v777
        %v1193 = vunpack.c.l.b16 %v778
        %v1194 = vunpack.c.l.b16 %v779
        %v1195 = vunpack.c.l.b16 %v780
        %v1196 = vunpack.c.l.b16 %v781
        %v1197 = vunpack.c.l.b16 %v782
        %v1198 = vpack.c.b16 %v1155, %v1154
        %v1199 = vpack.c.b16 %v1157, %v1156
        %v1200 = vpack.c.b16 %v1159, %v1158
        %v1201 = vpack.c.b16 %v1161, %v1160
        %v1202 = vpack.c.b16 %v1163, %v1162
        %v1203 = vpack.c.b16 %v1165, %v1164
        %v1204 = vpack.c.b16 %v1167, %v1166
        %v1205 = vpack.c.b16 %v1169, %v1168
        %v1206 = vpack.c.b16 %v1171, %v1170
        %v1207 = vpack.c.b16 %v1173, %v1172
        %v1208 = vpack.c.b16 %v1175, %v1174
        %v1209 = vpack.c.b16 %v1177, %v1176
        %v1210 = vpack.c.b16 %v1179, %v1178
        %v1211 = vpack.c.b16 %v1181, %v1180
        %v1212 = vpack.c.b16 %v1183, %v1182
        %v1213 = vpack.c.b16 %v1185, %v1184
        %v1214 = vpack.c.b16 %v1187, %v1186
        %v1215 = vpack.c.b16 %v1189, %v1188
        %v1216 = vpack.c.b16 %v1191, %v1190
        %v1217 = vpack.c.b16 %v1193, %v1192
        %v1218 = vpack.c.b16 %v1195, %v1194
        %v1219 = vpack.c.b16 %v1197, %v1196
        %v1242 = vsel %vm1022, %v847, 0
        %1244 = vmatprep.subr.bf16.mxu0 0
        %1245 = vmatpush1.bf16.msra.mxu0 %v1198
        %1246 = vmatprep.subr.bf16.mxu0 0
        %1247 = vmatpush1.bf16.msra.mxu0 %v1199
        %1248 = vmatprep.subr.bf16.mxu0 0
        %1249 = vmatpush1.bf16.msra.mxu0 %v1200
        %1250 = vmatprep.subr.bf16.mxu0 0
        %1251 = vmatpush1.bf16.msra.mxu0 %v1201
        %1252 = vmatprep.subr.bf16.mxu0 0
        %1253 = vmatpush1.bf16.msra.mxu0 %v1202
        %1254 = vmatprep.subr.bf16.mxu0 0
        %1255 = vmatpush1.bf16.msra.mxu0 %v1203
        %1256 = vmatprep.subr.bf16.mxu0 0
        %1257 = vmatpush1.bf16.msra.mxu0 %v1204
        %1258 = vmatprep.subr.bf16.mxu0 0
        %1259 = vmatpush1.bf16.msra.mxu0 %v1205
        %1260 = vmatprep.subr.bf16.mxu0 0
        %1261 = vmatpush1.bf16.msra.mxu0 %v1206
        %1262 = vmatprep.subr.bf16.mxu0 0
        %1263 = vmatpush1.bf16.msra.mxu0 %v1207
        %1264 = vmatprep.subr.bf16.mxu0 0
        %1265 = vmatpush1.bf16.msra.mxu0 %v1208
        %1266 = vmatprep.subr.bf16.mxu0 0
        %1267 = vmatpush1.bf16.msra.mxu0 %v1209
        %1268 = vmatprep.subr.bf16.mxu0 0
        %1269 = vmatpush1.bf16.msra.mxu0 %v1210
        %1270 = vmatprep.subr.bf16.mxu0 0
        %1271 = vmatpush1.bf16.msra.mxu0 %v1211
        %1272 = vmatprep.subr.bf16.mxu0 0
        %1273 = vmatpush1.bf16.msra.mxu0 %v1212
        %1274 = vmatprep.subr.bf16.mxu0 0
        %1275 = vmatpush1.bf16.msra.mxu0 %v1213
        %1276 = vmatprep.mubr.bf16.mxu0 %v846
        %1277 = vmatmul.mubr.bf16.gmra.mrb[0].mxu0 %v845
        %v1278 = vpop.f32.mrb[0].mxu0
        %v1279 = vadd.f32 %v1102, %v1278
        %v1280 = vpop.f32.mrb[0].mxu0
        %v1281 = vpop.f32.mrb[0].mxu0
        %v1282 = vadd.f32 %v1105, %v1281
        %v1283 = vpop.f32.mrb[0].mxu0
        %1284 = vdwg.mxu0
        %1285 = vmatprep.subr.bf16.mxu0 0
        %1286 = vmatpush1.bf16.msra.mxu0 %v1214
        %1287 = vmatprep.subr.bf16.mxu0 0
        %1288 = vmatpush1.bf16.msra.mxu0 %v1215
        %1289 = vmatprep.subr.bf16.mxu0 0
        %1290 = vmatpush1.bf16.msra.mxu0 %v1216
        %1291 = vmatprep.subr.bf16.mxu0 0
        %1292 = vmatpush1.bf16.msra.mxu0 %v1217
        %1293 = vmatprep.subr.bf16.mxu0 0
        %1294 = vmatpush1.bf16.msra.mxu0 %v1218
        %1295 = vmatprep.subr.bf16.mxu0 0
        %1296 = vmatpush1.bf16.msra.mxu0 %v1219
        %1297 = vmatprep.subr.bf16.mxu0 0
        %1298 = vmatpush1.bf16.msra.mxu0 0
        %1299 = vmatprep.subr.bf16.mxu0 0
        %1300 = vmatpush1.bf16.msra.mxu0 0
        %1301 = vmatprep.subr.bf16.mxu0 0
        %1302 = vmatpush1.bf16.msra.mxu0 0
        %1303 = vmatprep.subr.bf16.mxu0 0
        %1304 = vmatpush1.bf16.msra.mxu0 0
        %1305 = vmatprep.subr.bf16.mxu0 0
        %1306 = vmatpush1.bf16.msra.mxu0 0
        %1307 = vmatprep.subr.bf16.mxu0 0
        %1308 = vmatpush1.bf16.msra.mxu0 0
        %1309 = vmatprep.subr.bf16.mxu0 0
        %1310 = vmatpush1.bf16.msra.mxu0 0
        %1311 = vmatprep.subr.bf16.mxu0 0
        %1312 = vmatpush1.bf16.msra.mxu0 0
        %1313 = vmatprep.subr.bf16.mxu0 0
        %1314 = vmatpush1.bf16.msra.mxu0 0
        %1315 = vmatprep.subr.bf16.mxu0 0
        %1316 = vmatpush1.bf16.msra.mxu0 0
        %1317 = vmatprep.mubr.bf16.mxu0 0
        %1318 = vmatmul.mubr.bf16.gmra.mrb[0].mxu0 %v1242
        %v1319 = vpop.f32.mrb[0].mxu0
        %v1320 = vadd.f32 %v1279, %v1319
        %v1321 = vpop.f32.mrb[0].mxu0
        %v1322 = vpop.f32.mrb[0].mxu0
        %v1323 = vadd.f32 %v1282, %v1322
        %v1324 = vpop.f32.mrb[0].mxu0
        %1325 = vdwg.mxu0
        %v1326 = vld [vmem:[#allocation2] sm:$0xee]
        %v1327 = vld [vmem:[#allocation2 + $0x8] sm:$0xe]
        %s1328 = scalar_lea.vmem %s5, 352
        %v1329 = vld [vmem:[%s1328] sm:$0xf]
        %v1330 = vld [vmem:[%s1328 + $0x4] sm:$0xf]
        %v1331 = vld [vmem:[%s1328 + $0x8] sm:$0xf]
        %v1332 = vld [vmem:[%s1328 + $0xc] sm:$0xf]
        %v1333 = vld [vmem:[%s1328 + $0x10] sm:$0xf]
        %v1334 = vld [vmem:[%s1328 + $0x14] sm:$0xf]
        %v1335 = vld [vmem:[%s1328 + $0x18] sm:$0xf]
        %v1336 = vld [vmem:[%s1328 + $0x1c] sm:$0xf]
        %v1337 = vld [vmem:[%s1328 + $0x20] sm:$0xf]
        %v1338 = vld [vmem:[%s1328 + $0x24] sm:$0xf]
        %v1339 = vld [vmem:[%s1328 + $0x28] sm:$0xf]
        %v1340 = vld [vmem:[%s1328 + $0x2c] sm:$0xf]
        %v1341 = vld [vmem:[%s1328 + $0x30] sm:$0xf]
        %v1342 = vld [vmem:[%s1328 + $0x34] sm:$0xf]
        %v1343 = vld [vmem:[%s1328 + $0x38] sm:$0xf]
        %v1344 = vld [vmem:[%s1328 + $0x3c] sm:$0xf]
        %v1345 = vld [vmem:[%s1328 + $0x40] sm:$0xf]
        %v1346 = vld [vmem:[%s1328 + $0x44] sm:$0xf]
        %v1347 = vld [vmem:[%s1328 + $0x48] sm:$0xf]
        %v1348 = vld [vmem:[%s1328 + $0x4c] sm:$0xf]
        %v1349 = vld [vmem:[%s1328 + $0x50] sm:$0xf]
        %v1350 = vld [vmem:[%s1328 + $0x54] sm:$0xf]
        %v1351 = vld [vmem:[%s1328 + $0x58] sm:$0xf]
        %v1352 = vld [vmem:[%s1328 + $0x5c] sm:$0xf]
        %v1353 = vld [vmem:[%s1328 + $0x60] sm:$0xf]
        %v1354 = vld [vmem:[%s1328 + $0x64] sm:$0xf]
        %v1355 = vld [vmem:[%s1328 + $0x68] sm:$0xf]
        %v1356 = vld [vmem:[%s1328 + $0x6c] sm:$0xf]
        %v1357 = vld [vmem:[%s1328 + $0x70] sm:$0xf]
        %v1358 = vld [vmem:[%s1328 + $0x74] sm:$0xf]
        %v1359 = vld [vmem:[%s1328 + $0x78] sm:$0xf]
        %v1360 = vld [vmem:[%s1328 + $0x7c] sm:$0xf]
        %v1361 = vld [vmem:[%s1328 + $0x80] sm:$0xf]
        %v1362 = vld [vmem:[%s1328 + $0x84] sm:$0xf]
        %v1363 = vld [vmem:[%s1328 + $0x88] sm:$0xf]
        %v1364 = vld [vmem:[%s1328 + $0x8c] sm:$0xf]
        %v1365 = vld [vmem:[%s1328 + $0x90] sm:$0xf]
        %v1366 = vld [vmem:[%s1328 + $0x94] sm:$0xf]
        %v1367 = vld [vmem:[%s1328 + $0x98] sm:$0xf]
        %v1368 = vld [vmem:[%s1328 + $0x9c] sm:$0xf]
        %v1369 = vld [vmem:[%s1328 + $0xa0] sm:$0xf]
        %v1370 = vld [vmem:[%s1328 + $0xa4] sm:$0xf]
        %v1371 = vld [vmem:[%s1328 + $0xa8] sm:$0xf]
        %v1372 = vld [vmem:[%s1328 + $0xac] sm:$0xf]
        %v1375 = vunpack.c.l.b16 %v1326
        %v1376 = vunpack.c.h.b16 %v1326
        %v1377 = vunpack.c.l.b16 %v1327
        %v1378 = vpack.c.b16 %v839, %v1375
        %v1379 = vpack.c.b16 %v840, %v1376
        %v1380 = vpack.c.b16 %v841, %v1377
        %vm1381 = vcmask 1046528
        %v1382 = vrot.slane %v1378, 1
        %v1383 = vrot.slane %v848, 1
        %v1384 = vsel %vm1381, %v1382, %v1383
        %v1385 = vrot.slane %v1379, 1
        %v1386 = vrot.slane %v849, 1
        %v1387 = vsel %vm1381, %v1385, %v1386
        %v1388 = vrot.slane %v1380, 1
        %v1389 = vrot.slane %v850, 1
        %v1390 = vsel %vm1381, %v1388, %v1389
        %v1437 = vunpack.c.l.b16 %v1329
        %v1438 = vunpack.c.l.b16 %v1330
        %v1439 = vunpack.c.l.b16 %v1331
        %v1440 = vunpack.c.l.b16 %v1332
        %v1441 = vunpack.c.l.b16 %v1333
        %v1442 = vunpack.c.l.b16 %v1334
        %v1443 = vunpack.c.l.b16 %v1335
        %v1444 = vunpack.c.l.b16 %v1336
        %v1445 = vunpack.c.l.b16 %v1337
        %v1446 = vunpack.c.l.b16 %v1338
        %v1447 = vunpack.c.l.b16 %v1339
        %v1448 = vunpack.c.l.b16 %v1340
        %v1449 = vunpack.c.l.b16 %v1341
        %v1450 = vunpack.c.l.b16 %v1342
        %v1451 = vunpack.c.l.b16 %v1343
        %v1452 = vunpack.c.l.b16 %v1344
        %v1453 = vunpack.c.l.b16 %v1345
        %v1454 = vunpack.c.l.b16 %v1346
        %v1455 = vunpack.c.l.b16 %v1347
        %v1456 = vunpack.c.l.b16 %v1348
        %v1457 = vunpack.c.l.b16 %v1349
        %v1458 = vunpack.c.l.b16 %v1350
        %v1459 = vunpack.c.l.b16 %v1351
        %v1460 = vunpack.c.l.b16 %v1352
        %v1461 = vunpack.c.l.b16 %v1353
        %v1462 = vunpack.c.l.b16 %v1354
        %v1463 = vunpack.c.l.b16 %v1355
        %v1464 = vunpack.c.l.b16 %v1356
        %v1465 = vunpack.c.l.b16 %v1357
        %v1466 = vunpack.c.l.b16 %v1358
        %v1467 = vunpack.c.l.b16 %v1359
        %v1468 = vunpack.c.l.b16 %v1360
        %v1469 = vunpack.c.l.b16 %v1361
        %v1470 = vunpack.c.l.b16 %v1362
        %v1471 = vunpack.c.l.b16 %v1363
        %v1472 = vunpack.c.l.b16 %v1364
        %v1473 = vunpack.c.l.b16 %v1365
        %v1474 = vunpack.c.l.b16 %v1366
        %v1475 = vunpack.c.l.b16 %v1367
        %v1476 = vunpack.c.l.b16 %v1368
        %v1477 = vunpack.c.l.b16 %v1369
        %v1478 = vunpack.c.l.b16 %v1370
        %v1479 = vunpack.c.l.b16 %v1371
        %v1480 = vunpack.c.l.b16 %v1372
        %v1481 = vpack.c.b16 %v1438, %v1437
        %v1482 = vpack.c.b16 %v1440, %v1439
        %v1483 = vpack.c.b16 %v1442, %v1441
        %v1484 = vpack.c.b16 %v1444, %v1443
        %v1485 = vpack.c.b16 %v1446, %v1445
        %v1486 = vpack.c.b16 %v1448, %v1447
        %v1487 = vpack.c.b16 %v1450, %v1449
        %v1488 = vpack.c.b16 %v1452, %v1451
        %v1489 = vpack.c.b16 %v1454, %v1453
        %v1490 = vpack.c.b16 %v1456, %v1455
        %v1491 = vpack.c.b16 %v1458, %v1457
        %v1492 = vpack.c.b16 %v1460, %v1459
        %v1493 = vpack.c.b16 %v1462, %v1461
        %v1494 = vpack.c.b16 %v1464, %v1463
        %v1495 = vpack.c.b16 %v1466, %v1465
        %v1496 = vpack.c.b16 %v1468, %v1467
        %v1497 = vpack.c.b16 %v1470, %v1469
        %v1498 = vpack.c.b16 %v1472, %v1471
        %v1499 = vpack.c.b16 %v1474, %v1473
        %v1500 = vpack.c.b16 %v1476, %v1475
        %v1501 = vpack.c.b16 %v1478, %v1477
        %v1502 = vpack.c.b16 %v1480, %v1479
        %v1526 = vsel %vm1022, %v1390, 0
        %1528 = vmatprep.subr.bf16.mxu0 0
        %1529 = vmatpush1.bf16.msra.mxu0 %v1481
        %1530 = vmatprep.subr.bf16.mxu0 0
        %1531 = vmatpush1.bf16.msra.mxu0 %v1482
        %1532 = vmatprep.subr.bf16.mxu0 0
        %1533 = vmatpush1.bf16.msra.mxu0 %v1483
        %1534 = vmatprep.subr.bf16.mxu0 0
        %1535 = vmatpush1.bf16.msra.mxu0 %v1484
        %1536 = vmatprep.subr.bf16.mxu0 0
        %1537 = vmatpush1.bf16.msra.mxu0 %v1485
        %1538 = vmatprep.subr.bf16.mxu0 0
        %1539 = vmatpush1.bf16.msra.mxu0 %v1486
        %1540 = vmatprep.subr.bf16.mxu0 0
        %1541 = vmatpush1.bf16.msra.mxu0 %v1487
        %1542 = vmatprep.subr.bf16.mxu0 0
        %1543 = vmatpush1.bf16.msra.mxu0 %v1488
        %1544 = vmatprep.subr.bf16.mxu0 0
        %1545 = vmatpush1.bf16.msra.mxu0 %v1489
        %1546 = vmatprep.subr.bf16.mxu0 0
        %1547 = vmatpush1.bf16.msra.mxu0 %v1490
        %1548 = vmatprep.subr.bf16.mxu0 0
        %1549 = vmatpush1.bf16.msra.mxu0 %v1491
        %1550 = vmatprep.subr.bf16.mxu0 0
        %1551 = vmatpush1.bf16.msra.mxu0 %v1492
        %1552 = vmatprep.subr.bf16.mxu0 0
        %1553 = vmatpush1.bf16.msra.mxu0 %v1493
        %1554 = vmatprep.subr.bf16.mxu0 0
        %1555 = vmatpush1.bf16.msra.mxu0 %v1494
        %1556 = vmatprep.subr.bf16.mxu0 0
        %1557 = vmatpush1.bf16.msra.mxu0 %v1495
        %1558 = vmatprep.subr.bf16.mxu0 0
        %1559 = vmatpush1.bf16.msra.mxu0 %v1496
        %1560 = vmatprep.mubr.bf16.mxu0 %v1387
        %1561 = vmatmul.mubr.bf16.gmra.mrb[0].mxu0 %v1384
        %v1562 = vpop.f32.mrb[0].mxu0
        %v1563 = vadd.f32 0.0, %v1562
        %v1564 = vpop.f32.mrb[0].mxu0
        %v1565 = vpop.f32.mrb[0].mxu0
        %v1566 = vadd.f32 0.0, %v1565
        %v1567 = vpop.f32.mrb[0].mxu0
        %1568 = vdwg.mxu0
        %1569 = vmatprep.subr.bf16.mxu0 0
        %1570 = vmatpush1.bf16.msra.mxu0 %v1497
        %1571 = vmatprep.subr.bf16.mxu0 0
        %1572 = vmatpush1.bf16.msra.mxu0 %v1498
        %1573 = vmatprep.subr.bf16.mxu0 0
        %1574 = vmatpush1.bf16.msra.mxu0 %v1499
        %1575 = vmatprep.subr.bf16.mxu0 0
        %1576 = vmatpush1.bf16.msra.mxu0 %v1500
        %1577 = vmatprep.subr.bf16.mxu0 0
        %1578 = vmatpush1.bf16.msra.mxu0 %v1501
        %1579 = vmatprep.subr.bf16.mxu0 0
        %1580 = vmatpush1.bf16.msra.mxu0 %v1502
        %1581 = vmatprep.subr.bf16.mxu0 0
        %1582 = vmatpush1.bf16.msra.mxu0 0
        %1583 = vmatprep.subr.bf16.mxu0 0
        %1584 = vmatpush1.bf16.msra.mxu0 0
        %1585 = vmatprep.subr.bf16.mxu0 0
        %1586 = vmatpush1.bf16.msra.mxu0 0
        %1587 = vmatprep.subr.bf16.mxu0 0
        %1588 = vmatpush1.bf16.msra.mxu0 0
        %1589 = vmatprep.subr.bf16.mxu0 0
        %1590 = vmatpush1.bf16.msra.mxu0 0
        %1591 = vmatprep.subr.bf16.mxu0 0
        %1592 = vmatpush1.bf16.msra.mxu0 0
        %1593 = vmatprep.subr.bf16.mxu0 0
        %1594 = vmatpush1.bf16.msra.mxu0 0
        %1595 = vmatprep.subr.bf16.mxu0 0
        %1596 = vmatpush1.bf16.msra.mxu0 0
        %1597 = vmatprep.subr.bf16.mxu0 0
        %1598 = vmatpush1.bf16.msra.mxu0 0
        %1599 = vmatprep.subr.bf16.mxu0 0
        %1600 = vmatpush1.bf16.msra.mxu0 0
        %1601 = vmatprep.mubr.bf16.mxu0 0
        %1602 = vmatmul.mubr.bf16.gmra.mrb[0].mxu0 %v1526
        %v1603 = vpop.f32.mrb[0].mxu0
        %v1604 = vadd.f32 %v1563, %v1603
        %v1605 = vpop.f32.mrb[0].mxu0
        %v1606 = vpop.f32.mrb[0].mxu0
        %v1607 = vadd.f32 %v1566, %v1606
        %v1608 = vpop.f32.mrb[0].mxu0
        %1609 = vdwg.mxu0
        %v1610 = vadd.f32 %v1320, %v1604
        %v1611 = vadd.f32 %v1323, %v1607
        %v1612 = vld [vmem:[#allocation2 + $0x18] sm:$0x33]
        %v1613 = vld [vmem:[#allocation2 + $0x20] sm:$0x3]
        %s1614 = scalar_lea.vmem %s5, 528
        %v1615 = vld [vmem:[%s1614] sm:$0xf]
        %v1616 = vld [vmem:[%s1614 + $0x4] sm:$0xf]
        %v1617 = vld [vmem:[%s1614 + $0x8] sm:$0xf]
        %v1618 = vld [vmem:[%s1614 + $0xc] sm:$0xf]
        %v1619 = vld [vmem:[%s1614 + $0x10] sm:$0xf]
        %v1620 = vld [vmem:[%s1614 + $0x14] sm:$0xf]
        %v1621 = vld [vmem:[%s1614 + $0x18] sm:$0xf]
        %v1622 = vld [vmem:[%s1614 + $0x1c] sm:$0xf]
        %v1623 = vld [vmem:[%s1614 + $0x20] sm:$0xf]
        %v1624 = vld [vmem:[%s1614 + $0x24] sm:$0xf]
        %v1625 = vld [vmem:[%s1614 + $0x28] sm:$0xf]
        %v1626 = vld [vmem:[%s1614 + $0x2c] sm:$0xf]
        %v1627 = vld [vmem:[%s1614 + $0x30] sm:$0xf]
        %v1628 = vld [vmem:[%s1614 + $0x34] sm:$0xf]
        %v1629 = vld [vmem:[%s1614 + $0x38] sm:$0xf]
        %v1630 = vld [vmem:[%s1614 + $0x3c] sm:$0xf]
        %v1631 = vld [vmem:[%s1614 + $0x40] sm:$0xf]
        %v1632 = vld [vmem:[%s1614 + $0x44] sm:$0xf]
        %v1633 = vld [vmem:[%s1614 + $0x48] sm:$0xf]
        %v1634 = vld [vmem:[%s1614 + $0x4c] sm:$0xf]
        %v1635 = vld [vmem:[%s1614 + $0x50] sm:$0xf]
        %v1636 = vld [vmem:[%s1614 + $0x54] sm:$0xf]
        %v1637 = vld [vmem:[%s1614 + $0x58] sm:$0xf]
        %v1638 = vld [vmem:[%s1614 + $0x5c] sm:$0xf]
        %v1639 = vld [vmem:[%s1614 + $0x60] sm:$0xf]
        %v1640 = vld [vmem:[%s1614 + $0x64] sm:$0xf]
        %v1641 = vld [vmem:[%s1614 + $0x68] sm:$0xf]
        %v1642 = vld [vmem:[%s1614 + $0x6c] sm:$0xf]
        %v1643 = vld [vmem:[%s1614 + $0x70] sm:$0xf]
        %v1644 = vld [vmem:[%s1614 + $0x74] sm:$0xf]
        %v1645 = vld [vmem:[%s1614 + $0x78] sm:$0xf]
        %v1646 = vld [vmem:[%s1614 + $0x7c] sm:$0xf]
        %v1647 = vld [vmem:[%s1614 + $0x80] sm:$0xf]
        %v1648 = vld [vmem:[%s1614 + $0x84] sm:$0xf]
        %v1649 = vld [vmem:[%s1614 + $0x88] sm:$0xf]
        %v1650 = vld [vmem:[%s1614 + $0x8c] sm:$0xf]
        %v1651 = vld [vmem:[%s1614 + $0x90] sm:$0xf]
        %v1652 = vld [vmem:[%s1614 + $0x94] sm:$0xf]
        %v1653 = vld [vmem:[%s1614 + $0x98] sm:$0xf]
        %v1654 = vld [vmem:[%s1614 + $0x9c] sm:$0xf]
        %v1655 = vld [vmem:[%s1614 + $0xa0] sm:$0xf]
        %v1656 = vld [vmem:[%s1614 + $0xa4] sm:$0xf]
        %v1657 = vld [vmem:[%s1614 + $0xa8] sm:$0xf]
        %v1658 = vld [vmem:[%s1614 + $0xac] sm:$0xf]
        %v1661 = vunpack.c.l.b16 %v1612
        %v1662 = vunpack.c.h.b16 %v1612
        %v1663 = vunpack.c.l.b16 %v1613
        %v1664 = vpack.c.b16 %v1661, %v1661
        %v1665 = vpack.c.b16 %v1662, %v1662
        %v1666 = vpack.c.b16 %v1663, %v1663
        %vm1667 = vsmask.f32 6400
        %v1669 = vshrl.u32 %v1378, 16
        %v1671 = vrot.slane %v1669, 1
        %v1672 = vshll.u32 %v1378, 16
        %v1674 = vrot.slane %v1672, 2
        %v1675 = vor.u32 %v1671, %v1674
        %v1677 = vshrl.u32 %v1664, 16
        %v1679 = vrot.slane %v1677, 1
        %v1680 = vshll.u32 %v1664, 16
        %v1682 = vrot.slane %v1680, 2
        %v1683 = vor.u32 %v1679, %v1682
        %v1684 = vsel %vm1667, %v1675, %v1683
        %v1686 = vshrl.u32 %v1379, 16
        %v1688 = vrot.slane %v1686, 1
        %v1689 = vshll.u32 %v1379, 16
        %v1691 = vrot.slane %v1689, 2
        %v1692 = vor.u32 %v1688, %v1691
        %v1694 = vshrl.u32 %v1665, 16
        %v1696 = vrot.slane %v1694, 1
        %v1697 = vshll.u32 %v1665, 16
        %v1699 = vrot.slane %v1697, 2
        %v1700 = vor.u32 %v1696, %v1699
        %v1701 = vsel %vm1667, %v1692, %v1700
        %v1703 = vshrl.u32 %v1380, 16
        %v1705 = vrot.slane %v1703, 1
        %v1706 = vshll.u32 %v1380, 16
        %v1708 = vrot.slane %v1706, 2
        %v1709 = vor.u32 %v1705, %v1708
        %v1711 = vshrl.u32 %v1666, 16
        %v1713 = vrot.slane %v1711, 1
        %v1714 = vshll.u32 %v1666, 16
        %v1716 = vrot.slane %v1714, 2
        %v1717 = vor.u32 %v1713, %v1716
        %v1718 = vsel %vm1667, %v1709, %v1717
        %v1765 = vunpack.c.l.b16 %v1615
        %v1766 = vunpack.c.l.b16 %v1616
        %v1767 = vunpack.c.l.b16 %v1617
        %v1768 = vunpack.c.l.b16 %v1618
        %v1769 = vunpack.c.l.b16 %v1619
        %v1770 = vunpack.c.l.b16 %v1620
        %v1771 = vunpack.c.l.b16 %v1621
        %v1772 = vunpack.c.l.b16 %v1622
        %v1773 = vunpack.c.l.b16 %v1623
        %v1774 = vunpack.c.l.b16 %v1624
        %v1775 = vunpack.c.l.b16 %v1625
        %v1776 = vunpack.c.l.b16 %v1626
        %v1777 = vunpack.c.l.b16 %v1627
        %v1778 = vunpack.c.l.b16 %v1628
        %v1779 = vunpack.c.l.b16 %v1629
        %v1780 = vunpack.c.l.b16 %v1630
        %v1781 = vunpack.c.l.b16 %v1631
        %v1782 = vunpack.c.l.b16 %v1632
        %v1783 = vunpack.c.l.b16 %v1633
        %v1784 = vunpack.c.l.b16 %v1634
        %v1785 = vunpack.c.l.b16 %v1635
        %v1786 = vunpack.c.l.b16 %v1636
        %v1787 = vunpack.c.l.b16 %v1637
        %v1788 = vunpack.c.l.b16 %v1638
        %v1789 = vunpack.c.l.b16 %v1639
        %v1790 = vunpack.c.l.b16 %v1640
        %v1791 = vunpack.c.l.b16 %v1641
        %v1792 = vunpack.c.l.b16 %v1642
        %v1793 = vunpack.c.l.b16 %v1643
        %v1794 = vunpack.c.l.b16 %v1644
        %v1795 = vunpack.c.l.b16 %v1645
        %v1796 = vunpack.c.l.b16 %v1646
        %v1797 = vunpack.c.l.b16 %v1647
        %v1798 = vunpack.c.l.b16 %v1648
        %v1799 = vunpack.c.l.b16 %v1649
        %v1800 = vunpack.c.l.b16 %v1650
        %v1801 = vunpack.c.l.b16 %v1651
        %v1802 = vunpack.c.l.b16 %v1652
        %v1803 = vunpack.c.l.b16 %v1653
        %v1804 = vunpack.c.l.b16 %v1654
        %v1805 = vunpack.c.l.b16 %v1655
        %v1806 = vunpack.c.l.b16 %v1656
        %v1807 = vunpack.c.l.b16 %v1657
        %v1808 = vunpack.c.l.b16 %v1658
        %v1809 = vpack.c.b16 %v1766, %v1765
        %v1810 = vpack.c.b16 %v1768, %v1767
        %v1811 = vpack.c.b16 %v1770, %v1769
        %v1812 = vpack.c.b16 %v1772, %v1771
        %v1813 = vpack.c.b16 %v1774, %v1773
        %v1814 = vpack.c.b16 %v1776, %v1775
        %v1815 = vpack.c.b16 %v1778, %v1777
        %v1816 = vpack.c.b16 %v1780, %v1779
        %v1817 = vpack.c.b16 %v1782, %v1781
        %v1818 = vpack.c.b16 %v1784, %v1783
        %v1819 = vpack.c.b16 %v1786, %v1785
        %v1820 = vpack.c.b16 %v1788, %v1787
        %v1821 = vpack.c.b16 %v1790, %v1789
        %v1822 = vpack.c.b16 %v1792, %v1791
        %v1823 = vpack.c.b16 %v1794, %v1793
        %v1824 = vpack.c.b16 %v1796, %v1795
        %v1825 = vpack.c.b16 %v1798, %v1797
        %v1826 = vpack.c.b16 %v1800, %v1799
        %v1827 = vpack.c.b16 %v1802, %v1801
        %v1828 = vpack.c.b16 %v1804, %v1803
        %v1829 = vpack.c.b16 %v1806, %v1805
        %v1830 = vpack.c.b16 %v1808, %v1807
        %v1854 = vsel %vm1022, %v1718, 0
        %1856 = vmatprep.subr.bf16.mxu0 0
        %1857 = vmatpush1.bf16.msra.mxu0 %v1809
        %1858 = vmatprep.subr.bf16.mxu0 0
        %1859 = vmatpush1.bf16.msra.mxu0 %v1810
        %1860 = vmatprep.subr.bf16.mxu0 0
        %1861 = vmatpush1.bf16.msra.mxu0 %v1811
        %1862 = vmatprep.subr.bf16.mxu0 0
        %1863 = vmatpush1.bf16.msra.mxu0 %v1812
        %1864 = vmatprep.subr.bf16.mxu0 0
        %1865 = vmatpush1.bf16.msra.mxu0 %v1813
        %1866 = vmatprep.subr.bf16.mxu0 0
        %1867 = vmatpush1.bf16.msra.mxu0 %v1814
        %1868 = vmatprep.subr.bf16.mxu0 0
        %1869 = vmatpush1.bf16.msra.mxu0 %v1815
        %1870 = vmatprep.subr.bf16.mxu0 0
        %1871 = vmatpush1.bf16.msra.mxu0 %v1816
        %1872 = vmatprep.subr.bf16.mxu0 0
        %1873 = vmatpush1.bf16.msra.mxu0 %v1817
        %1874 = vmatprep.subr.bf16.mxu0 0
        %1875 = vmatpush1.bf16.msra.mxu0 %v1818
        %1876 = vmatprep.subr.bf16.mxu0 0
        %1877 = vmatpush1.bf16.msra.mxu0 %v1819
        %1878 = vmatprep.subr.bf16.mxu0 0
        %1879 = vmatpush1.bf16.msra.mxu0 %v1820
        %1880 = vmatprep.subr.bf16.mxu0 0
        %1881 = vmatpush1.bf16.msra.mxu0 %v1821
        %1882 = vmatprep.subr.bf16.mxu0 0
        %1883 = vmatpush1.bf16.msra.mxu0 %v1822
        %1884 = vmatprep.subr.bf16.mxu0 0
        %1885 = vmatpush1.bf16.msra.mxu0 %v1823
        %1886 = vmatprep.subr.bf16.mxu0 0
        %1887 = vmatpush1.bf16.msra.mxu0 %v1824
        %1888 = vmatprep.mubr.bf16.mxu0 %v1701
        %1889 = vmatmul.mubr.bf16.gmra.mrb[0].mxu0 %v1684
        %v1890 = vpop.f32.mrb[0].mxu0
        %v1891 = vadd.f32 0.0, %v1890
        %v1892 = vpop.f32.mrb[0].mxu0
        %v1893 = vpop.f32.mrb[0].mxu0
        %v1894 = vadd.f32 0.0, %v1893
        %v1895 = vpop.f32.mrb[0].mxu0
        %1896 = vdwg.mxu0
        %1897 = vmatprep.subr.bf16.mxu0 0
        %1898 = vmatpush1.bf16.msra.mxu0 %v1825
        %1899 = vmatprep.subr.bf16.mxu0 0
        %1900 = vmatpush1.bf16.msra.mxu0 %v1826
        %1901 = vmatprep.subr.bf16.mxu0 0
        %1902 = vmatpush1.bf16.msra.mxu0 %v1827
        %1903 = vmatprep.subr.bf16.mxu0 0
        %1904 = vmatpush1.bf16.msra.mxu0 %v1828
        %1905 = vmatprep.subr.bf16.mxu0 0
        %1906 = vmatpush1.bf16.msra.mxu0 %v1829
        %1907 = vmatprep.subr.bf16.mxu0 0
        %1908 = vmatpush1.bf16.msra.mxu0 %v1830
        %1909 = vmatprep.subr.bf16.mxu0 0
        %1910 = vmatpush1.bf16.msra.mxu0 0
        %1911 = vmatprep.subr.bf16.mxu0 0
        %1912 = vmatpush1.bf16.msra.mxu0 0
        %1913 = vmatprep.subr.bf16.mxu0 0
        %1914 = vmatpush1.bf16.msra.mxu0 0
        %1915 = vmatprep.subr.bf16.mxu0 0
        %1916 = vmatpush1.bf16.msra.mxu0 0
        %1917 = vmatprep.subr.bf16.mxu0 0
        %1918 = vmatpush1.bf16.msra.mxu0 0
        %1919 = vmatprep.subr.bf16.mxu0 0
        %1920 = vmatpush1.bf16.msra.mxu0 0
        %1921 = vmatprep.subr.bf16.mxu0 0
        %1922 = vmatpush1.bf16.msra.mxu0 0
        %1923 = vmatprep.subr.bf16.mxu0 0
        %1924 = vmatpush1.bf16.msra.mxu0 0
        %1925 = vmatprep.subr.bf16.mxu0 0
        %1926 = vmatpush1.bf16.msra.mxu0 0
        %1927 = vmatprep.subr.bf16.mxu0 0
        %1928 = vmatpush1.bf16.msra.mxu0 0
        %1929 = vmatprep.mubr.bf16.mxu0 0
        %1930 = vmatmul.mubr.bf16.gmra.mrb[0].mxu0 %v1854
        %v1931 = vpop.f32.mrb[0].mxu0
        %v1932 = vadd.f32 %v1891, %v1931
        %v1933 = vpop.f32.mrb[0].mxu0
        %v1934 = vpop.f32.mrb[0].mxu0
        %v1935 = vadd.f32 %v1894, %v1934
        %v1936 = vpop.f32.mrb[0].mxu0
        %1937 = vdwg.mxu0
        %v1938 = vadd.f32 %v1610, %v1932
        %v1939 = vadd.f32 %v1611, %v1935
        %v1940 = vld [vmem:[#allocation2] sm:$0xcc]
        %v1941 = vld [vmem:[#allocation2 + $0x8] sm:$0xc]
        %s1942 = scalar_lea.vmem %s5, 704
        %v1943 = vld [vmem:[%s1942] sm:$0xf]
        %v1944 = vld [vmem:[%s1942 + $0x4] sm:$0xf]
        %v1945 = vld [vmem:[%s1942 + $0x8] sm:$0xf]
        %v1946 = vld [vmem:[%s1942 + $0xc] sm:$0xf]
        %v1947 = vld [vmem:[%s1942 + $0x10] sm:$0xf]
        %v1948 = vld [vmem:[%s1942 + $0x14] sm:$0xf]
        %v1949 = vld [vmem:[%s1942 + $0x18] sm:$0xf]
        %v1950 = vld [vmem:[%s1942 + $0x1c] sm:$0xf]
        %v1951 = vld [vmem:[%s1942 + $0x20] sm:$0xf]
        %v1952 = vld [vmem:[%s1942 + $0x24] sm:$0xf]
        %v1953 = vld [vmem:[%s1942 + $0x28] sm:$0xf]
        %v1954 = vld [vmem:[%s1942 + $0x2c] sm:$0xf]
        %v1955 = vld [vmem:[%s1942 + $0x30] sm:$0xf]
        %v1956 = vld [vmem:[%s1942 + $0x34] sm:$0xf]
        %v1957 = vld [vmem:[%s1942 + $0x38] sm:$0xf]
        %v1958 = vld [vmem:[%s1942 + $0x3c] sm:$0xf]
        %v1959 = vld [vmem:[%s1942 + $0x40] sm:$0xf]
        %v1960 = vld [vmem:[%s1942 + $0x44] sm:$0xf]
        %v1961 = vld [vmem:[%s1942 + $0x48] sm:$0xf]
        %v1962 = vld [vmem:[%s1942 + $0x4c] sm:$0xf]
        %v1963 = vld [vmem:[%s1942 + $0x50] sm:$0xf]
        %v1964 = vld [vmem:[%s1942 + $0x54] sm:$0xf]
        %v1965 = vld [vmem:[%s1942 + $0x58] sm:$0xf]
        %v1966 = vld [vmem:[%s1942 + $0x5c] sm:$0xf]
        %v1967 = vld [vmem:[%s1942 + $0x60] sm:$0xf]
        %v1968 = vld [vmem:[%s1942 + $0x64] sm:$0xf]
        %v1969 = vld [vmem:[%s1942 + $0x68] sm:$0xf]
        %v1970 = vld [vmem:[%s1942 + $0x6c] sm:$0xf]
        %v1971 = vld [vmem:[%s1942 + $0x70] sm:$0xf]
        %v1972 = vld [vmem:[%s1942 + $0x74] sm:$0xf]
        %v1973 = vld [vmem:[%s1942 + $0x78] sm:$0xf]
        %v1974 = vld [vmem:[%s1942 + $0x7c] sm:$0xf]
        %v1975 = vld [vmem:[%s1942 + $0x80] sm:$0xf]
        %v1976 = vld [vmem:[%s1942 + $0x84] sm:$0xf]
        %v1977 = vld [vmem:[%s1942 + $0x88] sm:$0xf]
        %v1978 = vld [vmem:[%s1942 + $0x8c] sm:$0xf]
        %v1979 = vld [vmem:[%s1942 + $0x90] sm:$0xf]
        %v1980 = vld [vmem:[%s1942 + $0x94] sm:$0xf]
        %v1981 = vld [vmem:[%s1942 + $0x98] sm:$0xf]
        %v1982 = vld [vmem:[%s1942 + $0x9c] sm:$0xf]
        %v1983 = vld [vmem:[%s1942 + $0xa0] sm:$0xf]
        %v1984 = vld [vmem:[%s1942 + $0xa4] sm:$0xf]
        %v1985 = vld [vmem:[%s1942 + $0xa8] sm:$0xf]
        %v1986 = vld [vmem:[%s1942 + $0xac] sm:$0xf]
        %v1989 = vunpack.c.l.b16 %v1940
        %v1990 = vunpack.c.h.b16 %v1940
        %v1991 = vunpack.c.l.b16 %v1941
        %v1992 = vpack.c.b16 %v839, %v1989
        %v1993 = vpack.c.b16 %v840, %v1990
        %v1994 = vpack.c.b16 %v841, %v1991
        %vm1995 = vcmask 1045504
        %v1996 = vrot.slane %v1992, 2
        %v1997 = vrot.slane %v1664, 2
        %v1998 = vsel %vm1995, %v1996, %v1997
        %v1999 = vrot.slane %v1993, 2
        %v2000 = vrot.slane %v1665, 2
        %v2001 = vsel %vm1995, %v1999, %v2000
        %v2002 = vrot.slane %v1994, 2
        %v2003 = vrot.slane %v1666, 2
        %v2004 = vsel %vm1995, %v2002, %v2003
        %v2051 = vunpack.c.l.b16 %v1943
        %v2052 = vunpack.c.l.b16 %v1944
        %v2053 = vunpack.c.l.b16 %v1945
        %v2054 = vunpack.c.l.b16 %v1946
        %v2055 = vunpack.c.l.b16 %v1947
        %v2056 = vunpack.c.l.b16 %v1948
        %v2057 = vunpack.c.l.b16 %v1949
        %v2058 = vunpack.c.l.b16 %v1950
        %v2059 = vunpack.c.l.b16 %v1951
        %v2060 = vunpack.c.l.b16 %v1952
        %v2061 = vunpack.c.l.b16 %v1953
        %v2062 = vunpack.c.l.b16 %v1954
        %v2063 = vunpack.c.l.b16 %v1955
        %v2064 = vunpack.c.l.b16 %v1956
        %v2065 = vunpack.c.l.b16 %v1957
        %v2066 = vunpack.c.l.b16 %v1958
        %v2067 = vunpack.c.l.b16 %v1959
        %v2068 = vunpack.c.l.b16 %v1960
        %v2069 = vunpack.c.l.b16 %v1961
        %v2070 = vunpack.c.l.b16 %v1962
        %v2071 = vunpack.c.l.b16 %v1963
        %v2072 = vunpack.c.l.b16 %v1964
        %v2073 = vunpack.c.l.b16 %v1965
        %v2074 = vunpack.c.l.b16 %v1966
        %v2075 = vunpack.c.l.b16 %v1967
        %v2076 = vunpack.c.l.b16 %v1968
        %v2077 = vunpack.c.l.b16 %v1969
        %v2078 = vunpack.c.l.b16 %v1970
        %v2079 = vunpack.c.l.b16 %v1971
        %v2080 = vunpack.c.l.b16 %v1972
        %v2081 = vunpack.c.l.b16 %v1973
        %v2082 = vunpack.c.l.b16 %v1974
        %v2083 = vunpack.c.l.b16 %v1975
        %v2084 = vunpack.c.l.b16 %v1976
        %v2085 = vunpack.c.l.b16 %v1977
        %v2086 = vunpack.c.l.b16 %v1978
        %v2087 = vunpack.c.l.b16 %v1979
        %v2088 = vunpack.c.l.b16 %v1980
        %v2089 = vunpack.c.l.b16 %v1981
        %v2090 = vunpack.c.l.b16 %v1982
        %v2091 = vunpack.c.l.b16 %v1983
        %v2092 = vunpack.c.l.b16 %v1984
        %v2093 = vunpack.c.l.b16 %v1985
        %v2094 = vunpack.c.l.b16 %v1986
        %v2095 = vpack.c.b16 %v2052, %v2051
        %v2096 = vpack.c.b16 %v2054, %v2053
        %v2097 = vpack.c.b16 %v2056, %v2055
        %v2098 = vpack.c.b16 %v2058, %v2057
        %v2099 = vpack.c.b16 %v2060, %v2059
        %v2100 = vpack.c.b16 %v2062, %v2061
        %v2101 = vpack.c.b16 %v2064, %v2063
        %v2102 = vpack.c.b16 %v2066, %v2065
        %v2103 = vpack.c.b16 %v2068, %v2067
        %v2104 = vpack.c.b16 %v2070, %v2069
        %v2105 = vpack.c.b16 %v2072, %v2071
        %v2106 = vpack.c.b16 %v2074, %v2073
        %v2107 = vpack.c.b16 %v2076, %v2075
        %v2108 = vpack.c.b16 %v2078, %v2077
        %v2109 = vpack.c.b16 %v2080, %v2079
        %v2110 = vpack.c.b16 %v2082, %v2081
        %v2111 = vpack.c.b16 %v2084, %v2083
        %v2112 = vpack.c.b16 %v2086, %v2085
        %v2113 = vpack.c.b16 %v2088, %v2087
        %v2114 = vpack.c.b16 %v2090, %v2089
        %v2115 = vpack.c.b16 %v2092, %v2091
        %v2116 = vpack.c.b16 %v2094, %v2093
        %v2140 = vsel %vm1022, %v2004, 0
        %2142 = vmatprep.subr.bf16.mxu0 0
        %2143 = vmatpush1.bf16.msra.mxu0 %v2095
        %2144 = vmatprep.subr.bf16.mxu0 0
        %2145 = vmatpush1.bf16.msra.mxu0 %v2096
        %2146 = vmatprep.subr.bf16.mxu0 0
        %2147 = vmatpush1.bf16.msra.mxu0 %v2097
        %2148 = vmatprep.subr.bf16.mxu0 0
        %2149 = vmatpush1.bf16.msra.mxu0 %v2098
        %2150 = vmatprep.subr.bf16.mxu0 0
        %2151 = vmatpush1.bf16.msra.mxu0 %v2099
        %2152 = vmatprep.subr.bf16.mxu0 0
        %2153 = vmatpush1.bf16.msra.mxu0 %v2100
        %2154 = vmatprep.subr.bf16.mxu0 0
        %2155 = vmatpush1.bf16.msra.mxu0 %v2101
        %2156 = vmatprep.subr.bf16.mxu0 0
        %2157 = vmatpush1.bf16.msra.mxu0 %v2102
        %2158 = vmatprep.subr.bf16.mxu0 0
        %2159 = vmatpush1.bf16.msra.mxu0 %v2103
        %2160 = vmatprep.subr.bf16.mxu0 0
        %2161 = vmatpush1.bf16.msra.mxu0 %v2104
        %2162 = vmatprep.subr.bf16.mxu0 0
        %2163 = vmatpush1.bf16.msra.mxu0 %v2105
        %2164 = vmatprep.subr.bf16.mxu0 0
        %2165 = vmatpush1.bf16.msra.mxu0 %v2106
        %2166 = vmatprep.subr.bf16.mxu0 0
        %2167 = vmatpush1.bf16.msra.mxu0 %v2107
        %2168 = vmatprep.subr.bf16.mxu0 0
        %2169 = vmatpush1.bf16.msra.mxu0 %v2108
        %2170 = vmatprep.subr.bf16.mxu0 0
        %2171 = vmatpush1.bf16.msra.mxu0 %v2109
        %2172 = vmatprep.subr.bf16.mxu0 0
        %2173 = vmatpush1.bf16.msra.mxu0 %v2110
        %2174 = vmatprep.mubr.bf16.mxu0 %v2001
        %2175 = vmatmul.mubr.bf16.gmra.mrb[0].mxu0 %v1998
        %v2176 = vpop.f32.mrb[0].mxu0
        %v2177 = vadd.f32 0.0, %v2176
        %v2178 = vpop.f32.mrb[0].mxu0
        %v2179 = vpop.f32.mrb[0].mxu0
        %v2180 = vadd.f32 0.0, %v2179
        %v2181 = vpop.f32.mrb[0].mxu0
        %2182 = vdwg.mxu0
        %2183 = vmatprep.subr.bf16.mxu0 0
        %2184 = vmatpush1.bf16.msra.mxu0 %v2111
        %2185 = vmatprep.subr.bf16.mxu0 0
        %2186 = vmatpush1.bf16.msra.mxu0 %v2112
        %2187 = vmatprep.subr.bf16.mxu0 0
        %2188 = vmatpush1.bf16.msra.mxu0 %v2113
        %2189 = vmatprep.subr.bf16.mxu0 0
        %2190 = vmatpush1.bf16.msra.mxu0 %v2114
        %2191 = vmatprep.subr.bf16.mxu0 0
        %2192 = vmatpush1.bf16.msra.mxu0 %v2115
        %2193 = vmatprep.subr.bf16.mxu0 0
        %2194 = vmatpush1.bf16.msra.mxu0 %v2116
        %2195 = vmatprep.subr.bf16.mxu0 0
        %2196 = vmatpush1.bf16.msra.mxu0 0
        %2197 = vmatprep.subr.bf16.mxu0 0
        %2198 = vmatpush1.bf16.msra.mxu0 0
        %2199 = vmatprep.subr.bf16.mxu0 0
        %2200 = vmatpush1.bf16.msra.mxu0 0
        %2201 = vmatprep.subr.bf16.mxu0 0
        %2202 = vmatpush1.bf16.msra.mxu0 0
        %2203 = vmatprep.subr.bf16.mxu0 0
        %2204 = vmatpush1.bf16.msra.mxu0 0
        %2205 = vmatprep.subr.bf16.mxu0 0
        %2206 = vmatpush1.bf16.msra.mxu0 0
        %2207 = vmatprep.subr.bf16.mxu0 0
        %2208 = vmatpush1.bf16.msra.mxu0 0
        %2209 = vmatprep.subr.bf16.mxu0 0
        %2210 = vmatpush1.bf16.msra.mxu0 0
        %2211 = vmatprep.subr.bf16.mxu0 0
        %2212 = vmatpush1.bf16.msra.mxu0 0
        %2213 = vmatprep.subr.bf16.mxu0 0
        %2214 = vmatpush1.bf16.msra.mxu0 0
        %2215 = vmatprep.mubr.bf16.mxu0 0
        %2216 = vmatmul.mubr.bf16.gmra.mrb[0].mxu0 %v2140
        %v2217 = vpop.f32.mrb[0].mxu0
        %v2218 = vadd.f32 %v2177, %v2217
        %v2219 = vpop.f32.mrb[0].mxu0
        %v2220 = vpop.f32.mrb[0].mxu0
        %v2221 = vadd.f32 %v2180, %v2220
        %v2222 = vpop.f32.mrb[0].mxu0
        %2223 = vdwg.mxu0
        %v2224 = vadd.f32 %v1938, %v2218
        %v2225 = vadd.f32 %v1939, %v2221
        %v2226 = vld [vmem:[#allocation2 + $0x18] sm:$0x77]
        %v2227 = vld [vmem:[#allocation2 + $0x20] sm:$0x7]
        %s2228 = scalar_lea.vmem %s5, 880
        %v2229 = vld [vmem:[%s2228] sm:$0xf]
        %v2230 = vld [vmem:[%s2228 + $0x4] sm:$0xf]
        %v2231 = vld [vmem:[%s2228 + $0x8] sm:$0xf]
        %v2232 = vld [vmem:[%s2228 + $0xc] sm:$0xf]
        %v2233 = vld [vmem:[%s2228 + $0x10] sm:$0xf]
        %v2234 = vld [vmem:[%s2228 + $0x14] sm:$0xf]
        %v2235 = vld [vmem:[%s2228 + $0x18] sm:$0xf]
        %v2236 = vld [vmem:[%s2228 + $0x1c] sm:$0xf]
        %v2237 = vld [vmem:[%s2228 + $0x20] sm:$0xf]
        %v2238 = vld [vmem:[%s2228 + $0x24] sm:$0xf]
        %v2239 = vld [vmem:[%s2228 + $0x28] sm:$0xf]
        %v2240 = vld [vmem:[%s2228 + $0x2c] sm:$0xf]
        %v2241 = vld [vmem:[%s2228 + $0x30] sm:$0xf]
        %v2242 = vld [vmem:[%s2228 + $0x34] sm:$0xf]
        %v2243 = vld [vmem:[%s2228 + $0x38] sm:$0xf]
        %v2244 = vld [vmem:[%s2228 + $0x3c] sm:$0xf]
        %v2245 = vld [vmem:[%s2228 + $0x40] sm:$0xf]
        %v2246 = vld [vmem:[%s2228 + $0x44] sm:$0xf]
        %v2247 = vld [vmem:[%s2228 + $0x48] sm:$0xf]
        %v2248 = vld [vmem:[%s2228 + $0x4c] sm:$0xf]
        %v2249 = vld [vmem:[%s2228 + $0x50] sm:$0xf]
        %v2250 = vld [vmem:[%s2228 + $0x54] sm:$0xf]
        %v2251 = vld [vmem:[%s2228 + $0x58] sm:$0xf]
        %v2252 = vld [vmem:[%s2228 + $0x5c] sm:$0xf]
        %v2253 = vld [vmem:[%s2228 + $0x60] sm:$0xf]
        %v2254 = vld [vmem:[%s2228 + $0x64] sm:$0xf]
        %v2255 = vld [vmem:[%s2228 + $0x68] sm:$0xf]
        %v2256 = vld [vmem:[%s2228 + $0x6c] sm:$0xf]
        %v2257 = vld [vmem:[%s2228 + $0x70] sm:$0xf]
        %v2258 = vld [vmem:[%s2228 + $0x74] sm:$0xf]
        %v2259 = vld [vmem:[%s2228 + $0x78] sm:$0xf]
        %v2260 = vld [vmem:[%s2228 + $0x7c] sm:$0xf]
        %v2261 = vld [vmem:[%s2228 + $0x80] sm:$0xf]
        %v2262 = vld [vmem:[%s2228 + $0x84] sm:$0xf]
        %v2263 = vld [vmem:[%s2228 + $0x88] sm:$0xf]
        %v2264 = vld [vmem:[%s2228 + $0x8c] sm:$0xf]
        %v2265 = vld [vmem:[%s2228 + $0x90] sm:$0xf]
        %v2266 = vld [vmem:[%s2228 + $0x94] sm:$0xf]
        %v2267 = vld [vmem:[%s2228 + $0x98] sm:$0xf]
        %v2268 = vld [vmem:[%s2228 + $0x9c] sm:$0xf]
        %v2269 = vld [vmem:[%s2228 + $0xa0] sm:$0xf]
        %v2270 = vld [vmem:[%s2228 + $0xa4] sm:$0xf]
        %v2271 = vld [vmem:[%s2228 + $0xa8] sm:$0xf]
        %v2272 = vld [vmem:[%s2228 + $0xac] sm:$0xf]
        %v2275 = vunpack.c.l.b16 %v2226
        %v2276 = vunpack.c.h.b16 %v2226
        %v2277 = vunpack.c.l.b16 %v2227
        %v2278 = vpack.c.b16 %v2275, %v2275
        %v2279 = vpack.c.b16 %v2276, %v2276
        %v2280 = vpack.c.b16 %v2277, %v2277
        %v2282 = vshrl.u32 %v1992, 16
        %v2284 = vrot.slane %v2282, 2
        %v2285 = vshll.u32 %v1992, 16
        %v2287 = vrot.slane %v2285, 3
        %v2288 = vor.u32 %v2284, %v2287
        %v2290 = vshrl.u32 %v2278, 16
        %v2292 = vrot.slane %v2290, 2
        %v2293 = vshll.u32 %v2278, 16
        %v2295 = vrot.slane %v2293, 3
        %v2296 = vor.u32 %v2292, %v2295
        %v2297 = vsel %vm724, %v2288, %v2296
        %v2299 = vshrl.u32 %v1993, 16
        %v2301 = vrot.slane %v2299, 2
        %v2302 = vshll.u32 %v1993, 16
        %v2304 = vrot.slane %v2302, 3
        %v2305 = vor.u32 %v2301, %v2304
        %v2307 = vshrl.u32 %v2279, 16
        %v2309 = vrot.slane %v2307, 2
        %v2310 = vshll.u32 %v2279, 16
        %v2312 = vrot.slane %v2310, 3
        %v2313 = vor.u32 %v2309, %v2312
        %v2314 = vsel %vm724, %v2305, %v2313
        %v2316 = vshrl.u32 %v1994, 16
        %v2318 = vrot.slane %v2316, 2
        %v2319 = vshll.u32 %v1994, 16
        %v2321 = vrot.slane %v2319, 3
        %v2322 = vor.u32 %v2318, %v2321
        %v2324 = vshrl.u32 %v2280, 16
        %v2326 = vrot.slane %v2324, 2
        %v2327 = vshll.u32 %v2280, 16
        %v2329 = vrot.slane %v2327, 3
        %v2330 = vor.u32 %v2326, %v2329
        %v2331 = vsel %vm724, %v2322, %v2330
        %v2378 = vunpack.c.l.b16 %v2229
        %v2379 = vunpack.c.l.b16 %v2230
        %v2380 = vunpack.c.l.b16 %v2231
        %v2381 = vunpack.c.l.b16 %v2232
        %v2382 = vunpack.c.l.b16 %v2233
        %v2383 = vunpack.c.l.b16 %v2234
        %v2384 = vunpack.c.l.b16 %v2235
        %v2385 = vunpack.c.l.b16 %v2236
        %v2386 = vunpack.c.l.b16 %v2237
        %v2387 = vunpack.c.l.b16 %v2238
        %v2388 = vunpack.c.l.b16 %v2239
        %v2389 = vunpack.c.l.b16 %v2240
        %v2390 = vunpack.c.l.b16 %v2241
        %v2391 = vunpack.c.l.b16 %v2242
        %v2392 = vunpack.c.l.b16 %v2243
        %v2393 = vunpack.c.l.b16 %v2244
        %v2394 = vunpack.c.l.b16 %v2245
        %v2395 = vunpack.c.l.b16 %v2246
        %v2396 = vunpack.c.l.b16 %v2247
        %v2397 = vunpack.c.l.b16 %v2248
        %v2398 = vunpack.c.l.b16 %v2249
        %v2399 = vunpack.c.l.b16 %v2250
        %v2400 = vunpack.c.l.b16 %v2251
        %v2401 = vunpack.c.l.b16 %v2252
        %v2402 = vunpack.c.l.b16 %v2253
        %v2403 = vunpack.c.l.b16 %v2254
        %v2404 = vunpack.c.l.b16 %v2255
        %v2405 = vunpack.c.l.b16 %v2256
        %v2406 = vunpack.c.l.b16 %v2257
        %v2407 = vunpack.c.l.b16 %v2258
        %v2408 = vunpack.c.l.b16 %v2259
        %v2409 = vunpack.c.l.b16 %v2260
        %v2410 = vunpack.c.l.b16 %v2261
        %v2411 = vunpack.c.l.b16 %v2262
        %v2412 = vunpack.c.l.b16 %v2263
        %v2413 = vunpack.c.l.b16 %v2264
        %v2414 = vunpack.c.l.b16 %v2265
        %v2415 = vunpack.c.l.b16 %v2266
        %v2416 = vunpack.c.l.b16 %v2267
        %v2417 = vunpack.c.l.b16 %v2268
        %v2418 = vunpack.c.l.b16 %v2269
        %v2419 = vunpack.c.l.b16 %v2270
        %v2420 = vunpack.c.l.b16 %v2271
        %v2421 = vunpack.c.l.b16 %v2272
        %v2422 = vpack.c.b16 %v2379, %v2378
        %v2423 = vpack.c.b16 %v2381, %v2380
        %v2424 = vpack.c.b16 %v2383, %v2382
        %v2425 = vpack.c.b16 %v2385, %v2384
        %v2426 = vpack.c.b16 %v2387, %v2386
        %v2427 = vpack.c.b16 %v2389, %v2388
        %v2428 = vpack.c.b16 %v2391, %v2390
        %v2429 = vpack.c.b16 %v2393, %v2392
        %v2430 = vpack.c.b16 %v2395, %v2394
        %v2431 = vpack.c.b16 %v2397, %v2396
        %v2432 = vpack.c.b16 %v2399, %v2398
        %v2433 = vpack.c.b16 %v2401, %v2400
        %v2434 = vpack.c.b16 %v2403, %v2402
        %v2435 = vpack.c.b16 %v2405, %v2404
        %v2436 = vpack.c.b16 %v2407, %v2406
        %v2437 = vpack.c.b16 %v2409, %v2408
        %v2438 = vpack.c.b16 %v2411, %v2410
        %v2439 = vpack.c.b16 %v2413, %v2412
        %v2440 = vpack.c.b16 %v2415, %v2414
        %v2441 = vpack.c.b16 %v2417, %v2416
        %v2442 = vpack.c.b16 %v2419, %v2418
        %v2443 = vpack.c.b16 %v2421, %v2420
        %v2467 = vsel %vm1022, %v2331, 0
        %2469 = vmatprep.subr.bf16.mxu0 0
        %2470 = vmatpush1.bf16.msra.mxu0 %v2422
        %2471 = vmatprep.subr.bf16.mxu0 0
        %2472 = vmatpush1.bf16.msra.mxu0 %v2423
        %2473 = vmatprep.subr.bf16.mxu0 0
        %2474 = vmatpush1.bf16.msra.mxu0 %v2424
        %2475 = vmatprep.subr.bf16.mxu0 0
        %2476 = vmatpush1.bf16.msra.mxu0 %v2425
        %2477 = vmatprep.subr.bf16.mxu0 0
        %2478 = vmatpush1.bf16.msra.mxu0 %v2426
        %2479 = vmatprep.subr.bf16.mxu0 0
        %2480 = vmatpush1.bf16.msra.mxu0 %v2427
        %2481 = vmatprep.subr.bf16.mxu0 0
        %2482 = vmatpush1.bf16.msra.mxu0 %v2428
        %2483 = vmatprep.subr.bf16.mxu0 0
        %2484 = vmatpush1.bf16.msra.mxu0 %v2429
        %2485 = vmatprep.subr.bf16.mxu0 0
        %2486 = vmatpush1.bf16.msra.mxu0 %v2430
        %2487 = vmatprep.subr.bf16.mxu0 0
        %2488 = vmatpush1.bf16.msra.mxu0 %v2431
        %2489 = vmatprep.subr.bf16.mxu0 0
        %2490 = vmatpush1.bf16.msra.mxu0 %v2432
        %2491 = vmatprep.subr.bf16.mxu0 0
        %2492 = vmatpush1.bf16.msra.mxu0 %v2433
        %2493 = vmatprep.subr.bf16.mxu0 0
        %2494 = vmatpush1.bf16.msra.mxu0 %v2434
        %2495 = vmatprep.subr.bf16.mxu0 0
        %2496 = vmatpush1.bf16.msra.mxu0 %v2435
        %2497 = vmatprep.subr.bf16.mxu0 0
        %2498 = vmatpush1.bf16.msra.mxu0 %v2436
        %2499 = vmatprep.subr.bf16.mxu0 0
        %2500 = vmatpush1.bf16.msra.mxu0 %v2437
        %2501 = vmatprep.mubr.bf16.mxu0 %v2314
        %2502 = vmatmul.mubr.bf16.gmra.mrb[0].mxu0 %v2297
        %v2503 = vpop.f32.mrb[0].mxu0
        %v2504 = vadd.f32 0.0, %v2503
        %v2505 = vpop.f32.mrb[0].mxu0
        %v2506 = vpop.f32.mrb[0].mxu0
        %v2507 = vadd.f32 0.0, %v2506
        %v2508 = vpop.f32.mrb[0].mxu0
        %2509 = vdwg.mxu0
        %2510 = vmatprep.subr.bf16.mxu0 0
        %2511 = vmatpush1.bf16.msra.mxu0 %v2438
        %2512 = vmatprep.subr.bf16.mxu0 0
        %2513 = vmatpush1.bf16.msra.mxu0 %v2439
        %2514 = vmatprep.subr.bf16.mxu0 0
        %2515 = vmatpush1.bf16.msra.mxu0 %v2440
        %2516 = vmatprep.subr.bf16.mxu0 0
        %2517 = vmatpush1.bf16.msra.mxu0 %v2441
        %2518 = vmatprep.subr.bf16.mxu0 0
        %2519 = vmatpush1.bf16.msra.mxu0 %v2442
        %2520 = vmatprep.subr.bf16.mxu0 0
        %2521 = vmatpush1.bf16.msra.mxu0 %v2443
        %2522 = vmatprep.subr.bf16.mxu0 0
        %2523 = vmatpush1.bf16.msra.mxu0 0
        %2524 = vmatprep.subr.bf16.mxu0 0
        %2525 = vmatpush1.bf16.msra.mxu0 0
        %2526 = vmatprep.subr.bf16.mxu0 0
        %2527 = vmatpush1.bf16.msra.mxu0 0
        %2528 = vmatprep.subr.bf16.mxu0 0
        %2529 = vmatpush1.bf16.msra.mxu0 0
        %2530 = vmatprep.subr.bf16.mxu0 0
        %2531 = vmatpush1.bf16.msra.mxu0 0
        %2532 = vmatprep.subr.bf16.mxu0 0
        %2533 = vmatpush1.bf16.msra.mxu0 0
        %2534 = vmatprep.subr.bf16.mxu0 0
        %2535 = vmatpush1.bf16.msra.mxu0 0
        %2536 = vmatprep.subr.bf16.mxu0 0
        %2537 = vmatpush1.bf16.msra.mxu0 0
        %2538 = vmatprep.subr.bf16.mxu0 0
        %2539 = vmatpush1.bf16.msra.mxu0 0
        %2540 = vmatprep.subr.bf16.mxu0 0
        %2541 = vmatpush1.bf16.msra.mxu0 0
        %2542 = vmatprep.mubr.bf16.mxu0 0
        %2543 = vmatmul.mubr.bf16.gmra.mrb[0].mxu0 %v2467
        %v2544 = vpop.f32.mrb[0].mxu0
        %v2545 = vadd.f32 %v2504, %v2544
        %v2546 = vpop.f32.mrb[0].mxu0
        %v2547 = vpop.f32.mrb[0].mxu0
        %v2548 = vadd.f32 %v2507, %v2547
        %v2549 = vpop.f32.mrb[0].mxu0
        %2550 = vdwg.mxu0
        %v2551 = vadd.f32 %v2224, %v2545
        %v2552 = vadd.f32 %v2225, %v2548
        %v2553 = vld [vmem:[#allocation2] sm:$0x88]
        %v2554 = vld [vmem:[#allocation2 + $0x8] sm:$0x8]
        %s2555 = scalar_lea.vmem %s5, 1056
        %v2556 = vld [vmem:[%s2555] sm:$0xf]
        %v2557 = vld [vmem:[%s2555 + $0x4] sm:$0xf]
        %v2558 = vld [vmem:[%s2555 + $0x8] sm:$0xf]
        %v2559 = vld [vmem:[%s2555 + $0xc] sm:$0xf]
        %v2560 = vld [vmem:[%s2555 + $0x10] sm:$0xf]
        %v2561 = vld [vmem:[%s2555 + $0x14] sm:$0xf]
        %v2562 = vld [vmem:[%s2555 + $0x18] sm:$0xf]
        %v2563 = vld [vmem:[%s2555 + $0x1c] sm:$0xf]
        %v2564 = vld [vmem:[%s2555 + $0x20] sm:$0xf]
        %v2565 = vld [vmem:[%s2555 + $0x24] sm:$0xf]
        %v2566 = vld [vmem:[%s2555 + $0x28] sm:$0xf]
        %v2567 = vld [vmem:[%s2555 + $0x2c] sm:$0xf]
        %v2568 = vld [vmem:[%s2555 + $0x30] sm:$0xf]
        %v2569 = vld [vmem:[%s2555 + $0x34] sm:$0xf]
        %v2570 = vld [vmem:[%s2555 + $0x38] sm:$0xf]
        %v2571 = vld [vmem:[%s2555 + $0x3c] sm:$0xf]
        %v2572 = vld [vmem:[%s2555 + $0x40] sm:$0xf]
        %v2573 = vld [vmem:[%s2555 + $0x44] sm:$0xf]
        %v2574 = vld [vmem:[%s2555 + $0x48] sm:$0xf]
        %v2575 = vld [vmem:[%s2555 + $0x4c] sm:$0xf]
        %v2576 = vld [vmem:[%s2555 + $0x50] sm:$0xf]
        %v2577 = vld [vmem:[%s2555 + $0x54] sm:$0xf]
        %v2578 = vld [vmem:[%s2555 + $0x58] sm:$0xf]
        %v2579 = vld [vmem:[%s2555 + $0x5c] sm:$0xf]
        %v2580 = vld [vmem:[%s2555 + $0x60] sm:$0xf]
        %v2581 = vld [vmem:[%s2555 + $0x64] sm:$0xf]
        %v2582 = vld [vmem:[%s2555 + $0x68] sm:$0xf]
        %v2583 = vld [vmem:[%s2555 + $0x6c] sm:$0xf]
        %v2584 = vld [vmem:[%s2555 + $0x70] sm:$0xf]
        %v2585 = vld [vmem:[%s2555 + $0x74] sm:$0xf]
        %v2586 = vld [vmem:[%s2555 + $0x78] sm:$0xf]
        %v2587 = vld [vmem:[%s2555 + $0x7c] sm:$0xf]
        %v2588 = vld [vmem:[%s2555 + $0x80] sm:$0xf]
        %v2589 = vld [vmem:[%s2555 + $0x84] sm:$0xf]
        %v2590 = vld [vmem:[%s2555 + $0x88] sm:$0xf]
        %v2591 = vld [vmem:[%s2555 + $0x8c] sm:$0xf]
        %v2592 = vld [vmem:[%s2555 + $0x90] sm:$0xf]
        %v2593 = vld [vmem:[%s2555 + $0x94] sm:$0xf]
        %v2594 = vld [vmem:[%s2555 + $0x98] sm:$0xf]
        %v2595 = vld [vmem:[%s2555 + $0x9c] sm:$0xf]
        %v2596 = vld [vmem:[%s2555 + $0xa0] sm:$0xf]
        %v2597 = vld [vmem:[%s2555 + $0xa4] sm:$0xf]
        %v2598 = vld [vmem:[%s2555 + $0xa8] sm:$0xf]
        %v2599 = vld [vmem:[%s2555 + $0xac] sm:$0xf]
        %v2602 = vunpack.c.l.b16 %v2553
        %v2603 = vunpack.c.h.b16 %v2553
        %v2604 = vunpack.c.l.b16 %v2554
        %v2605 = vpack.c.b16 %v839, %v2602
        %v2606 = vpack.c.b16 %v840, %v2603
        %v2607 = vpack.c.b16 %v841, %v2604
        %vm2608 = vcmask 1044480
        %v2609 = vrot.slane %v2605, 3
        %v2610 = vrot.slane %v2278, 3
        %v2611 = vsel %vm2608, %v2609, %v2610
        %v2612 = vrot.slane %v2606, 3
        %v2613 = vrot.slane %v2279, 3
        %v2614 = vsel %vm2608, %v2612, %v2613
        %v2615 = vrot.slane %v2607, 3
        %v2616 = vrot.slane %v2280, 3
        %v2617 = vsel %vm2608, %v2615, %v2616
        %v2664 = vunpack.c.l.b16 %v2556
        %v2665 = vunpack.c.l.b16 %v2557
        %v2666 = vunpack.c.l.b16 %v2558
        %v2667 = vunpack.c.l.b16 %v2559
        %v2668 = vunpack.c.l.b16 %v2560
        %v2669 = vunpack.c.l.b16 %v2561
        %v2670 = vunpack.c.l.b16 %v2562
        %v2671 = vunpack.c.l.b16 %v2563
        %v2672 = vunpack.c.l.b16 %v2564
        %v2673 = vunpack.c.l.b16 %v2565
        %v2674 = vunpack.c.l.b16 %v2566
        %v2675 = vunpack.c.l.b16 %v2567
        %v2676 = vunpack.c.l.b16 %v2568
        %v2677 = vunpack.c.l.b16 %v2569
        %v2678 = vunpack.c.l.b16 %v2570
        %v2679 = vunpack.c.l.b16 %v2571
        %v2680 = vunpack.c.l.b16 %v2572
        %v2681 = vunpack.c.l.b16 %v2573
        %v2682 = vunpack.c.l.b16 %v2574
        %v2683 = vunpack.c.l.b16 %v2575
        %v2684 = vunpack.c.l.b16 %v2576
        %v2685 = vunpack.c.l.b16 %v2577
        %v2686 = vunpack.c.l.b16 %v2578
        %v2687 = vunpack.c.l.b16 %v2579
        %v2688 = vunpack.c.l.b16 %v2580
        %v2689 = vunpack.c.l.b16 %v2581
        %v2690 = vunpack.c.l.b16 %v2582
        %v2691 = vunpack.c.l.b16 %v2583
        %v2692 = vunpack.c.l.b16 %v2584
        %v2693 = vunpack.c.l.b16 %v2585
        %v2694 = vunpack.c.l.b16 %v2586
        %v2695 = vunpack.c.l.b16 %v2587
        %v2696 = vunpack.c.l.b16 %v2588
        %v2697 = vunpack.c.l.b16 %v2589
        %v2698 = vunpack.c.l.b16 %v2590
        %v2699 = vunpack.c.l.b16 %v2591
        %v2700 = vunpack.c.l.b16 %v2592
        %v2701 = vunpack.c.l.b16 %v2593
        %v2702 = vunpack.c.l.b16 %v2594
        %v2703 = vunpack.c.l.b16 %v2595
        %v2704 = vunpack.c.l.b16 %v2596
        %v2705 = vunpack.c.l.b16 %v2597
        %v2706 = vunpack.c.l.b16 %v2598
        %v2707 = vunpack.c.l.b16 %v2599
        %v2708 = vpack.c.b16 %v2665, %v2664
        %v2709 = vpack.c.b16 %v2667, %v2666
        %v2710 = vpack.c.b16 %v2669, %v2668
        %v2711 = vpack.c.b16 %v2671, %v2670
        %v2712 = vpack.c.b16 %v2673, %v2672
        %v2713 = vpack.c.b16 %v2675, %v2674
        %v2714 = vpack.c.b16 %v2677, %v2676
        %v2715 = vpack.c.b16 %v2679, %v2678
        %v2716 = vpack.c.b16 %v2681, %v2680
        %v2717 = vpack.c.b16 %v2683, %v2682
        %v2718 = vpack.c.b16 %v2685, %v2684
        %v2719 = vpack.c.b16 %v2687, %v2686
        %v2720 = vpack.c.b16 %v2689, %v2688
        %v2721 = vpack.c.b16 %v2691, %v2690
        %v2722 = vpack.c.b16 %v2693, %v2692
        %v2723 = vpack.c.b16 %v2695, %v2694
        %v2724 = vpack.c.b16 %v2697, %v2696
        %v2725 = vpack.c.b16 %v2699, %v2698
        %v2726 = vpack.c.b16 %v2701, %v2700
        %v2727 = vpack.c.b16 %v2703, %v2702
        %v2728 = vpack.c.b16 %v2705, %v2704
        %v2729 = vpack.c.b16 %v2707, %v2706
        %v2753 = vsel %vm1022, %v2617, 0
        %2755 = vmatprep.subr.bf16.mxu0 0
        %2756 = vmatpush1.bf16.msra.mxu0 %v2708
        %2757 = vmatprep.subr.bf16.mxu0 0
        %2758 = vmatpush1.bf16.msra.mxu0 %v2709
        %2759 = vmatprep.subr.bf16.mxu0 0
        %2760 = vmatpush1.bf16.msra.mxu0 %v2710
        %2761 = vmatprep.subr.bf16.mxu0 0
        %2762 = vmatpush1.bf16.msra.mxu0 %v2711
        %2763 = vmatprep.subr.bf16.mxu0 0
        %2764 = vmatpush1.bf16.msra.mxu0 %v2712
        %2765 = vmatprep.subr.bf16.mxu0 0
        %2766 = vmatpush1.bf16.msra.mxu0 %v2713
        %2767 = vmatprep.subr.bf16.mxu0 0
        %2768 = vmatpush1.bf16.msra.mxu0 %v2714
        %2769 = vmatprep.subr.bf16.mxu0 0
        %2770 = vmatpush1.bf16.msra.mxu0 %v2715
        %2771 = vmatprep.subr.bf16.mxu0 0
        %2772 = vmatpush1.bf16.msra.mxu0 %v2716
        %2773 = vmatprep.subr.bf16.mxu0 0
        %2774 = vmatpush1.bf16.msra.mxu0 %v2717
        %2775 = vmatprep.subr.bf16.mxu0 0
        %2776 = vmatpush1.bf16.msra.mxu0 %v2718
        %2777 = vmatprep.subr.bf16.mxu0 0
        %2778 = vmatpush1.bf16.msra.mxu0 %v2719
        %2779 = vmatprep.subr.bf16.mxu0 0
        %2780 = vmatpush1.bf16.msra.mxu0 %v2720
        %2781 = vmatprep.subr.bf16.mxu0 0
        %2782 = vmatpush1.bf16.msra.mxu0 %v2721
        %2783 = vmatprep.subr.bf16.mxu0 0
        %2784 = vmatpush1.bf16.msra.mxu0 %v2722
        %2785 = vmatprep.subr.bf16.mxu0 0
        %2786 = vmatpush1.bf16.msra.mxu0 %v2723
        %2787 = vmatprep.mubr.bf16.mxu0 %v2614
        %2788 = vmatmul.mubr.bf16.gmra.mrb[0].mxu0 %v2611
        %v2789 = vpop.f32.mrb[0].mxu0
        %v2790 = vadd.f32 0.0, %v2789
        %v2791 = vpop.f32.mrb[0].mxu0
        %v2792 = vpop.f32.mrb[0].mxu0
        %v2793 = vadd.f32 0.0, %v2792
        %v2794 = vpop.f32.mrb[0].mxu0
        %2795 = vdwg.mxu0
        %2796 = vmatprep.subr.bf16.mxu0 0
        %2797 = vmatpush1.bf16.msra.mxu0 %v2724
        %2798 = vmatprep.subr.bf16.mxu0 0
        %2799 = vmatpush1.bf16.msra.mxu0 %v2725
        %2800 = vmatprep.subr.bf16.mxu0 0
        %2801 = vmatpush1.bf16.msra.mxu0 %v2726
        %2802 = vmatprep.subr.bf16.mxu0 0
        %2803 = vmatpush1.bf16.msra.mxu0 %v2727
        %2804 = vmatprep.subr.bf16.mxu0 0
        %2805 = vmatpush1.bf16.msra.mxu0 %v2728
        %2806 = vmatprep.subr.bf16.mxu0 0
        %2807 = vmatpush1.bf16.msra.mxu0 %v2729
        %2808 = vmatprep.subr.bf16.mxu0 0
        %2809 = vmatpush1.bf16.msra.mxu0 0
        %2810 = vmatprep.subr.bf16.mxu0 0
        %2811 = vmatpush1.bf16.msra.mxu0 0
        %2812 = vmatprep.subr.bf16.mxu0 0
        %2813 = vmatpush1.bf16.msra.mxu0 0
        %2814 = vmatprep.subr.bf16.mxu0 0
        %2815 = vmatpush1.bf16.msra.mxu0 0
        %2816 = vmatprep.subr.bf16.mxu0 0
        %2817 = vmatpush1.bf16.msra.mxu0 0
        %2818 = vmatprep.subr.bf16.mxu0 0
        %2819 = vmatpush1.bf16.msra.mxu0 0
        %2820 = vmatprep.subr.bf16.mxu0 0
        %2821 = vmatpush1.bf16.msra.mxu0 0
        %2822 = vmatprep.subr.bf16.mxu0 0
        %2823 = vmatpush1.bf16.msra.mxu0 0
        %2824 = vmatprep.subr.bf16.mxu0 0
        %2825 = vmatpush1.bf16.msra.mxu0 0
        %2826 = vmatprep.subr.bf16.mxu0 0
        %2827 = vmatpush1.bf16.msra.mxu0 0
        %2828 = vmatprep.mubr.bf16.mxu0 0
        %2829 = vmatmul.mubr.bf16.gmra.mrb[0].mxu0 %v2753
        %v2830 = vpop.f32.mrb[0].mxu0
        %v2831 = vadd.f32 %v2790, %v2830
        %v2832 = vpop.f32.mrb[0].mxu0
        %v2833 = vpop.f32.mrb[0].mxu0
        %v2834 = vadd.f32 %v2793, %v2833
        %v2835 = vpop.f32.mrb[0].mxu0
        %2836 = vdwg.mxu0
        %v2837 = vadd.f32 %v2551, %v2831
        %v2838 = vadd.f32 %v2552, %v2834
        %v2839 = vld [vmem:[%s6] sm:$0x1]
        %v2841 = vlaneseq
        %v2842 = vshrl.u32 %v2841, 7
        %v2843 = vsub.s32 0, %v2842
        %v2844 = vrot.slane %v2839, %v2843
        %v2846 = vadd.f32 %v2837, %v2844
        %v2847 = vadd.f32 %v2838, %v2844
        %v2848 = vmax.f32 %v2846, 0.0
        %v2849 = vmax.f32 %v2847, 0.0
        %v2850 = vpack.c.bf16 %v2849, %v2848
        %v2852 = vunpack.c.l.b16 %v2850
        %v2853 = vunpack.c.h.b16 %v2850
        %v2854 = vpack.c.b16 %v2852, %v2852
        %v2855 = vpack.c.b16 %v2853, %v2853
        %v2857 = vshrl.u32 %v2854, 16
        %v2859 = vrot.slane %v2857, 6
        %v2860 = vshll.u32 %v2854, 16
        %v2862 = vrot.slane %v2860, 7
        %v2863 = vor.u32 %v2859, %v2862
        %v2864 = vrot.slane %v2863, 4
        %v2866 = vshrl.u32 %v2855, 16
        %v2868 = vrot.slane %v2866, 6
        %v2869 = vshll.u32 %v2855, 16
        %v2871 = vrot.slane %v2869, 7
        %v2872 = vor.u32 %v2868, %v2871
        %v2873 = vsel %vm661, %v2864, %v2872
        %v2874 = vrot.slane %v2872, 4
        %2875 = vrot.lane.b32.xlu0 %v2863, 12
        %v2876 = vpop.permute.xlu0 %2875
        %2877 = vrot.lane.b32.xlu0 %v2873, 12
        %v2878 = vpop.permute.xlu0 %2877
        %2879 = vrot.lane.b32.xlu0 %v2874, 12
        %v2880 = vpop.permute.xlu0 %2879
        %vm2884 = vcmask 617569
        %vm2885 = vmand %vm2884, %vm701
        %v2886 = vld [vmem:[#allocation3] sm:$0xe]
        %v2887 = vsel %vm2885, %v2876, %v2886
        %2888 = vst [vmem:[#allocation3] sm:$0xe] %v2887
        %vm2889 = vcmask 617568
        %2890 = vst.msk [vmem:[#allocation3 + $0x4] sm:$0xf] %vm2889, %v2878
        %vm2891 = vcmask 615520
        %vm2892 = vmand %vm2891, %vm659
        %v2893 = vld [vmem:[#allocation3 + $0x8] sm:$0x3]
        %v2894 = vsel %vm2892, %v2880, %v2893
        %2895 = vst [vmem:[#allocation3 + $0x8] sm:$0x3] %v2894
        %v2896 = vld [vmem:[#allocation3] sm:$0xf]
        %v2897 = vld [vmem:[#allocation3 + $0x4] sm:$0xf]
        %v2898 = vld [vmem:[%s7] sm:$0xff]
        %v2899 = vld [vmem:[%s7 + $0x8] sm:$0xff]
        %v2900 = vld [vmem:[%s7 + $0x10] sm:$0xff]
        %v2901 = vld [vmem:[%s7 + $0x18] sm:$0xff]
        %v2902 = vld [vmem:[%s7 + $0x20] sm:$0xff]
        %v2903 = vld [vmem:[%s7 + $0x28] sm:$0xff]
        %v2904 = vld [vmem:[%s7 + $0x30] sm:$0xff]
        %v2905 = vld [vmem:[%s7 + $0x38] sm:$0xff]
        %v2906 = vld [vmem:[%s7 + $0x40] sm:$0xff]
        %v2907 = vld [vmem:[%s7 + $0x48] sm:$0xff]
        %v2908 = vld [vmem:[%s7 + $0x50] sm:$0xff]
        %v2909 = vld [vmem:[#allocation3 + $0x8] sm:$0x1]
        %s2910 = scalar_lea.vmem %s7, 88
        %v2911 = vld [vmem:[%s2910] sm:$0xff]
        %v2912 = vld [vmem:[%s2910 + $0x8] sm:$0xff]
        %v2913 = vld [vmem:[%s2910 + $0x10] sm:$0xff]
        %v2914 = vld [vmem:[%s2910 + $0x18] sm:$0xff]
        %v2915 = vld [vmem:[%s2910 + $0x20] sm:$0xff]
        %v2916 = vld [vmem:[%s2910 + $0x28] sm:$0xff]
        %v2917 = vld [vmem:[%s2910 + $0x30] sm:$0xff]
        %v2918 = vld [vmem:[%s2910 + $0x38] sm:$0xff]
        %v2919 = vld [vmem:[%s2910 + $0x40] sm:$0xff]
        %v2920 = vld [vmem:[%s2910 + $0x48] sm:$0xff]
        %v2921 = vld [vmem:[%s2910 + $0x50] sm:$0xff]
        %v2925 = vunpack.c.l.b16 %v2896
        %v2926 = vunpack.c.l.b16 %v2897
        %v2927 = vunpack.c.l.b16 %v2909
        %v2928 = vpack.c.b16 %v2926, %v2925
        %v2929 = vpack.c.b16 %v2927, %v2927
        %v2931 = vshrl.u32 %v2928, 16
        %v2933 = vshll.u32 %v2928, 16
        %v2935 = vrot.slane %v2933, 1
        %v2936 = vor.u32 %v2931, %v2935
        %v2938 = vshll.u32 %v2929, 16
        %v2940 = vrot.slane %v2938, 1
        %v2941 = vsel %vm851, %v2936, %v2940
        %v2953 = vunpack.c.l.b16 %v2911
        %v2954 = vunpack.c.h.b16 %v2911
        %v2955 = vunpack.c.l.b16 %v2912
        %v2956 = vunpack.c.h.b16 %v2912
        %v2957 = vunpack.c.l.b16 %v2913
        %v2958 = vunpack.c.h.b16 %v2913
        %v2959 = vunpack.c.l.b16 %v2914
        %v2960 = vunpack.c.h.b16 %v2914
        %v2961 = vunpack.c.l.b16 %v2915
        %v2962 = vunpack.c.h.b16 %v2915
        %v2963 = vunpack.c.l.b16 %v2916
        %v2964 = vunpack.c.h.b16 %v2916
        %v2965 = vunpack.c.l.b16 %v2917
        %v2966 = vunpack.c.h.b16 %v2917
        %v2967 = vunpack.c.l.b16 %v2918
        %v2968 = vunpack.c.h.b16 %v2918
        %v2969 = vunpack.c.l.b16 %v2919
        %v2970 = vunpack.c.h.b16 %v2919
        %v2971 = vunpack.c.l.b16 %v2920
        %v2972 = vunpack.c.h.b16 %v2920
        %v2973 = vunpack.c.l.b16 %v2921
        %v2974 = vunpack.c.h.b16 %v2921
        %v2975 = vpack.c.b16 %v2955, %v2953
        %v2976 = vpack.c.b16 %v2956, %v2954
        %v2977 = vpack.c.b16 %v2959, %v2957
        %v2978 = vpack.c.b16 %v2960, %v2958
        %v2979 = vpack.c.b16 %v2963, %v2961
        %v2980 = vpack.c.b16 %v2964, %v2962
        %v2981 = vpack.c.b16 %v2967, %v2965
        %v2982 = vpack.c.b16 %v2968, %v2966
        %v2983 = vpack.c.b16 %v2971, %v2969
        %v2984 = vpack.c.b16 %v2972, %v2970
        %v2985 = vpack.c.b16 %v2973, %v2973
        %v2986 = vpack.c.b16 %v2974, %v2974
        %vm2997 = vcmask 719872
        %v2999 = vsel %vm2997, %v2941, 0
        %vm3001 = vcmask 1043456
        %v3003 = vsel %vm3001, %v2985, 0
        %v3006 = vsel %vm3001, %v2986, 0
        %3008 = vmatprep.subr.bf16.mxu0 %v2976
        %3009 = vmatpush1.bf16.msra.mxu0 %v2975
        %3010 = vmatprep.subr.bf16.mxu0 %v2978
        %3011 = vmatpush1.bf16.msra.mxu0 %v2977
        %3012 = vmatprep.subr.bf16.mxu0 %v2980
        %3013 = vmatpush1.bf16.msra.mxu0 %v2979
        %3014 = vmatprep.subr.bf16.mxu0 %v2982
        %3015 = vmatpush1.bf16.msra.mxu0 %v2981
        %3016 = vmatprep.subr.bf16.mxu0 %v2984
        %3017 = vmatpush1.bf16.msra.mxu0 %v2983
        %3018 = vmatprep.subr.bf16.mxu0 %v3006
        %3019 = vmatpush1.bf16.msra.mxu0 %v3003
        %3020 = vmatprep.subr.bf16.mxu0 0
        %3021 = vmatpush1.bf16.msra.mxu0 0
        %3022 = vmatprep.subr.bf16.mxu0 0
        %3023 = vmatpush1.bf16.msra.mxu0 0
        %3024 = vmatprep.subr.bf16.mxu0 0
        %3025 = vmatpush1.bf16.msra.mxu0 0
        %3026 = vmatprep.subr.bf16.mxu0 0
        %3027 = vmatpush1.bf16.msra.mxu0 0
        %3028 = vmatprep.subr.bf16.mxu0 0
        %3029 = vmatpush1.bf16.msra.mxu0 0
        %3030 = vmatprep.subr.bf16.mxu0 0
        %3031 = vmatpush1.bf16.msra.mxu0 0
        %3032 = vmatprep.subr.bf16.mxu0 0
        %3033 = vmatpush1.bf16.msra.mxu0 0
        %3034 = vmatprep.subr.bf16.mxu0 0
        %3035 = vmatpush1.bf16.msra.mxu0 0
        %3036 = vmatprep.subr.bf16.mxu0 0
        %3037 = vmatpush1.bf16.msra.mxu0 0
        %3038 = vmatprep.subr.bf16.mxu0 0
        %3039 = vmatpush1.bf16.msra.mxu0 0
        %3040 = vmatprep.mubr.bf16.mxu0 0
        %3041 = vmatmul.mubr.bf16.gmra.mrb[0].mxu0 %v2999
        %v3042 = vpop.f32.mrb[0].mxu0
        %v3043 = vadd.f32 0.0, %v3042
        %v3044 = vpop.f32.mrb[0].mxu0
        %v3045 = vadd.f32 0.0, %v3044
        %v3046 = vpop.f32.mrb[0].mxu0
        %v3047 = vadd.f32 0.0, %v3046
        %v3048 = vpop.f32.mrb[0].mxu0
        %v3049 = vadd.f32 0.0, %v3048
        %3050 = vdwg.mxu0
        %v3062 = vunpack.c.l.b16 %v2898
        %v3063 = vunpack.c.h.b16 %v2898
        %v3064 = vunpack.c.l.b16 %v2899
        %v3065 = vunpack.c.h.b16 %v2899
        %v3066 = vunpack.c.l.b16 %v2900
        %v3067 = vunpack.c.h.b16 %v2900
        %v3068 = vunpack.c.l.b16 %v2901
        %v3069 = vunpack.c.h.b16 %v2901
        %v3070 = vunpack.c.l.b16 %v2902
        %v3071 = vunpack.c.h.b16 %v2902
        %v3072 = vunpack.c.l.b16 %v2903
        %v3073 = vunpack.c.h.b16 %v2903
        %v3074 = vunpack.c.l.b16 %v2904
        %v3075 = vunpack.c.h.b16 %v2904
        %v3076 = vunpack.c.l.b16 %v2905
        %v3077 = vunpack.c.h.b16 %v2905
        %v3078 = vunpack.c.l.b16 %v2906
        %v3079 = vunpack.c.h.b16 %v2906
        %v3080 = vunpack.c.l.b16 %v2907
        %v3081 = vunpack.c.h.b16 %v2907
        %v3082 = vunpack.c.l.b16 %v2908
        %v3083 = vunpack.c.h.b16 %v2908
        %v3084 = vpack.c.b16 %v3064, %v3062
        %v3085 = vpack.c.b16 %v3065, %v3063
        %v3086 = vpack.c.b16 %v3068, %v3066
        %v3087 = vpack.c.b16 %v3069, %v3067
        %v3088 = vpack.c.b16 %v3072, %v3070
        %v3089 = vpack.c.b16 %v3073, %v3071
        %v3090 = vpack.c.b16 %v3076, %v3074
        %v3091 = vpack.c.b16 %v3077, %v3075
        %v3092 = vpack.c.b16 %v3080, %v3078
        %v3093 = vpack.c.b16 %v3081, %v3079
        %v3094 = vpack.c.b16 %v3082, %v3082
        %v3095 = vpack.c.b16 %v3083, %v3083
        %v3106 = vsel %vm2997, %v2928, 0
        %v3109 = vsel %vm3001, %v3094, 0
        %v3112 = vsel %vm3001, %v3095, 0
        %3114 = vmatprep.subr.bf16.mxu0 %v3085
        %3115 = vmatpush1.bf16.msra.mxu0 %v3084
        %3116 = vmatprep.subr.bf16.mxu0 %v3087
        %3117 = vmatpush1.bf16.msra.mxu0 %v3086
        %3118 = vmatprep.subr.bf16.mxu0 %v3089
        %3119 = vmatpush1.bf16.msra.mxu0 %v3088
        %3120 = vmatprep.subr.bf16.mxu0 %v3091
        %3121 = vmatpush1.bf16.msra.mxu0 %v3090
        %3122 = vmatprep.subr.bf16.mxu0 %v3093
        %3123 = vmatpush1.bf16.msra.mxu0 %v3092
        %3124 = vmatprep.subr.bf16.mxu0 %v3112
        %3125 = vmatpush1.bf16.msra.mxu0 %v3109
        %3126 = vmatprep.subr.bf16.mxu0 0
        %3127 = vmatpush1.bf16.msra.mxu0 0
        %3128 = vmatprep.subr.bf16.mxu0 0
        %3129 = vmatpush1.bf16.msra.mxu0 0
        %3130 = vmatprep.subr.bf16.mxu0 0
        %3131 = vmatpush1.bf16.msra.mxu0 0
        %3132 = vmatprep.subr.bf16.mxu0 0
        %3133 = vmatpush1.bf16.msra.mxu0 0
        %3134 = vmatprep.subr.bf16.mxu0 0
        %3135 = vmatpush1.bf16.msra.mxu0 0
        %3136 = vmatprep.subr.bf16.mxu0 0
        %3137 = vmatpush1.bf16.msra.mxu0 0
        %3138 = vmatprep.subr.bf16.mxu0 0
        %3139 = vmatpush1.bf16.msra.mxu0 0
        %3140 = vmatprep.subr.bf16.mxu0 0
        %3141 = vmatpush1.bf16.msra.mxu0 0
        %3142 = vmatprep.subr.bf16.mxu0 0
        %3143 = vmatpush1.bf16.msra.mxu0 0
        %3144 = vmatprep.subr.bf16.mxu0 0
        %3145 = vmatpush1.bf16.msra.mxu0 0
        %3146 = vmatprep.mubr.bf16.mxu0 0
        %3147 = vmatmul.mubr.bf16.gmra.mrb[0].mxu0 %v3106
        %v3148 = vpop.f32.mrb[0].mxu0
        %v3149 = vadd.f32 %v3043, %v3148
        %v3150 = vpop.f32.mrb[0].mxu0
        %v3151 = vadd.f32 %v3045, %v3150
        %v3152 = vpop.f32.mrb[0].mxu0
        %v3153 = vadd.f32 %v3047, %v3152
        %v3154 = vpop.f32.mrb[0].mxu0
        %v3155 = vadd.f32 %v3049, %v3154
        %3156 = vdwg.mxu0
        %v3157 = vld [vmem:[#allocation3] sm:$0xe]
        %s3158 = scalar_lea.vmem %s7, 176
        %v3159 = vld [vmem:[%s3158] sm:$0xff]
        %v3160 = vld [vmem:[%s3158 + $0x8] sm:$0xff]
        %v3161 = vld [vmem:[%s3158 + $0x10] sm:$0xff]
        %v3162 = vld [vmem:[%s3158 + $0x18] sm:$0xff]
        %v3163 = vld [vmem:[%s3158 + $0x20] sm:$0xff]
        %v3164 = vld [vmem:[%s3158 + $0x28] sm:$0xff]
        %v3165 = vld [vmem:[%s3158 + $0x30] sm:$0xff]
        %v3166 = vld [vmem:[%s3158 + $0x38] sm:$0xff]
        %v3167 = vld [vmem:[%s3158 + $0x40] sm:$0xff]
        %v3168 = vld [vmem:[%s3158 + $0x48] sm:$0xff]
        %v3169 = vld [vmem:[%s3158 + $0x50] sm:$0xff]
        %v3171 = vunpack.c.l.b16 %v3157
        %v3172 = vpack.c.b16 %v2926, %v3171
        %v3173 = vrot.slane %v3172, 1
        %v3174 = vrot.slane %v2929, 1
        %v3175 = vsel %vm1381, %v3173, %v3174
        %v3187 = vunpack.c.l.b16 %v3159
        %v3188 = vunpack.c.h.b16 %v3159
        %v3189 = vunpack.c.l.b16 %v3160
        %v3190 = vunpack.c.h.b16 %v3160
        %v3191 = vunpack.c.l.b16 %v3161
        %v3192 = vunpack.c.h.b16 %v3161
        %v3193 = vunpack.c.l.b16 %v3162
        %v3194 = vunpack.c.h.b16 %v3162
        %v3195 = vunpack.c.l.b16 %v3163
        %v3196 = vunpack.c.h.b16 %v3163
        %v3197 = vunpack.c.l.b16 %v3164
        %v3198 = vunpack.c.h.b16 %v3164
        %v3199 = vunpack.c.l.b16 %v3165
        %v3200 = vunpack.c.h.b16 %v3165
        %v3201 = vunpack.c.l.b16 %v3166
        %v3202 = vunpack.c.h.b16 %v3166
        %v3203 = vunpack.c.l.b16 %v3167
        %v3204 = vunpack.c.h.b16 %v3167
        %v3205 = vunpack.c.l.b16 %v3168
        %v3206 = vunpack.c.h.b16 %v3168
        %v3207 = vunpack.c.l.b16 %v3169
        %v3208 = vunpack.c.h.b16 %v3169
        %v3209 = vpack.c.b16 %v3189, %v3187
        %v3210 = vpack.c.b16 %v3190, %v3188
        %v3211 = vpack.c.b16 %v3193, %v3191
        %v3212 = vpack.c.b16 %v3194, %v3192
        %v3213 = vpack.c.b16 %v3197, %v3195
        %v3214 = vpack.c.b16 %v3198, %v3196
        %v3215 = vpack.c.b16 %v3201, %v3199
        %v3216 = vpack.c.b16 %v3202, %v3200
        %v3217 = vpack.c.b16 %v3205, %v3203
        %v3218 = vpack.c.b16 %v3206, %v3204
        %v3219 = vpack.c.b16 %v3207, %v3207
        %v3220 = vpack.c.b16 %v3208, %v3208
        %v3232 = vsel %vm2997, %v3175, 0
        %v3235 = vsel %vm3001, %v3219, 0
        %v3238 = vsel %vm3001, %v3220, 0
        %3240 = vmatprep.subr.bf16.mxu0 %v3210
        %3241 = vmatpush1.bf16.msra.mxu0 %v3209
        %3242 = vmatprep.subr.bf16.mxu0 %v3212
        %3243 = vmatpush1.bf16.msra.mxu0 %v3211
        %3244 = vmatprep.subr.bf16.mxu0 %v3214
        %3245 = vmatpush1.bf16.msra.mxu0 %v3213
        %3246 = vmatprep.subr.bf16.mxu0 %v3216
        %3247 = vmatpush1.bf16.msra.mxu0 %v3215
        %3248 = vmatprep.subr.bf16.mxu0 %v3218
        %3249 = vmatpush1.bf16.msra.mxu0 %v3217
        %3250 = vmatprep.subr.bf16.mxu0 %v3238
        %3251 = vmatpush1.bf16.msra.mxu0 %v3235
        %3252 = vmatprep.subr.bf16.mxu0 0
        %3253 = vmatpush1.bf16.msra.mxu0 0
        %3254 = vmatprep.subr.bf16.mxu0 0
        %3255 = vmatpush1.bf16.msra.mxu0 0
        %3256 = vmatprep.subr.bf16.mxu0 0
        %3257 = vmatpush1.bf16.msra.mxu0 0
        %3258 = vmatprep.subr.bf16.mxu0 0
        %3259 = vmatpush1.bf16.msra.mxu0 0
        %3260 = vmatprep.subr.bf16.mxu0 0
        %3261 = vmatpush1.bf16.msra.mxu0 0
        %3262 = vmatprep.subr.bf16.mxu0 0
        %3263 = vmatpush1.bf16.msra.mxu0 0
        %3264 = vmatprep.subr.bf16.mxu0 0
        %3265 = vmatpush1.bf16.msra.mxu0 0
        %3266 = vmatprep.subr.bf16.mxu0 0
        %3267 = vmatpush1.bf16.msra.mxu0 0
        %3268 = vmatprep.subr.bf16.mxu0 0
        %3269 = vmatpush1.bf16.msra.mxu0 0
        %3270 = vmatprep.subr.bf16.mxu0 0
        %3271 = vmatpush1.bf16.msra.mxu0 0
        %3272 = vmatprep.mubr.bf16.mxu0 0
        %3273 = vmatmul.mubr.bf16.gmra.mrb[0].mxu0 %v3232
        %v3274 = vpop.f32.mrb[0].mxu0
        %v3275 = vadd.f32 0.0, %v3274
        %v3276 = vpop.f32.mrb[0].mxu0
        %v3277 = vadd.f32 0.0, %v3276
        %v3278 = vpop.f32.mrb[0].mxu0
        %v3279 = vadd.f32 0.0, %v3278
        %v3280 = vpop.f32.mrb[0].mxu0
        %v3281 = vadd.f32 0.0, %v3280
        %3282 = vdwg.mxu0
        %v3283 = vadd.f32 %v3149, %v3275
        %v3284 = vadd.f32 %v3151, %v3277
        %v3285 = vadd.f32 %v3153, %v3279
        %v3286 = vadd.f32 %v3155, %v3281
        %v3287 = vld [vmem:[#allocation3 + $0x8] sm:$0x3]
        %s3288 = scalar_lea.vmem %s7, 264
        %v3289 = vld [vmem:[%s3288] sm:$0xff]
        %v3290 = vld [vmem:[%s3288 + $0x8] sm:$0xff]
        %v3291 = vld [vmem:[%s3288 + $0x10] sm:$0xff]
        %v3292 = vld [vmem:[%s3288 + $0x18] sm:$0xff]
        %v3293 = vld [vmem:[%s3288 + $0x20] sm:$0xff]
        %v3294 = vld [vmem:[%s3288 + $0x28] sm:$0xff]
        %v3295 = vld [vmem:[%s3288 + $0x30] sm:$0xff]
        %v3296 = vld [vmem:[%s3288 + $0x38] sm:$0xff]
        %v3297 = vld [vmem:[%s3288 + $0x40] sm:$0xff]
        %v3298 = vld [vmem:[%s3288 + $0x48] sm:$0xff]
        %v3299 = vld [vmem:[%s3288 + $0x50] sm:$0xff]
        %v3301 = vunpack.c.l.b16 %v3287
        %v3302 = vpack.c.b16 %v3301, %v3301
        %v3304 = vshrl.u32 %v3172, 16
        %v3306 = vrot.slane %v3304, 1
        %v3307 = vshll.u32 %v3172, 16
        %v3309 = vrot.slane %v3307, 2
        %v3310 = vor.u32 %v3306, %v3309
        %v3312 = vshrl.u32 %v3302, 16
        %v3314 = vrot.slane %v3312, 1
        %v3315 = vshll.u32 %v3302, 16
        %v3317 = vrot.slane %v3315, 2
        %v3318 = vor.u32 %v3314, %v3317
        %v3319 = vsel %vm1667, %v3310, %v3318
        %v3331 = vunpack.c.l.b16 %v3289
        %v3332 = vunpack.c.h.b16 %v3289
        %v3333 = vunpack.c.l.b16 %v3290
        %v3334 = vunpack.c.h.b16 %v3290
        %v3335 = vunpack.c.l.b16 %v3291
        %v3336 = vunpack.c.h.b16 %v3291
        %v3337 = vunpack.c.l.b16 %v3292
        %v3338 = vunpack.c.h.b16 %v3292
        %v3339 = vunpack.c.l.b16 %v3293
        %v3340 = vunpack.c.h.b16 %v3293
        %v3341 = vunpack.c.l.b16 %v3294
        %v3342 = vunpack.c.h.b16 %v3294
        %v3343 = vunpack.c.l.b16 %v3295
        %v3344 = vunpack.c.h.b16 %v3295
        %v3345 = vunpack.c.l.b16 %v3296
        %v3346 = vunpack.c.h.b16 %v3296
        %v3347 = vunpack.c.l.b16 %v3297
        %v3348 = vunpack.c.h.b16 %v3297
        %v3349 = vunpack.c.l.b16 %v3298
        %v3350 = vunpack.c.h.b16 %v3298
        %v3351 = vunpack.c.l.b16 %v3299
        %v3352 = vunpack.c.h.b16 %v3299
        %v3353 = vpack.c.b16 %v3333, %v3331
        %v3354 = vpack.c.b16 %v3334, %v3332
        %v3355 = vpack.c.b16 %v3337, %v3335
        %v3356 = vpack.c.b16 %v3338, %v3336
        %v3357 = vpack.c.b16 %v3341, %v3339
        %v3358 = vpack.c.b16 %v3342, %v3340
        %v3359 = vpack.c.b16 %v3345, %v3343
        %v3360 = vpack.c.b16 %v3346, %v3344
        %v3361 = vpack.c.b16 %v3349, %v3347
        %v3362 = vpack.c.b16 %v3350, %v3348
        %v3363 = vpack.c.b16 %v3351, %v3351
        %v3364 = vpack.c.b16 %v3352, %v3352
        %v3376 = vsel %vm2997, %v3319, 0
        %v3379 = vsel %vm3001, %v3363, 0
        %v3382 = vsel %vm3001, %v3364, 0
        %3384 = vmatprep.subr.bf16.mxu0 %v3354
        %3385 = vmatpush1.bf16.msra.mxu0 %v3353
        %3386 = vmatprep.subr.bf16.mxu0 %v3356
        %3387 = vmatpush1.bf16.msra.mxu0 %v3355
        %3388 = vmatprep.subr.bf16.mxu0 %v3358
        %3389 = vmatpush1.bf16.msra.mxu0 %v3357
        %3390 = vmatprep.subr.bf16.mxu0 %v3360
        %3391 = vmatpush1.bf16.msra.mxu0 %v3359
        %3392 = vmatprep.subr.bf16.mxu0 %v3362
        %3393 = vmatpush1.bf16.msra.mxu0 %v3361
        %3394 = vmatprep.subr.bf16.mxu0 %v3382
        %3395 = vmatpush1.bf16.msra.mxu0 %v3379
        %3396 = vmatprep.subr.bf16.mxu0 0
        %3397 = vmatpush1.bf16.msra.mxu0 0
        %3398 = vmatprep.subr.bf16.mxu0 0
        %3399 = vmatpush1.bf16.msra.mxu0 0
        %3400 = vmatprep.subr.bf16.mxu0 0
        %3401 = vmatpush1.bf16.msra.mxu0 0
        %3402 = vmatprep.subr.bf16.mxu0 0
        %3403 = vmatpush1.bf16.msra.mxu0 0
        %3404 = vmatprep.subr.bf16.mxu0 0
        %3405 = vmatpush1.bf16.msra.mxu0 0
        %3406 = vmatprep.subr.bf16.mxu0 0
        %3407 = vmatpush1.bf16.msra.mxu0 0
        %3408 = vmatprep.subr.bf16.mxu0 0
        %3409 = vmatpush1.bf16.msra.mxu0 0
        %3410 = vmatprep.subr.bf16.mxu0 0
        %3411 = vmatpush1.bf16.msra.mxu0 0
        %3412 = vmatprep.subr.bf16.mxu0 0
        %3413 = vmatpush1.bf16.msra.mxu0 0
        %3414 = vmatprep.subr.bf16.mxu0 0
        %3415 = vmatpush1.bf16.msra.mxu0 0
        %3416 = vmatprep.mubr.bf16.mxu0 0
        %3417 = vmatmul.mubr.bf16.gmra.mrb[0].mxu0 %v3376
        %v3418 = vpop.f32.mrb[0].mxu0
        %v3419 = vadd.f32 0.0, %v3418
        %v3420 = vpop.f32.mrb[0].mxu0
        %v3421 = vadd.f32 0.0, %v3420
        %v3422 = vpop.f32.mrb[0].mxu0
        %v3423 = vadd.f32 0.0, %v3422
        %v3424 = vpop.f32.mrb[0].mxu0
        %v3425 = vadd.f32 0.0, %v3424
        %3426 = vdwg.mxu0
        %v3427 = vadd.f32 %v3283, %v3419
        %v3428 = vadd.f32 %v3284, %v3421
        %v3429 = vadd.f32 %v3285, %v3423
        %v3430 = vadd.f32 %v3286, %v3425
        %v3431 = vld [vmem:[#allocation3] sm:$0xc]
        %s3432 = scalar_lea.vmem %s7, 352
        %v3433 = vld [vmem:[%s3432] sm:$0xff]
        %v3434 = vld [vmem:[%s3432 + $0x8] sm:$0xff]
        %v3435 = vld [vmem:[%s3432 + $0x10] sm:$0xff]
        %v3436 = vld [vmem:[%s3432 + $0x18] sm:$0xff]
        %v3437 = vld [vmem:[%s3432 + $0x20] sm:$0xff]
        %v3438 = vld [vmem:[%s3432 + $0x28] sm:$0xff]
        %v3439 = vld [vmem:[%s3432 + $0x30] sm:$0xff]
        %v3440 = vld [vmem:[%s3432 + $0x38] sm:$0xff]
        %v3441 = vld [vmem:[%s3432 + $0x40] sm:$0xff]
        %v3442 = vld [vmem:[%s3432 + $0x48] sm:$0xff]
        %v3443 = vld [vmem:[%s3432 + $0x50] sm:$0xff]
        %v3445 = vunpack.c.l.b16 %v3431
        %v3446 = vpack.c.b16 %v2926, %v3445
        %v3447 = vrot.slane %v3446, 2
        %v3448 = vrot.slane %v3302, 2
        %v3449 = vsel %vm1995, %v3447, %v3448
        %v3461 = vunpack.c.l.b16 %v3433
        %v3462 = vunpack.c.h.b16 %v3433
        %v3463 = vunpack.c.l.b16 %v3434
        %v3464 = vunpack.c.h.b16 %v3434
        %v3465 = vunpack.c.l.b16 %v3435
        %v3466 = vunpack.c.h.b16 %v3435
        %v3467 = vunpack.c.l.b16 %v3436
        %v3468 = vunpack.c.h.b16 %v3436
        %v3469 = vunpack.c.l.b16 %v3437
        %v3470 = vunpack.c.h.b16 %v3437
        %v3471 = vunpack.c.l.b16 %v3438
        %v3472 = vunpack.c.h.b16 %v3438
        %v3473 = vunpack.c.l.b16 %v3439
        %v3474 = vunpack.c.h.b16 %v3439
        %v3475 = vunpack.c.l.b16 %v3440
        %v3476 = vunpack.c.h.b16 %v3440
        %v3477 = vunpack.c.l.b16 %v3441
        %v3478 = vunpack.c.h.b16 %v3441
        %v3479 = vunpack.c.l.b16 %v3442
        %v3480 = vunpack.c.h.b16 %v3442
        %v3481 = vunpack.c.l.b16 %v3443
        %v3482 = vunpack.c.h.b16 %v3443
        %v3483 = vpack.c.b16 %v3463, %v3461
        %v3484 = vpack.c.b16 %v3464, %v3462
        %v3485 = vpack.c.b16 %v3467, %v3465
        %v3486 = vpack.c.b16 %v3468, %v3466
        %v3487 = vpack.c.b16 %v3471, %v3469
        %v3488 = vpack.c.b16 %v3472, %v3470
        %v3489 = vpack.c.b16 %v3475, %v3473
        %v3490 = vpack.c.b16 %v3476, %v3474
        %v3491 = vpack.c.b16 %v3479, %v3477
        %v3492 = vpack.c.b16 %v3480, %v3478
        %v3493 = vpack.c.b16 %v3481, %v3481
        %v3494 = vpack.c.b16 %v3482, %v3482
        %v3506 = vsel %vm2997, %v3449, 0
        %v3509 = vsel %vm3001, %v3493, 0
        %v3512 = vsel %vm3001, %v3494, 0
        %3514 = vmatprep.subr.bf16.mxu0 %v3484
        %3515 = vmatpush1.bf16.msra.mxu0 %v3483
        %3516 = vmatprep.subr.bf16.mxu0 %v3486
        %3517 = vmatpush1.bf16.msra.mxu0 %v3485
        %3518 = vmatprep.subr.bf16.mxu0 %v3488
        %3519 = vmatpush1.bf16.msra.mxu0 %v3487
        %3520 = vmatprep.subr.bf16.mxu0 %v3490
        %3521 = vmatpush1.bf16.msra.mxu0 %v3489
        %3522 = vmatprep.subr.bf16.mxu0 %v3492
        %3523 = vmatpush1.bf16.msra.mxu0 %v3491
        %3524 = vmatprep.subr.bf16.mxu0 %v3512
        %3525 = vmatpush1.bf16.msra.mxu0 %v3509
        %3526 = vmatprep.subr.bf16.mxu0 0
        %3527 = vmatpush1.bf16.msra.mxu0 0
        %3528 = vmatprep.subr.bf16.mxu0 0
        %3529 = vmatpush1.bf16.msra.mxu0 0
        %3530 = vmatprep.subr.bf16.mxu0 0
        %3531 = vmatpush1.bf16.msra.mxu0 0
        %3532 = vmatprep.subr.bf16.mxu0 0
        %3533 = vmatpush1.bf16.msra.mxu0 0
        %3534 = vmatprep.subr.bf16.mxu0 0
        %3535 = vmatpush1.bf16.msra.mxu0 0
        %3536 = vmatprep.subr.bf16.mxu0 0
        %3537 = vmatpush1.bf16.msra.mxu0 0
        %3538 = vmatprep.subr.bf16.mxu0 0
        %3539 = vmatpush1.bf16.msra.mxu0 0
        %3540 = vmatprep.subr.bf16.mxu0 0
        %3541 = vmatpush1.bf16.msra.mxu0 0
        %3542 = vmatprep.subr.bf16.mxu0 0
        %3543 = vmatpush1.bf16.msra.mxu0 0
        %3544 = vmatprep.subr.bf16.mxu0 0
        %3545 = vmatpush1.bf16.msra.mxu0 0
        %3546 = vmatprep.mubr.bf16.mxu0 0
        %3547 = vmatmul.mubr.bf16.gmra.mrb[0].mxu0 %v3506
        %v3548 = vpop.f32.mrb[0].mxu0
        %v3549 = vadd.f32 0.0, %v3548
        %v3550 = vpop.f32.mrb[0].mxu0
        %v3551 = vadd.f32 0.0, %v3550
        %v3552 = vpop.f32.mrb[0].mxu0
        %v3553 = vadd.f32 0.0, %v3552
        %v3554 = vpop.f32.mrb[0].mxu0
        %v3555 = vadd.f32 0.0, %v3554
        %3556 = vdwg.mxu0
        %v3557 = vadd.f32 %v3427, %v3549
        %v3558 = vadd.f32 %v3428, %v3551
        %v3559 = vadd.f32 %v3429, %v3553
        %v3560 = vadd.f32 %v3430, %v3555
        %v3561 = vld [vmem:[#allocation3 + $0x8] sm:$0x7]
        %s3562 = scalar_lea.vmem %s7, 440
        %v3563 = vld [vmem:[%s3562] sm:$0xff]
        %v3564 = vld [vmem:[%s3562 + $0x8] sm:$0xff]
        %v3565 = vld [vmem:[%s3562 + $0x10] sm:$0xff]
        %v3566 = vld [vmem:[%s3562 + $0x18] sm:$0xff]
        %v3567 = vld [vmem:[%s3562 + $0x20] sm:$0xff]
        %v3568 = vld [vmem:[%s3562 + $0x28] sm:$0xff]
        %v3569 = vld [vmem:[%s3562 + $0x30] sm:$0xff]
        %v3570 = vld [vmem:[%s3562 + $0x38] sm:$0xff]
        %v3571 = vld [vmem:[%s3562 + $0x40] sm:$0xff]
        %v3572 = vld [vmem:[%s3562 + $0x48] sm:$0xff]
        %v3573 = vld [vmem:[%s3562 + $0x50] sm:$0xff]
        %v3575 = vunpack.c.l.b16 %v3561
        %v3576 = vpack.c.b16 %v3575, %v3575
        %v3578 = vshrl.u32 %v3446, 16
        %v3580 = vrot.slane %v3578, 2
        %v3581 = vshll.u32 %v3446, 16
        %v3583 = vrot.slane %v3581, 3
        %v3584 = vor.u32 %v3580, %v3583
        %v3586 = vshrl.u32 %v3576, 16
        %v3588 = vrot.slane %v3586, 2
        %v3589 = vshll.u32 %v3576, 16
        %v3591 = vrot.slane %v3589, 3
        %v3592 = vor.u32 %v3588, %v3591
        %v3593 = vsel %vm724, %v3584, %v3592
        %v3605 = vunpack.c.l.b16 %v3563
        %v3606 = vunpack.c.h.b16 %v3563
        %v3607 = vunpack.c.l.b16 %v3564
        %v3608 = vunpack.c.h.b16 %v3564
        %v3609 = vunpack.c.l.b16 %v3565
        %v3610 = vunpack.c.h.b16 %v3565
        %v3611 = vunpack.c.l.b16 %v3566
        %v3612 = vunpack.c.h.b16 %v3566
        %v3613 = vunpack.c.l.b16 %v3567
        %v3614 = vunpack.c.h.b16 %v3567
        %v3615 = vunpack.c.l.b16 %v3568
        %v3616 = vunpack.c.h.b16 %v3568
        %v3617 = vunpack.c.l.b16 %v3569
        %v3618 = vunpack.c.h.b16 %v3569
        %v3619 = vunpack.c.l.b16 %v3570
        %v3620 = vunpack.c.h.b16 %v3570
        %v3621 = vunpack.c.l.b16 %v3571
        %v3622 = vunpack.c.h.b16 %v3571
        %v3623 = vunpack.c.l.b16 %v3572
        %v3624 = vunpack.c.h.b16 %v3572
        %v3625 = vunpack.c.l.b16 %v3573
        %v3626 = vunpack.c.h.b16 %v3573
        %v3627 = vpack.c.b16 %v3607, %v3605
        %v3628 = vpack.c.b16 %v3608, %v3606
        %v3629 = vpack.c.b16 %v3611, %v3609
        %v3630 = vpack.c.b16 %v3612, %v3610
        %v3631 = vpack.c.b16 %v3615, %v3613
        %v3632 = vpack.c.b16 %v3616, %v3614
        %v3633 = vpack.c.b16 %v3619, %v3617
        %v3634 = vpack.c.b16 %v3620, %v3618
        %v3635 = vpack.c.b16 %v3623, %v3621
        %v3636 = vpack.c.b16 %v3624, %v3622
        %v3637 = vpack.c.b16 %v3625, %v3625
        %v3638 = vpack.c.b16 %v3626, %v3626
        %v3650 = vsel %vm2997, %v3593, 0
        %v3653 = vsel %vm3001, %v3637, 0
        %v3656 = vsel %vm3001, %v3638, 0
        %3658 = vmatprep.subr.bf16.mxu0 %v3628
        %3659 = vmatpush1.bf16.msra.mxu0 %v3627
        %3660 = vmatprep.subr.bf16.mxu0 %v3630
        %3661 = vmatpush1.bf16.msra.mxu0 %v3629
        %3662 = vmatprep.subr.bf16.mxu0 %v3632
        %3663 = vmatpush1.bf16.msra.mxu0 %v3631
        %3664 = vmatprep.subr.bf16.mxu0 %v3634
        %3665 = vmatpush1.bf16.msra.mxu0 %v3633
        %3666 = vmatprep.subr.bf16.mxu0 %v3636
        %3667 = vmatpush1.bf16.msra.mxu0 %v3635
        %3668 = vmatprep.subr.bf16.mxu0 %v3656
        %3669 = vmatpush1.bf16.msra.mxu0 %v3653
        %3670 = vmatprep.subr.bf16.mxu0 0
        %3671 = vmatpush1.bf16.msra.mxu0 0
        %3672 = vmatprep.subr.bf16.mxu0 0
        %3673 = vmatpush1.bf16.msra.mxu0 0
        %3674 = vmatprep.subr.bf16.mxu0 0
        %3675 = vmatpush1.bf16.msra.mxu0 0
        %3676 = vmatprep.subr.bf16.mxu0 0
        %3677 = vmatpush1.bf16.msra.mxu0 0
        %3678 = vmatprep.subr.bf16.mxu0 0
        %3679 = vmatpush1.bf16.msra.mxu0 0
        %3680 = vmatprep.subr.bf16.mxu0 0
        %3681 = vmatpush1.bf16.msra.mxu0 0
        %3682 = vmatprep.subr.bf16.mxu0 0
        %3683 = vmatpush1.bf16.msra.mxu0 0
        %3684 = vmatprep.subr.bf16.mxu0 0
        %3685 = vmatpush1.bf16.msra.mxu0 0
        %3686 = vmatprep.subr.bf16.mxu0 0
        %3687 = vmatpush1.bf16.msra.mxu0 0
        %3688 = vmatprep.subr.bf16.mxu0 0
        %3689 = vmatpush1.bf16.msra.mxu0 0
        %3690 = vmatprep.mubr.bf16.mxu0 0
        %3691 = vmatmul.mubr.bf16.gmra.mrb[0].mxu0 %v3650
        %v3692 = vpop.f32.mrb[0].mxu0
        %v3693 = vadd.f32 0.0, %v3692
        %v3694 = vpop.f32.mrb[0].mxu0
        %v3695 = vadd.f32 0.0, %v3694
        %v3696 = vpop.f32.mrb[0].mxu0
        %v3697 = vadd.f32 0.0, %v3696
        %v3698 = vpop.f32.mrb[0].mxu0
        %v3699 = vadd.f32 0.0, %v3698
        %3700 = vdwg.mxu0
        %v3701 = vadd.f32 %v3557, %v3693
        %v3702 = vadd.f32 %v3558, %v3695
        %v3703 = vadd.f32 %v3559, %v3697
        %v3704 = vadd.f32 %v3560, %v3699
        %v3705 = vld [vmem:[#allocation3] sm:$0x8]
        %s3706 = scalar_lea.vmem %s7, 528
        %v3707 = vld [vmem:[%s3706] sm:$0xff]
        %v3708 = vld [vmem:[%s3706 + $0x8] sm:$0xff]
        %v3709 = vld [vmem:[%s3706 + $0x10] sm:$0xff]
        %v3710 = vld [vmem:[%s3706 + $0x18] sm:$0xff]
        %v3711 = vld [vmem:[%s3706 + $0x20] sm:$0xff]
        %v3712 = vld [vmem:[%s3706 + $0x28] sm:$0xff]
        %v3713 = vld [vmem:[%s3706 + $0x30] sm:$0xff]
        %v3714 = vld [vmem:[%s3706 + $0x38] sm:$0xff]
        %v3715 = vld [vmem:[%s3706 + $0x40] sm:$0xff]
        %v3716 = vld [vmem:[%s3706 + $0x48] sm:$0xff]
        %v3717 = vld [vmem:[%s3706 + $0x50] sm:$0xff]
        %v3719 = vunpack.c.l.b16 %v3705
        %v3720 = vpack.c.b16 %v2926, %v3719
        %v3721 = vrot.slane %v3720, 3
        %v3722 = vrot.slane %v3576, 3
        %v3723 = vsel %vm2608, %v3721, %v3722
        %v3735 = vunpack.c.l.b16 %v3707
        %v3736 = vunpack.c.h.b16 %v3707
        %v3737 = vunpack.c.l.b16 %v3708
        %v3738 = vunpack.c.h.b16 %v3708
        %v3739 = vunpack.c.l.b16 %v3709
        %v3740 = vunpack.c.h.b16 %v3709
        %v3741 = vunpack.c.l.b16 %v3710
        %v3742 = vunpack.c.h.b16 %v3710
        %v3743 = vunpack.c.l.b16 %v3711
        %v3744 = vunpack.c.h.b16 %v3711
        %v3745 = vunpack.c.l.b16 %v3712
        %v3746 = vunpack.c.h.b16 %v3712
        %v3747 = vunpack.c.l.b16 %v3713
        %v3748 = vunpack.c.h.b16 %v3713
        %v3749 = vunpack.c.l.b16 %v3714
        %v3750 = vunpack.c.h.b16 %v3714
        %v3751 = vunpack.c.l.b16 %v3715
        %v3752 = vunpack.c.h.b16 %v3715
        %v3753 = vunpack.c.l.b16 %v3716
        %v3754 = vunpack.c.h.b16 %v3716
        %v3755 = vunpack.c.l.b16 %v3717
        %v3756 = vunpack.c.h.b16 %v3717
        %v3757 = vpack.c.b16 %v3737, %v3735
        %v3758 = vpack.c.b16 %v3738, %v3736
        %v3759 = vpack.c.b16 %v3741, %v3739
        %v3760 = vpack.c.b16 %v3742, %v3740
        %v3761 = vpack.c.b16 %v3745, %v3743
        %v3762 = vpack.c.b16 %v3746, %v3744
        %v3763 = vpack.c.b16 %v3749, %v3747
        %v3764 = vpack.c.b16 %v3750, %v3748
        %v3765 = vpack.c.b16 %v3753, %v3751
        %v3766 = vpack.c.b16 %v3754, %v3752
        %v3767 = vpack.c.b16 %v3755, %v3755
        %v3768 = vpack.c.b16 %v3756, %v3756
        %v3780 = vsel %vm2997, %v3723, 0
        %v3783 = vsel %vm3001, %v3767, 0
        %v3786 = vsel %vm3001, %v3768, 0
        %3788 = vmatprep.subr.bf16.mxu0 %v3758
        %3789 = vmatpush1.bf16.msra.mxu0 %v3757
        %3790 = vmatprep.subr.bf16.mxu0 %v3760
        %3791 = vmatpush1.bf16.msra.mxu0 %v3759
        %3792 = vmatprep.subr.bf16.mxu0 %v3762
        %3793 = vmatpush1.bf16.msra.mxu0 %v3761
        %3794 = vmatprep.subr.bf16.mxu0 %v3764
        %3795 = vmatpush1.bf16.msra.mxu0 %v3763
        %3796 = vmatprep.subr.bf16.mxu0 %v3766
        %3797 = vmatpush1.bf16.msra.mxu0 %v3765
        %3798 = vmatprep.subr.bf16.mxu0 %v3786
        %3799 = vmatpush1.bf16.msra.mxu0 %v3783
        %3800 = vmatprep.subr.bf16.mxu0 0
        %3801 = vmatpush1.bf16.msra.mxu0 0
        %3802 = vmatprep.subr.bf16.mxu0 0
        %3803 = vmatpush1.bf16.msra.mxu0 0
        %3804 = vmatprep.subr.bf16.mxu0 0
        %3805 = vmatpush1.bf16.msra.mxu0 0
        %3806 = vmatprep.subr.bf16.mxu0 0
        %3807 = vmatpush1.bf16.msra.mxu0 0
        %3808 = vmatprep.subr.bf16.mxu0 0
        %3809 = vmatpush1.bf16.msra.mxu0 0
        %3810 = vmatprep.subr.bf16.mxu0 0
        %3811 = vmatpush1.bf16.msra.mxu0 0
        %3812 = vmatprep.subr.bf16.mxu0 0
        %3813 = vmatpush1.bf16.msra.mxu0 0
        %3814 = vmatprep.subr.bf16.mxu0 0
        %3815 = vmatpush1.bf16.msra.mxu0 0
        %3816 = vmatprep.subr.bf16.mxu0 0
        %3817 = vmatpush1.bf16.msra.mxu0 0
        %3818 = vmatprep.subr.bf16.mxu0 0
        %3819 = vmatpush1.bf16.msra.mxu0 0
        %3820 = vmatprep.mubr.bf16.mxu0 0
        %3821 = vmatmul.mubr.bf16.gmra.mrb[0].mxu0 %v3780
        %v3822 = vpop.f32.mrb[0].mxu0
        %v3823 = vadd.f32 0.0, %v3822
        %v3824 = vpop.f32.mrb[0].mxu0
        %v3825 = vadd.f32 0.0, %v3824
        %v3826 = vpop.f32.mrb[0].mxu0
        %v3827 = vadd.f32 0.0, %v3826
        %v3828 = vpop.f32.mrb[0].mxu0
        %v3829 = vadd.f32 0.0, %v3828
        %3830 = vdwg.mxu0
        %v3831 = vadd.f32 %v3701, %v3823
        %v3832 = vadd.f32 %v3702, %v3825
        %v3833 = vadd.f32 %v3703, %v3827
        %v3834 = vadd.f32 %v3704, %v3829
        %v3835 = vld [vmem:[%s8] sm:$0x3]
        %v3837 = vlaneseq
        %v3838 = vshrl.u32 %v3837, 7
        %v3839 = vsub.s32 0, %v3838
        %v3840 = vrot.slane %v3835, %v3839
        %v3841 = vlaneseq
        %v3842 = vshrl.u32 %v3841, 7
        %v3843 = vsub.s32 1, %v3842
        %v3844 = vrot.slane %v3835, %v3843
        %v3847 = vadd.f32 %v3831, %v3840
        %v3848 = vadd.f32 %v3832, %v3844
        %v3849 = vadd.f32 %v3833, %v3840
        %v3850 = vadd.f32 %v3834, %v3844
        %v3851 = vxor.u32 %v3847, 2147483648
        %v3852 = vxor.u32 %v3848, 2147483648
        %v3853 = vxor.u32 %v3849, 2147483648
        %v3854 = vxor.u32 %v3850, 2147483648
        %v3855 = vmul.f32 %v3851, 1.442695
        %v3856 = vpow.pop %v3855
        %v3857 = vmul.f32 %v3852, 1.442695
        %v3858 = vpow.pop %v3857
        %v3859 = vmul.f32 %v3853, 1.442695
        %v3860 = vpow.pop %v3859
        %v3861 = vmul.f32 %v3854, 1.442695
        %v3862 = vpow.pop %v3861
        %v3863 = vadd.f32 %v3856, 1.0
        %v3864 = vadd.f32 %v3858, 1.0
        %v3865 = vadd.f32 %v3860, 1.0
        %v3866 = vadd.f32 %v3862, 1.0
        %v3867 = vrcp.pop %v3863
        %v3868 = vmul.f32 1.0, %v3867
        %v3869 = vrcp.pop %v3864
        %v3870 = vmul.f32 1.0, %v3869
        %v3871 = vrcp.pop %v3865
        %v3872 = vmul.f32 1.0, %v3871
        %v3873 = vrcp.pop %v3866
        %v3874 = vmul.f32 1.0, %v3873
        %v3875 = vld [vmem:[#allocation4] sm:$0xff]
        %v3876 = vld [vmem:[#allocation4 + $0x8] sm:$0xff]
        %v3877 = vld [vmem:[#allocation4 + $0x10] sm:$0xff]
        %v3878 = vld [vmem:[#allocation4 + $0x18] sm:$0xff]
        %v3879 = vmul.f32 %v3875, %v3868
        %v3880 = vmul.f32 %v3876, %v3870
        %v3881 = vmul.f32 %v3877, %v3872
        %v3882 = vmul.f32 %v3878, %v3874
        %3883 = vst [vmem:[%s325] sm:$0xff] %v3879
        %3884 = vst [vmem:[%s325 + $0x8] sm:$0xff] %v3880
        %3885 = vst [vmem:[%s325 + $0x10] sm:$0xff] %v3881
        %3886 = vst [vmem:[%s325 + $0x18] sm:$0xff] %v3882
        %s3887 = sand.u32 %s225, 1
        %s3888 = scalar_lea.sflag [#allocation6], %s3887
        %s3889 = sand.u32 %s225, 1
        %s3890 = smul.addr %s3889, 32
        %s3891 = scalar_lea.vmem [#allocation5], %s3890
        // Predicated region
        $region61: #{tpu_custom_call.1} parent=55 // pred_check
          %p3892 = pneg %p235
        $region62: #{tpu_custom_call.1} parent=55 // pred_check_branch
          %3894 = sbr.rel (%p3892) target = $region64
        $region63: #{tpu_custom_call.1} parent=55 // pred_region
          %s3896 = ssub.s32 512, 512
          %3897 = vsyncadd %s3888, %s3896
          %s3898 = smul.addr %s23, 4
          %s3899 = smul.addr %s3898, 128
          %s3900 = scalar_lea.hbm %s9, %s3899
          %s3901 = sshll.u32 %s3891, 4
          %s3902 = int_to_ptr.vmem [resolvable:$true] %s3901
          %3907 = dma.vmem_to_hbm [thread:$0]  %s3902, 512, %s3900, %s3888, 256, 256, 16
        $region64: #{tpu_custom_call.1} parent=55 // pred_fallthru
          _
      $region56: #{tpu_custom_call.1} parent=5 // pred_fallthru
        _
      %p3908 = scmp.le.s32.totalorder 2, %s18
      // Predicated region
      $region65: #{tpu_custom_call.1} parent=5 // pred_check
        %p3909 = pneg %p3908
      $region66: #{tpu_custom_call.1} parent=5 // pred_check_branch
        %3911 = sbr.rel (%p3909) target = $region68
      $region67: #{tpu_custom_call.1} parent=5 // pred_region
        %s3912 = ssub.s32 %s18, 2
        // Predicated region
        $region69: #{tpu_custom_call.1} parent=67 // pred_check
          %p3913 = pneg %p241
        $region70: #{tpu_custom_call.1} parent=67 // pred_check_branch
          %3915 = sbr.rel (%p3913) target = $region72
        $region71: #{tpu_custom_call.1} parent=67 // pred_region
          %s3916 = sand.u32 %s226, 1
          %s3917 = scalar_lea.sflag [#allocation6], %s3916
          %s3918 = sand.u32 %s226, 1
          %s3919 = smul.addr %s3918, 32
          %s3920 = scalar_lea.vmem [#allocation5], %s3919
          %3921 = dma.done %s3917, 512
        $region72: #{tpu_custom_call.1} parent=67 // pred_fallthru
          _
      $region68: #{tpu_custom_call.1} parent=5 // pred_fallthru
        _
    $region6: #{tpu_custom_call.1} parent=1 // loop_footer
      %s22 = sadd.s32 1, %s18
    $region7: #{tpu_custom_call.1} parent=1 // loop_footer_branch
      %17 = sbr.rel target = $region3
    $region8: #{tpu_custom_call.1} parent=1 // loop_exit
      _
    %3922 = vsyncpa [#allocation6], 1
    %s3923 = scalar_lea.sflag [#allocation6], 1
    %3924 = vsyncpa %s3923, 1

</llo_original>
